<compile_context>
chip_gen: v7x
topology: tpu7x:2x2x1
jax: 0.10.0
libtpu: 0.0.40
codegen_flags: <defaults>
</compile_context>

<pallas_src>
import jax
import jax.numpy as jnp
from jax.experimental import pallas as pl
from jax.experimental.pallas import tpu as pltpu

LANE = 128  # lane-dense output width (v5e MXU is 128 wide; fine on v6e/v7x)


# ----------------------------- Pallas kernels ------------------------------

def _conv_pool_kernel(t00_ref, t01_ref, t10_ref, t11_ref, w_ref, b_ref, o_ref):
    """Fused conv-as-matmul + 2x2 maxpool + bias + ReLU for one image.

    Each t??_ref holds the im2col patches of one pooling tap: (1, H2*W2, K).
    w_ref: (K, LANE) resident weight, b_ref: (1, LANE) resident bias.
    Uses maxpool(relu(conv + b)) == relu(max over taps(conv) + b).
    """
    w = w_ref[...]

    def tap(t_ref):
        return jnp.dot(t_ref[0], w, preferred_element_type=jnp.float32)

    m = jnp.maximum(jnp.maximum(tap(t00_ref), tap(t01_ref)),
                    jnp.maximum(tap(t10_ref), tap(t11_ref)))
    o_ref[0] = jnp.maximum(m + b_ref[...], 0.0).astype(o_ref.dtype)


def _mlp_kernel(x_ref, w1_ref, b1_ref, w2_ref, b2_ref, w3_ref, b3_ref, o_ref):
    """Fused fc1+ReLU -> fc2+ReLU -> fc3; intermediates stay in vregs/VMEM."""
    h = jnp.dot(x_ref[...], w1_ref[...], preferred_element_type=jnp.float32)
    h = jnp.maximum(h + b1_ref[...], 0.0)
    h = jnp.dot(h, w2_ref[...], preferred_element_type=jnp.float32)
    h = jnp.maximum(h + b2_ref[...], 0.0)
    h = jnp.dot(h, w3_ref[...], preferred_element_type=jnp.float32)
    o_ref[...] = (h + b3_ref[...]).astype(o_ref.dtype)


# ----------------------------- kernel wrappers ------------------------------

def conv_relu_pool(x, w_pad, b_pad, kh, kw):
    """x: (B,H,W,C) NHWC f32; w_pad: (kh*kw*C, LANE); b_pad: (1, LANE).

    Returns (B, H2*W2, LANE) pooled+ReLU'd activations (lane-padded Cout).
    """
    B, H, W, C = x.shape
    OH, OW = H - kh + 1, W - kw + 1
    H2, W2 = OH // 2, OW // 2
    K = kh * kw * C
    M = H2 * W2

    # XLA glue: build the im2col patches of each of the 4 pooling taps.
    # Total bytes == one full im2col (4*H2*W2 == OH*OW), no extra copies.
    taps = []
    for di in range(2):
        for dj in range(2):
            cols = []
            for i in range(kh):
                for j in range(kw):
                    cols.append(x[:, di + i:di + i + 2 * H2:2,
                                    dj + j:dj + j + 2 * W2:2, :])
            # (B, H2, W2, kh*kw, C) -> (B, H2*W2, kh*kw*C), (i, j, c) order
            taps.append(jnp.stack(cols, axis=3).reshape(B, M, K))

    tap_spec = pl.BlockSpec((1, M, K), lambda b: (b, 0, 0))
    out = pl.pallas_call(
        _conv_pool_kernel,
        grid=(B,),
        in_specs=[tap_spec, tap_spec, tap_spec, tap_spec,
                  pl.BlockSpec((K, LANE), lambda b: (0, 0)),     # resident W
                  pl.BlockSpec((1, LANE), lambda b: (0, 0))],    # resident b
        out_specs=pl.BlockSpec((1, M, LANE), lambda b: (b, 0, 0)),
        out_shape=jax.ShapeDtypeStruct((B, M, LANE), jnp.float32),
        compiler_params=pltpu.CompilerParams(
            dimension_semantics=("parallel",)),
    )(*taps, w_pad, b_pad)
    return out, H2, W2


def mlp_head(x, w1, b1, w2, b2, w3, b3):
    """x: (B, 400). Weights already (in, out) layout, padded to 128 lanes."""
    B, K = x.shape
    # Largest batch tile (multiple of 8, capped for VMEM headroom on v7x's
    # 64 MiB) that divides B; fall back to the whole batch for tiny B.
    tile = B
    for t in (1024, 512, 256, 128, 64, 32, 16, 8):
        if B % t == 0:
            tile = t
            break
    grid = (B // tile,)

    out = pl.pallas_call(
        _mlp_kernel,
        grid=grid,
        in_specs=[pl.BlockSpec((tile, K), lambda i: (i, 0)),
                  pl.BlockSpec(w1.shape, lambda i: (0, 0)),
                  pl.BlockSpec(b1.shape, lambda i: (0, 0)),
                  pl.BlockSpec(w2.shape, lambda i: (0, 0)),
                  pl.BlockSpec(b2.shape, lambda i: (0, 0)),
                  pl.BlockSpec(w3.shape, lambda i: (0, 0)),
                  pl.BlockSpec(b3.shape, lambda i: (0, 0))],
        out_specs=pl.BlockSpec((tile, LANE), lambda i: (i, 0)),
        out_shape=jax.ShapeDtypeStruct((B, LANE), jnp.float32),
        compiler_params=pltpu.CompilerParams(
            dimension_semantics=("parallel",)),
    )(x, w1, b1, w2, b2, w3, b3)
    return out


# ------------------------------- parameters ---------------------------------

def init_params(key):
    """Synthetic parameters in the PyTorch module's (torch) layouts."""
    ks = jax.random.split(key, 10)

    def uni(k, shape, fan_in):
        bound = 1.0 / jnp.sqrt(float(fan_in))
        return jax.random.uniform(k, shape, jnp.float32, -bound, bound)

    return {
        "conv1_w": uni(ks[0], (6, 3, 5, 5), 3 * 5 * 5),
        "conv1_b": uni(ks[1], (6,), 3 * 5 * 5),
        "conv2_w": uni(ks[2], (16, 6, 5, 5), 6 * 5 * 5),
        "conv2_b": uni(ks[3], (16,), 6 * 5 * 5),
        "fc1_w": uni(ks[4], (120, 400), 400),
        "fc1_b": uni(ks[5], (120,), 400),
        "fc2_w": uni(ks[6], (84, 120), 120),
        "fc2_b": uni(ks[7], (84,), 120),
        "fc3_w": uni(ks[8], (10, 84), 84),
        "fc3_b": uni(ks[9], (10,), 84),
    }


def prepare_params(p):
    """One-time transform of torch-layout params into kernel layouts:
    matmul-shaped, (in, out), lane-padded to 128, fc1 input permuted to HWC."""
    def conv_wb(w, b):
        cout, cin, kh, kw = w.shape
        wm = jnp.transpose(w, (2, 3, 1, 0)).reshape(kh * kw * cin, cout)
        wm = jnp.pad(wm, ((0, 0), (0, LANE - cout)))
        bm = jnp.pad(b, (0, LANE - cout)).reshape(1, LANE)
        return wm, bm

    def fc_wb(w, b, in_pad, out_pad):
        out_f, in_f = w.shape
        wm = jnp.pad(w.T, ((0, in_pad - in_f), (0, out_pad - out_f)))
        bm = jnp.pad(b, (0, out_pad - out_f)).reshape(1, out_pad)
        return wm, bm

    c1w, c1b = conv_wb(p["conv1_w"], p["conv1_b"])
    c2w, c2b = conv_wb(p["conv2_w"], p["conv2_b"])

    # fc1: permute its 400 input features from torch CHW-flatten order to the
    # HWC order produced by the NHWC conv pipeline (kills a runtime transpose).
    fc1_hwc = p["fc1_w"].reshape(120, 16, 5, 5).transpose(0, 2, 3, 1)
    fc1_hwc = fc1_hwc.reshape(120, 400)
    f1w, f1b = fc_wb(fc1_hwc, p["fc1_b"], 400, LANE)
    f2w, f2b = fc_wb(p["fc2_w"], p["fc2_b"], LANE, LANE)
    f3w, f3b = fc_wb(p["fc3_w"], p["fc3_b"], LANE, LANE)

    return dict(conv1_w=c1w, conv1_b=c1b, conv2_w=c2w, conv2_b=c2b,
                fc1_w=f1w, fc1_b=f1b, fc2_w=f2w, fc2_b=f2b,
                fc3_w=f3w, fc3_b=f3b)


# ------------------------------- forward pass --------------------------------

def net_forward(x_nchw, kp):
    """Forward matching torch Net.forward. x_nchw: (B, 3, 32, 32) f32."""
    B = x_nchw.shape[0]
    x = jnp.transpose(x_nchw, (0, 2, 3, 1))                      # NHWC

    y, h2, w2 = conv_relu_pool(x, kp["conv1_w"], kp["conv1_b"], 5, 5)
    y = y[:, :, :6].reshape(B, h2, w2, 6)                        # (B,14,14,6)

    y, h2, w2 = conv_relu_pool(y, kp["conv2_w"], kp["conv2_b"], 5, 5)
    y = y[:, :, :16].reshape(B, h2 * w2 * 16)                    # (B,400) HWC

    y = mlp_head(y, kp["fc1_w"], kp["fc1_b"], kp["fc2_w"], kp["fc2_b"],
                 kp["fc3_w"], kp["fc3_b"])                       # (B,128)
    return y[:, :10]


# --------------------------- pure-JAX reference ------------------------------

def reference_forward(x_nchw, p):
    hi = jax.lax.Precision.HIGHEST

    def conv(x, w, b):
        y = jax.lax.conv_general_dilated(
            x, w, window_strides=(1, 1), padding="VALID",
            dimension_numbers=("NCHW", "OIHW", "NCHW"), precision=hi)
        return y + b.reshape(1, -1, 1, 1)

    def pool(x):
        return jax.lax.reduce_window(x, -jnp.inf, jax.lax.max,
                                     (1, 1, 2, 2), (1, 1, 2, 2), "VALID")

    y = pool(jax.nn.relu(conv(x_nchw, p["conv1_w"], p["conv1_b"])))
    y = pool(jax.nn.relu(conv(y, p["conv2_w"], p["conv2_b"])))
    y = y.reshape(y.shape[0], -1)                                # CHW flatten
    y = jax.nn.relu(jnp.dot(y, p["fc1_w"].T, precision=hi) + p["fc1_b"])
    y = jax.nn.relu(jnp.dot(y, p["fc2_w"].T, precision=hi) + p["fc2_b"])
    return jnp.dot(y, p["fc3_w"].T, precision=hi) + p["fc3_b"]


# --------------------------------- main --------------------------------------

if __name__ == "__main__":
    key = jax.random.PRNGKey(0)
    k_params, k_x = jax.random.split(key)

    params = init_params(k_params)
    kparams = prepare_params(params)          # one-time weight layout prep
    x = jax.random.normal(k_x, (2, 3, 32, 32), dtype=jnp.float32)

    out = jax.jit(net_forward)(x, kparams)
    out = jax.block_until_ready(out)
    assert out.shape == (2, 10), out.shape

    ref = reference_forward(x, params)
    err = float(jnp.max(jnp.abs(out - ref)))
    assert err < 2e-3, f"max abs err vs reference: {err}"
    print("KERNEL_OK")
</pallas_src>

<mosaic_0001>
module attributes {stable_mosaic.version = 11 : i64} {
  func.func @_conv_pool_kernel(%arg0: i32, %arg1: memref<1x196x75xf32, #tpu.memory_space<vmem>>, %arg2: memref<1x196x75xf32, #tpu.memory_space<vmem>>, %arg3: memref<1x196x75xf32, #tpu.memory_space<vmem>>, %arg4: memref<1x196x75xf32, #tpu.memory_space<vmem>>, %arg5: memref<75x128xf32, #tpu.memory_space<vmem>>, %arg6: memref<1x128xf32, #tpu.memory_space<vmem>>, %arg7: memref<1x196x128xf32, #tpu.memory_space<vmem>>) attributes {dimension_semantics = [#tpu.dimension_semantics<parallel>], iteration_bounds = array<i64: 2>, scalar_prefetch = 0 : i64, scratch_operands = 0 : i64, tpu.core_type = #tpu.core_type<tc>, window_params = [{transform_indices = @transform_0, window_bounds = array<i64: 1, 196, 75>}, {transform_indices = @transform_1, window_bounds = array<i64: 1, 196, 75>}, {transform_indices = @transform_2, window_bounds = array<i64: 1, 196, 75>}, {transform_indices = @transform_3, window_bounds = array<i64: 1, 196, 75>}, {pipeline_mode = #tpu.pipeline_mode<synchronous>, transform_indices = @transform_4, window_bounds = array<i64: 75, 128>}, {pipeline_mode = #tpu.pipeline_mode<synchronous>, transform_indices = @transform_5, window_bounds = array<i64: 1, 128>}, {transform_indices = @transform_6, window_bounds = array<i64: 1, 196, 128>}]} {
    %c0 = arith.constant 0 : index
    %c0_0 = arith.constant 0 : index
    %0 = vector.load %arg5[%c0, %c0_0] : memref<75x128xf32, #tpu.memory_space<vmem>>, vector<75x128xf32>
    %c0_1 = arith.constant 0 : index
    %c0_2 = arith.constant 0 : index
    %c0_3 = arith.constant 0 : index
    %1 = vector.load %arg1[%c0_1, %c0_2, %c0_3] : memref<1x196x75xf32, #tpu.memory_space<vmem>>, vector<1x196x75xf32>
    %2 = vector.shape_cast %1 : vector<1x196x75xf32> to vector<196x75xf32>
    %cst = arith.constant dense<0.000000e+00> : vector<196x128xf32>
    %3 = tpu.matmul %2, %0, %cst {dimension_numbers = #tpu.dot_dimension_numbers<[1], [0], [0], [1], [0, 0, 1, 1], [], []>} : vector<196x75xf32>, vector<75x128xf32>, vector<196x128xf32> -> vector<196x128xf32>
    %c0_4 = arith.constant 0 : index
    %c0_5 = arith.constant 0 : index
    %c0_6 = arith.constant 0 : index
    %4 = vector.load %arg2[%c0_4, %c0_5, %c0_6] : memref<1x196x75xf32, #tpu.memory_space<vmem>>, vector<1x196x75xf32>
    %5 = vector.shape_cast %4 : vector<1x196x75xf32> to vector<196x75xf32>
    %cst_7 = arith.constant dense<0.000000e+00> : vector<196x128xf32>
    %6 = tpu.matmul %5, %0, %cst_7 {dimension_numbers = #tpu.dot_dimension_numbers<[1], [0], [0], [1], [0, 0, 1, 1], [], []>} : vector<196x75xf32>, vector<75x128xf32>, vector<196x128xf32> -> vector<196x128xf32>
    %7 = arith.maximumf %3, %6 : vector<196x128xf32>
    %c0_8 = arith.constant 0 : index
    %c0_9 = arith.constant 0 : index
    %c0_10 = arith.constant 0 : index
    %8 = vector.load %arg3[%c0_8, %c0_9, %c0_10] : memref<1x196x75xf32, #tpu.memory_space<vmem>>, vector<1x196x75xf32>
    %9 = vector.shape_cast %8 : vector<1x196x75xf32> to vector<196x75xf32>
    %cst_11 = arith.constant dense<0.000000e+00> : vector<196x128xf32>
    %10 = tpu.matmul %9, %0, %cst_11 {dimension_numbers = #tpu.dot_dimension_numbers<[1], [0], [0], [1], [0, 0, 1, 1], [], []>} : vector<196x75xf32>, vector<75x128xf32>, vector<196x128xf32> -> vector<196x128xf32>
    %c0_12 = arith.constant 0 : index
    %c0_13 = arith.constant 0 : index
    %c0_14 = arith.constant 0 : index
    %11 = vector.load %arg4[%c0_12, %c0_13, %c0_14] : memref<1x196x75xf32, #tpu.memory_space<vmem>>, vector<1x196x75xf32>
    %12 = vector.shape_cast %11 : vector<1x196x75xf32> to vector<196x75xf32>
    %cst_15 = arith.constant dense<0.000000e+00> : vector<196x128xf32>
    %13 = tpu.matmul %12, %0, %cst_15 {dimension_numbers = #tpu.dot_dimension_numbers<[1], [0], [0], [1], [0, 0, 1, 1], [], []>} : vector<196x75xf32>, vector<75x128xf32>, vector<196x128xf32> -> vector<196x128xf32>
    %14 = arith.maximumf %10, %13 : vector<196x128xf32>
    %15 = arith.maximumf %7, %14 : vector<196x128xf32>
    %c0_16 = arith.constant 0 : index
    %c0_17 = arith.constant 0 : index
    %16 = vector.load %arg6[%c0_16, %c0_17] : memref<1x128xf32, #tpu.memory_space<vmem>>, vector<1x128xf32>
    %17 = vector.broadcast %16 : vector<1x128xf32> to vector<196x128xf32>
    %18 = arith.addf %15, %17 : vector<196x128xf32>
    %cst_18 = arith.constant 0.000000e+00 : f32
    %19 = vector.broadcast %cst_18 : f32 to vector<196x128xf32>
    %20 = arith.maximumf %18, %19 : vector<196x128xf32>
    %c0_19 = arith.constant 0 : index
    %c0_20 = arith.constant 0 : index
    %c0_21 = arith.constant 0 : index
    %21 = vector.load %arg7[%c0_19, %c0_20, %c0_21] : memref<1x196x128xf32, #tpu.memory_space<vmem>>, vector<1x196x128xf32>
    %22 = vector.shape_cast %21 : vector<1x196x128xf32> to vector<196x128xf32>
    %23 = vector.shape_cast %20 : vector<196x128xf32> to vector<1x196x128xf32>
    tpu.vector_store %arg7[%c0_19, %c0_20, %c0_21], %23 {strides = array<i32>} : memref<1x196x128xf32, #tpu.memory_space<vmem>>, vector<1x196x128xf32>,
    return
  }
  func.func @transform_0(%arg0: i32) -> (i32, i32, i32) {
    %c0_i32 = arith.constant 0 : i32
    %c0_i32_0 = arith.constant 0 : i32
    %c0_i32_1 = arith.constant 0 : i32
    return %arg0, %c0_i32, %c0_i32_0 : i32, i32, i32
  }
  func.func @transform_1(%arg0: i32) -> (i32, i32, i32) {
    %c0_i32 = arith.constant 0 : i32
    %c0_i32_0 = arith.constant 0 : i32
    %c0_i32_1 = arith.constant 0 : i32
    return %arg0, %c0_i32, %c0_i32_0 : i32, i32, i32
  }
  func.func @transform_2(%arg0: i32) -> (i32, i32, i32) {
    %c0_i32 = arith.constant 0 : i32
    %c0_i32_0 = arith.constant 0 : i32
    %c0_i32_1 = arith.constant 0 : i32
    return %arg0, %c0_i32, %c0_i32_0 : i32, i32, i32
  }
  func.func @transform_3(%arg0: i32) -> (i32, i32, i32) {
    %c0_i32 = arith.constant 0 : i32
    %c0_i32_0 = arith.constant 0 : i32
    %c0_i32_1 = arith.constant 0 : i32
    return %arg0, %c0_i32, %c0_i32_0 : i32, i32, i32
  }
  func.func @transform_4(%arg0: i32) -> (i32, i32) {
    %c0_i32 = arith.constant 0 : i32
    %c0_i32_0 = arith.constant 0 : i32
    %c0_i32_1 = arith.constant 0 : i32
    return %c0_i32, %c0_i32_0 : i32, i32
  }
  func.func @transform_5(%arg0: i32) -> (i32, i32) {
    %c0_i32 = arith.constant 0 : i32
    %c0_i32_0 = arith.constant 0 : i32
    %c0_i32_1 = arith.constant 0 : i32
    return %c0_i32, %c0_i32_0 : i32, i32
  }
  func.func @transform_6(%arg0: i32) -> (i32, i32, i32) {
    %c0_i32 = arith.constant 0 : i32
    %c0_i32_0 = arith.constant 0 : i32
    %c0_i32_1 = arith.constant 0 : i32
    return %arg0, %c0_i32, %c0_i32_0 : i32, i32, i32
  }
}

module attributes {stable_mosaic.version = 11 : i64} {
  func.func @_mlp_kernel(%arg0: i32, %arg1: memref<2x400xf32, #tpu.memory_space<vmem>>, %arg2: memref<400x128xf32, #tpu.memory_space<vmem>>, %arg3: memref<1x128xf32, #tpu.memory_space<vmem>>, %arg4: memref<128x128xf32, #tpu.memory_space<vmem>>, %arg5: memref<1x128xf32, #tpu.memory_space<vmem>>, %arg6: memref<128x128xf32, #tpu.memory_space<vmem>>, %arg7: memref<1x128xf32, #tpu.memory_space<vmem>>, %arg8: memref<2x128xf32, #tpu.memory_space<vmem>>) attributes {dimension_semantics = [#tpu.dimension_semantics<parallel>], iteration_bounds = array<i64: 1>, scalar_prefetch = 0 : i64, scratch_operands = 0 : i64, tpu.core_type = #tpu.core_type<tc>, window_params = [{transform_indices = @transform_0, window_bounds = array<i64: 2, 400>}, {pipeline_mode = #tpu.pipeline_mode<synchronous>, transform_indices = @transform_1, window_bounds = array<i64: 400, 128>}, {pipeline_mode = #tpu.pipeline_mode<synchronous>, transform_indices = @transform_2, window_bounds = array<i64: 1, 128>}, {pipeline_mode = #tpu.pipeline_mode<synchronous>, transform_indices = @transform_3, window_bounds = array<i64: 128, 128>}, {pipeline_mode = #tpu.pipeline_mode<synchronous>, transform_indices = @transform_4, window_bounds = array<i64: 1, 128>}, {pipeline_mode = #tpu.pipeline_mode<synchronous>, transform_indices = @transform_5, window_bounds = array<i64: 128, 128>}, {pipeline_mode = #tpu.pipeline_mode<synchronous>, transform_indices = @transform_6, window_bounds = array<i64: 1, 128>}, {transform_indices = @transform_7, window_bounds = array<i64: 2, 128>}]} {
    %c0 = arith.constant 0 : index
    %c0_0 = arith.constant 0 : index
    %0 = vector.load %arg1[%c0, %c0_0] : memref<2x400xf32, #tpu.memory_space<vmem>>, vector<2x400xf32>
    %c0_1 = arith.constant 0 : index
    %c0_2 = arith.constant 0 : index
    %1 = vector.load %arg2[%c0_1, %c0_2] : memref<400x128xf32, #tpu.memory_space<vmem>>, vector<400x128xf32>
    %cst = arith.constant dense<0.000000e+00> : vector<2x128xf32>
    %2 = tpu.matmul %0, %1, %cst {dimension_numbers = #tpu.dot_dimension_numbers<[1], [0], [0], [1], [0, 0, 1, 1], [], []>} : vector<2x400xf32>, vector<400x128xf32>, vector<2x128xf32> -> vector<2x128xf32>
    %c0_3 = arith.constant 0 : index
    %c0_4 = arith.constant 0 : index
    %3 = vector.load %arg3[%c0_3, %c0_4] : memref<1x128xf32, #tpu.memory_space<vmem>>, vector<1x128xf32>
    %4 = vector.broadcast %3 : vector<1x128xf32> to vector<2x128xf32>
    %5 = arith.addf %2, %4 : vector<2x128xf32>
    %cst_5 = arith.constant 0.000000e+00 : f32
    %6 = vector.broadcast %cst_5 : f32 to vector<2x128xf32>
    %7 = arith.maximumf %5, %6 : vector<2x128xf32>
    %c0_6 = arith.constant 0 : index
    %c0_7 = arith.constant 0 : index
    %8 = vector.load %arg4[%c0_6, %c0_7] : memref<128x128xf32, #tpu.memory_space<vmem>>, vector<128x128xf32>
    %cst_8 = arith.constant dense<0.000000e+00> : vector<2x128xf32>
    %9 = tpu.matmul %7, %8, %cst_8 {dimension_numbers = #tpu.dot_dimension_numbers<[1], [0], [0], [1], [0, 0, 1, 1], [], []>} : vector<2x128xf32>, vector<128x128xf32>, vector<2x128xf32> -> vector<2x128xf32>
    %c0_9 = arith.constant 0 : index
    %c0_10 = arith.constant 0 : index
    %10 = vector.load %arg5[%c0_9, %c0_10] : memref<1x128xf32, #tpu.memory_space<vmem>>, vector<1x128xf32>
    %11 = vector.broadcast %10 : vector<1x128xf32> to vector<2x128xf32>
    %12 = arith.addf %9, %11 : vector<2x128xf32>
    %cst_11 = arith.constant 0.000000e+00 : f32
    %13 = vector.broadcast %cst_11 : f32 to vector<2x128xf32>
    %14 = arith.maximumf %12, %13 : vector<2x128xf32>
    %c0_12 = arith.constant 0 : index
    %c0_13 = arith.constant 0 : index
    %15 = vector.load %arg6[%c0_12, %c0_13] : memref<128x128xf32, #tpu.memory_space<vmem>>, vector<128x128xf32>
    %cst_14 = arith.constant dense<0.000000e+00> : vector<2x128xf32>
    %16 = tpu.matmul %14, %15, %cst_14 {dimension_numbers = #tpu.dot_dimension_numbers<[1], [0], [0], [1], [0, 0, 1, 1], [], []>} : vector<2x128xf32>, vector<128x128xf32>, vector<2x128xf32> -> vector<2x128xf32>
    %c0_15 = arith.constant 0 : index
    %c0_16 = arith.constant 0 : index
    %17 = vector.load %arg7[%c0_15, %c0_16] : memref<1x128xf32, #tpu.memory_space<vmem>>, vector<1x128xf32>
    %18 = vector.broadcast %17 : vector<1x128xf32> to vector<2x128xf32>
    %19 = arith.addf %16, %18 : vector<2x128xf32>
    %c0_17 = arith.constant 0 : index
    %c0_18 = arith.constant 0 : index
    %20 = vector.load %arg8[%c0_17, %c0_18] : memref<2x128xf32, #tpu.memory_space<vmem>>, vector<2x128xf32>
    tpu.vector_store %arg8[%c0_17, %c0_18], %19 {strides = array<i32>} : memref<2x128xf32, #tpu.memory_space<vmem>>, vector<2x128xf32>,
    return
  }
  func.func @transform_0(%arg0: i32) -> (i32, i32) {
    %c0_i32 = arith.constant 0 : i32
    %c0_i32_0 = arith.constant 0 : i32
    return %arg0, %c0_i32 : i32, i32
  }
  func.func @transform_1(%arg0: i32) -> (i32, i32) {
    %c0_i32 = arith.constant 0 : i32
    %c0_i32_0 = arith.constant 0 : i32
    %c0_i32_1 = arith.constant 0 : i32
    return %c0_i32, %c0_i32_0 : i32, i32
  }
  func.func @transform_2(%arg0: i32) -> (i32, i32) {
    %c0_i32 = arith.constant 0 : i32
    %c0_i32_0 = arith.constant 0 : i32
    %c0_i32_1 = arith.constant 0 : i32
    return %c0_i32, %c0_i32_0 : i32, i32
  }
  func.func @transform_3(%arg0: i32) -> (i32, i32) {
    %c0_i32 = arith.constant 0 : i32
    %c0_i32_0 = arith.constant 0 : i32
    %c0_i32_1 = arith.constant 0 : i32
    return %c0_i32, %c0_i32_0 : i32, i32
  }
  func.func @transform_4(%arg0: i32) -> (i32, i32) {
    %c0_i32 = arith.constant 0 : i32
    %c0_i32_0 = arith.constant 0 : i32
    %c0_i32_1 = arith.constant 0 : i32
    return %c0_i32, %c0_i32_0 : i32, i32
  }
  func.func @transform_5(%arg0: i32) -> (i32, i32) {
    %c0_i32 = arith.constant 0 : i32
    %c0_i32_0 = arith.constant 0 : i32
    %c0_i32_1 = arith.constant 0 : i32
    return %c0_i32, %c0_i32_0 : i32, i32
  }
  func.func @transform_6(%arg0: i32) -> (i32, i32) {
    %c0_i32 = arith.constant 0 : i32
    %c0_i32_0 = arith.constant 0 : i32
    %c0_i32_1 = arith.constant 0 : i32
    return %c0_i32, %c0_i32_0 : i32, i32
  }
  func.func @transform_7(%arg0: i32) -> (i32, i32) {
    %c0_i32 = arith.constant 0 : i32
    %c0_i32_0 = arith.constant 0 : i32
    return %arg0, %c0_i32 : i32, i32
  }
}

module attributes {stable_mosaic.version = 11 : i64} {
  func.func @_conv_pool_kernel(%arg0: i32, %arg1: memref<1x25x150xf32, #tpu.memory_space<vmem>>, %arg2: memref<1x25x150xf32, #tpu.memory_space<vmem>>, %arg3: memref<1x25x150xf32, #tpu.memory_space<vmem>>, %arg4: memref<1x25x150xf32, #tpu.memory_space<vmem>>, %arg5: memref<150x128xf32, #tpu.memory_space<vmem>>, %arg6: memref<1x128xf32, #tpu.memory_space<vmem>>, %arg7: memref<1x25x128xf32, #tpu.memory_space<vmem>>) attributes {dimension_semantics = [#tpu.dimension_semantics<parallel>], iteration_bounds = array<i64: 2>, scalar_prefetch = 0 : i64, scratch_operands = 0 : i64, tpu.core_type = #tpu.core_type<tc>, window_params = [{transform_indices = @transform_0, window_bounds = array<i64: 1, 25, 150>}, {transform_indices = @transform_1, window_bounds = array<i64: 1, 25, 150>}, {transform_indices = @transform_2, window_bounds = array<i64: 1, 25, 150>}, {transform_indices = @transform_3, window_bounds = array<i64: 1, 25, 150>}, {pipeline_mode = #tpu.pipeline_mode<synchronous>, transform_indices = @transform_4, window_bounds = array<i64: 150, 128>}, {pipeline_mode = #tpu.pipeline_mode<synchronous>, transform_indices = @transform_5, window_bounds = array<i64: 1, 128>}, {transform_indices = @transform_6, window_bounds = array<i64: 1, 25, 128>}]} {
    %c0 = arith.constant 0 : index
    %c0_0 = arith.constant 0 : index
    %0 = vector.load %arg5[%c0, %c0_0] : memref<150x128xf32, #tpu.memory_space<vmem>>, vector<150x128xf32>
    %c0_1 = arith.constant 0 : index
    %c0_2 = arith.constant 0 : index
    %c0_3 = arith.constant 0 : index
    %1 = vector.load %arg1[%c0_1, %c0_2, %c0_3] : memref<1x25x150xf32, #tpu.memory_space<vmem>>, vector<1x25x150xf32>
    %2 = vector.shape_cast %1 : vector<1x25x150xf32> to vector<25x150xf32>
    %cst = arith.constant dense<0.000000e+00> : vector<25x128xf32>
    %3 = tpu.matmul %2, %0, %cst {dimension_numbers = #tpu.dot_dimension_numbers<[1], [0], [0], [1], [0, 0, 1, 1], [], []>} : vector<25x150xf32>, vector<150x128xf32>, vector<25x128xf32> -> vector<25x128xf32>
    %c0_4 = arith.constant 0 : index
    %c0_5 = arith.constant 0 : index
    %c0_6 = arith.constant 0 : index
    %4 = vector.load %arg2[%c0_4, %c0_5, %c0_6] : memref<1x25x150xf32, #tpu.memory_space<vmem>>, vector<1x25x150xf32>
    %5 = vector.shape_cast %4 : vector<1x25x150xf32> to vector<25x150xf32>
    %cst_7 = arith.constant dense<0.000000e+00> : vector<25x128xf32>
    %6 = tpu.matmul %5, %0, %cst_7 {dimension_numbers = #tpu.dot_dimension_numbers<[1], [0], [0], [1], [0, 0, 1, 1], [], []>} : vector<25x150xf32>, vector<150x128xf32>, vector<25x128xf32> -> vector<25x128xf32>
    %7 = arith.maximumf %3, %6 : vector<25x128xf32>
    %c0_8 = arith.constant 0 : index
    %c0_9 = arith.constant 0 : index
    %c0_10 = arith.constant 0 : index
    %8 = vector.load %arg3[%c0_8, %c0_9, %c0_10] : memref<1x25x150xf32, #tpu.memory_space<vmem>>, vector<1x25x150xf32>
    %9 = vector.shape_cast %8 : vector<1x25x150xf32> to vector<25x150xf32>
    %cst_11 = arith.constant dense<0.000000e+00> : vector<25x128xf32>
    %10 = tpu.matmul %9, %0, %cst_11 {dimension_numbers = #tpu.dot_dimension_numbers<[1], [0], [0], [1], [0, 0, 1, 1], [], []>} : vector<25x150xf32>, vector<150x128xf32>, vector<25x128xf32> -> vector<25x128xf32>
    %c0_12 = arith.constant 0 : index
    %c0_13 = arith.constant 0 : index
    %c0_14 = arith.constant 0 : index
    %11 = vector.load %arg4[%c0_12, %c0_13, %c0_14] : memref<1x25x150xf32, #tpu.memory_space<vmem>>, vector<1x25x150xf32>
    %12 = vector.shape_cast %11 : vector<1x25x150xf32> to vector<25x150xf32>
    %cst_15 = arith.constant dense<0.000000e+00> : vector<25x128xf32>
    %13 = tpu.matmul %12, %0, %cst_15 {dimension_numbers = #tpu.dot_dimension_numbers<[1], [0], [0], [1], [0, 0, 1, 1], [], []>} : vector<25x150xf32>, vector<150x128xf32>, vector<25x128xf32> -> vector<25x128xf32>
    %14 = arith.maximumf %10, %13 : vector<25x128xf32>
    %15 = arith.maximumf %7, %14 : vector<25x128xf32>
    %c0_16 = arith.constant 0 : index
    %c0_17 = arith.constant 0 : index
    %16 = vector.load %arg6[%c0_16, %c0_17] : memref<1x128xf32, #tpu.memory_space<vmem>>, vector<1x128xf32>
    %17 = vector.broadcast %16 : vector<1x128xf32> to vector<25x128xf32>
    %18 = arith.addf %15, %17 : vector<25x128xf32>
    %cst_18 = arith.constant 0.000000e+00 : f32
    %19 = vector.broadcast %cst_18 : f32 to vector<25x128xf32>
    %20 = arith.maximumf %18, %19 : vector<25x128xf32>
    %c0_19 = arith.constant 0 : index
    %c0_20 = arith.constant 0 : index
    %c0_21 = arith.constant 0 : index
    %21 = vector.load %arg7[%c0_19, %c0_20, %c0_21] : memref<1x25x128xf32, #tpu.memory_space<vmem>>, vector<1x25x128xf32>
    %22 = vector.shape_cast %21 : vector<1x25x128xf32> to vector<25x128xf32>
    %23 = vector.shape_cast %20 : vector<25x128xf32> to vector<1x25x128xf32>
    tpu.vector_store %arg7[%c0_19, %c0_20, %c0_21], %23 {strides = array<i32>} : memref<1x25x128xf32, #tpu.memory_space<vmem>>, vector<1x25x128xf32>,
    return
  }
  func.func @transform_0(%arg0: i32) -> (i32, i32, i32) {
    %c0_i32 = arith.constant 0 : i32
    %c0_i32_0 = arith.constant 0 : i32
    %c0_i32_1 = arith.constant 0 : i32
    return %arg0, %c0_i32, %c0_i32_0 : i32, i32, i32
  }
  func.func @transform_1(%arg0: i32) -> (i32, i32, i32) {
    %c0_i32 = arith.constant 0 : i32
    %c0_i32_0 = arith.constant 0 : i32
    %c0_i32_1 = arith.constant 0 : i32
    return %arg0, %c0_i32, %c0_i32_0 : i32, i32, i32
  }
  func.func @transform_2(%arg0: i32) -> (i32, i32, i32) {
    %c0_i32 = arith.constant 0 : i32
    %c0_i32_0 = arith.constant 0 : i32
    %c0_i32_1 = arith.constant 0 : i32
    return %arg0, %c0_i32, %c0_i32_0 : i32, i32, i32
  }
  func.func @transform_3(%arg0: i32) -> (i32, i32, i32) {
    %c0_i32 = arith.constant 0 : i32
    %c0_i32_0 = arith.constant 0 : i32
    %c0_i32_1 = arith.constant 0 : i32
    return %arg0, %c0_i32, %c0_i32_0 : i32, i32, i32
  }
  func.func @transform_4(%arg0: i32) -> (i32, i32) {
    %c0_i32 = arith.constant 0 : i32
    %c0_i32_0 = arith.constant 0 : i32
    %c0_i32_1 = arith.constant 0 : i32
    return %c0_i32, %c0_i32_0 : i32, i32
  }
  func.func @transform_5(%arg0: i32) -> (i32, i32) {
    %c0_i32 = arith.constant 0 : i32
    %c0_i32_0 = arith.constant 0 : i32
    %c0_i32_1 = arith.constant 0 : i32
    return %c0_i32, %c0_i32_0 : i32, i32
  }
  func.func @transform_6(%arg0: i32) -> (i32, i32, i32) {
    %c0_i32 = arith.constant 0 : i32
    %c0_i32_0 = arith.constant 0 : i32
    %c0_i32_1 = arith.constant 0 : i32
    return %arg0, %c0_i32, %c0_i32_0 : i32, i32, i32
  }
}

</mosaic_0001>

<llo_original>
// kernel: net_forward.3
$region0: #{net_forward.3}
  #allocation0 [shape = 'u32[]', space=smem, size = 0x4, offset = 0x4, fixed_abs, tag = 'smem constant byte address 0x4 - core index']
  #allocation1 [shape = 'u32[144,128]{1,0:T(1,128)}', space=vmem, size = 0x12000, scoped, tag = 'internal scratch']
  %s0 = inlined_call_operand.vmem [shape: f32[2,196,75], index: 0, kind: input, shape index: {}]
  %s1 = inlined_call_operand.vmem [shape: f32[2,196,75], index: 1, kind: input, shape index: {}]
  %s2 = inlined_call_operand.vmem [shape: f32[2,196,75], index: 2, kind: input, shape index: {}]
  %s3 = inlined_call_operand.vmem [shape: f32[2,196,75], index: 3, kind: input, shape index: {}]
  %s4 = inlined_call_operand.vmem [shape: f32[75,128], index: 4, kind: input, shape index: {}]
  %s5 = inlined_call_operand.vmem [shape: f32[1,128], index: 5, kind: input, shape index: {}]
  %s6 = inlined_call_operand.vmem [shape: f32[2,196,128], index: 6, kind: output, shape index: {}]
  %s7 = sld [smem:[#allocation0]]
  $region57: #{net_forward.3} parent=0
    _
  %s9 = ssub.s32 1, %s7
  %s10 = scalar_select 0, %s9, %s7
  loop: start=0, step=1, limit=4
  $region2: #{net_forward.3} parent=0 // loop_pre_header
    _
  $region3: #{net_forward.3} parent=0 // loop_header
    %s12 = sphi 0, %s16
    %p13 = scmp.ge.s32.totalorder %s12, 4
    %s22 = sphi 0, %s24
    %s25 = sphi 0, %s22
    %s26 = sphi 0, %s25
    %s42 = sphi 0, %s26
    %s48 = sphi 0, %s50
    %s51 = sphi 0, %s48
    %s52 = sphi 0, %s51
    %s68 = sphi 0, %s52
    %s74 = sphi 0, %s76
    %s77 = sphi 0, %s74
    %s78 = sphi 0, %s77
    %s94 = sphi 0, %s78
    %s100 = sphi 0, %s102
    %s103 = sphi 0, %s100
    %s104 = sphi 0, %s103
    %s120 = sphi 0, %s104
    %s124 = sphi 0, %s124
    %s126 = sphi 0, %s124
    %s127 = sphi 0, %s126
    %s141 = sphi 0, %s127
    %s145 = sphi 0, %s145
    %s147 = sphi 0, %s145
    %s148 = sphi 0, %s147
    %s162 = sphi 0, %s148
    %s168 = sphi 0, %s170
    %s171 = sphi 0, %s168
    %s172 = sphi 0, %s171
    %s188 = sphi 0, %s172
  $region4: #{net_forward.3} parent=0 // loop_header_branch
    %15 = sbr.rel (%p13) target = $region8
  $region5: #{net_forward.3} parent=0 // loop_body
    %s17 = ssub.s32 %s12, 1
    %s18 = ssub.s32 %s12, 2
    %s19 = sadd.s32 %s12, 1
    %s20 = ssub.s32 %s12, %s19
    %p21 = scmp.eq.s32.totalorder %s20, 0
    %s23 = sadd.s32 %s22, 1
    %s24 = scalar_select %p21, %s22, %s23
    %p27 = pneg %p21
    %p28 = scmp.eq.s32.totalorder %s12, 1
    %p29 = por %p27, %p28
    %p30 = scmp.ne.s32.totalorder %s22, %s25
    %p31 = scmp.eq.s32.totalorder %s12, 0
    %p32 = por %p30, %p31
    %p33 = scmp.ne.s32.totalorder %s22, %s25
    %p34 = scmp.eq.s32.totalorder %s17, 1
    %p35 = por %p33, %p34
    %p36 = scmp.ne.s32.totalorder %s25, %s26
    %p37 = scmp.eq.s32.totalorder %s17, 0
    %p38 = por %p36, %p37
    %p39 = scmp.ne.s32.totalorder %s25, %s26
    %p40 = scmp.eq.s32.totalorder %s18, 1
    %p41 = por %p39, %p40
    %p43 = scmp.ne.s32.totalorder %s26, %s42
    %p44 = scmp.eq.s32.totalorder %s18, 0
    %p45 = por %p43, %p44
    %s46 = ssub.s32 %s12, %s19
    %p47 = scmp.eq.s32.totalorder %s46, 0
    %s49 = sadd.s32 %s48, 1
    %s50 = scalar_select %p47, %s48, %s49
    %p53 = pneg %p47
    %p54 = scmp.eq.s32.totalorder %s12, 1
    %p55 = por %p53, %p54
    %p56 = scmp.ne.s32.totalorder %s48, %s51
    %p57 = scmp.eq.s32.totalorder %s12, 0
    %p58 = por %p56, %p57
    %p59 = scmp.ne.s32.totalorder %s48, %s51
    %p60 = scmp.eq.s32.totalorder %s17, 1
    %p61 = por %p59, %p60
    %p62 = scmp.ne.s32.totalorder %s51, %s52
    %p63 = scmp.eq.s32.totalorder %s17, 0
    %p64 = por %p62, %p63
    %p65 = scmp.ne.s32.totalorder %s51, %s52
    %p66 = scmp.eq.s32.totalorder %s18, 1
    %p67 = por %p65, %p66
    %p69 = scmp.ne.s32.totalorder %s52, %s68
    %p70 = scmp.eq.s32.totalorder %s18, 0
    %p71 = por %p69, %p70
    %s72 = ssub.s32 %s12, %s19
    %p73 = scmp.eq.s32.totalorder %s72, 0
    %s75 = sadd.s32 %s74, 1
    %s76 = scalar_select %p73, %s74, %s75
    %p79 = pneg %p73
    %p80 = scmp.eq.s32.totalorder %s12, 1
    %p81 = por %p79, %p80
    %p82 = scmp.ne.s32.totalorder %s74, %s77
    %p83 = scmp.eq.s32.totalorder %s12, 0
    %p84 = por %p82, %p83
    %p85 = scmp.ne.s32.totalorder %s74, %s77
    %p86 = scmp.eq.s32.totalorder %s17, 1
    %p87 = por %p85, %p86
    %p88 = scmp.ne.s32.totalorder %s77, %s78
    %p89 = scmp.eq.s32.totalorder %s17, 0
    %p90 = por %p88, %p89
    %p91 = scmp.ne.s32.totalorder %s77, %s78
    %p92 = scmp.eq.s32.totalorder %s18, 1
    %p93 = por %p91, %p92
    %p95 = scmp.ne.s32.totalorder %s78, %s94
    %p96 = scmp.eq.s32.totalorder %s18, 0
    %p97 = por %p95, %p96
    %s98 = ssub.s32 %s12, %s19
    %p99 = scmp.eq.s32.totalorder %s98, 0
    %s101 = sadd.s32 %s100, 1
    %s102 = scalar_select %p99, %s100, %s101
    %p105 = pneg %p99
    %p106 = scmp.eq.s32.totalorder %s12, 1
    %p107 = por %p105, %p106
    %p108 = scmp.ne.s32.totalorder %s100, %s103
    %p109 = scmp.eq.s32.totalorder %s12, 0
    %p110 = por %p108, %p109
    %p111 = scmp.ne.s32.totalorder %s100, %s103
    %p112 = scmp.eq.s32.totalorder %s17, 1
    %p113 = por %p111, %p112
    %p114 = scmp.ne.s32.totalorder %s103, %s104
    %p115 = scmp.eq.s32.totalorder %s17, 0
    %p116 = por %p114, %p115
    %p117 = scmp.ne.s32.totalorder %s103, %s104
    %p118 = scmp.eq.s32.totalorder %s18, 1
    %p119 = por %p117, %p118
    %p121 = scmp.ne.s32.totalorder %s104, %s120
    %p122 = scmp.eq.s32.totalorder %s18, 0
    %p123 = por %p121, %p122
    %s125 = sadd.s32 %s124, 1
    %p128 = scmp.eq.s32.totalorder %s12, 1
    %p129 = scmp.ne.s32.totalorder %s124, %s126
    %p130 = scmp.eq.s32.totalorder %s12, 0
    %p131 = por %p129, %p130
    %p132 = scmp.ne.s32.totalorder %s124, %s126
    %p133 = scmp.eq.s32.totalorder %s17, 1
    %p134 = por %p132, %p133
    %p135 = scmp.ne.s32.totalorder %s126, %s127
    %p136 = scmp.eq.s32.totalorder %s17, 0
    %p137 = por %p135, %p136
    %p138 = scmp.ne.s32.totalorder %s126, %s127
    %p139 = scmp.eq.s32.totalorder %s18, 1
    %p140 = por %p138, %p139
    %p142 = scmp.ne.s32.totalorder %s127, %s141
    %p143 = scmp.eq.s32.totalorder %s18, 0
    %p144 = por %p142, %p143
    %s146 = sadd.s32 %s145, 1
    %p149 = scmp.eq.s32.totalorder %s12, 1
    %p150 = scmp.ne.s32.totalorder %s145, %s147
    %p151 = scmp.eq.s32.totalorder %s12, 0
    %p152 = por %p150, %p151
    %p153 = scmp.ne.s32.totalorder %s145, %s147
    %p154 = scmp.eq.s32.totalorder %s17, 1
    %p155 = por %p153, %p154
    %p156 = scmp.ne.s32.totalorder %s147, %s148
    %p157 = scmp.eq.s32.totalorder %s17, 0
    %p158 = por %p156, %p157
    %p159 = scmp.ne.s32.totalorder %s147, %s148
    %p160 = scmp.eq.s32.totalorder %s18, 1
    %p161 = por %p159, %p160
    %p163 = scmp.ne.s32.totalorder %s148, %s162
    %p164 = scmp.eq.s32.totalorder %s18, 0
    %p165 = por %p163, %p164
    %s166 = ssub.s32 %s12, %s19
    %p167 = scmp.eq.s32.totalorder %s166, 0
    %s169 = sadd.s32 %s168, 1
    %s170 = scalar_select %p167, %s168, %s169
    %p173 = pneg %p167
    %p174 = scmp.eq.s32.totalorder %s12, 1
    %p175 = por %p173, %p174
    %p176 = scmp.ne.s32.totalorder %s168, %s171
    %p177 = scmp.eq.s32.totalorder %s12, 0
    %p178 = por %p176, %p177
    %p179 = scmp.ne.s32.totalorder %s168, %s171
    %p180 = scmp.eq.s32.totalorder %s17, 1
    %p181 = por %p179, %p180
    %p182 = scmp.ne.s32.totalorder %s171, %s172
    %p183 = scmp.eq.s32.totalorder %s17, 0
    %p184 = por %p182, %p183
    %p185 = scmp.ne.s32.totalorder %s171, %s172
    %p186 = scmp.eq.s32.totalorder %s18, 1
    %p187 = por %p185, %p186
    %p189 = scmp.ne.s32.totalorder %s172, %s188
    %p190 = scmp.eq.s32.totalorder %s18, 0
    %p191 = por %p189, %p190
    %p192 = scmp.le.s32.totalorder 1, %s12
    %p193 = scmp.lt.s32.totalorder %s12, 3
    %p194 = pnand %p192, %p193
    %p195 = pneg %p194
    // Predicated region
    $region9: #{net_forward.3} parent=5 // pred_check
      _
    $region10: #{net_forward.3} parent=5 // pred_check_branch
      %197 = sbr.rel (%p194) target = $region12
    $region11: #{net_forward.3} parent=5 // pred_region
      %s198 = ssub.s32 %s12, 1
      // Predicated region
      $region13: #{net_forward.3} parent=11 // pred_check
        %p199 = pneg %p137
      $region14: #{net_forward.3} parent=11 // pred_check_branch
        %201 = sbr.rel (%p199) target = $region16
      $region15: #{net_forward.3} parent=11 // pred_region
        _
      $region16: #{net_forward.3} parent=11 // pred_fallthru
        _
      // Predicated region
      $region17: #{net_forward.3} parent=11 // pred_check
        %p202 = pneg %p158
      $region18: #{net_forward.3} parent=11 // pred_check_branch
        %204 = sbr.rel (%p202) target = $region20
      $region19: #{net_forward.3} parent=11 // pred_region
        _
      $region20: #{net_forward.3} parent=11 // pred_fallthru
        _
    $region12: #{net_forward.3} parent=5 // pred_fallthru
      _
    %p205 = scmp.lt.s32.totalorder %s12, 2
    // Predicated region
    $region21: #{net_forward.3} parent=5 // pred_check
      %p206 = pneg %p205
    $region22: #{net_forward.3} parent=5 // pred_check_branch
      %208 = sbr.rel (%p206) target = $region24
    $region23: #{net_forward.3} parent=5 // pred_region
      // Predicated region
      $region25: #{net_forward.3} parent=23 // pred_check
        %p209 = pneg %p32
      $region26: #{net_forward.3} parent=23 // pred_check_branch
        %211 = sbr.rel (%p209) target = $region28
      $region27: #{net_forward.3} parent=23 // pred_region
        %p212 = scmp.lt.s32.totalorder %s12, 1
        %s213 = scalar_select %p212, %s12, 1
        %s214 = smul.addr %s213, 25
        %s215 = smul.addr %s214, 8
        %s216 = scalar_lea.vmem %s0, %s215
      $region28: #{net_forward.3} parent=23 // pred_fallthru
        _
      // Predicated region
      $region29: #{net_forward.3} parent=23 // pred_check
        %p217 = pneg %p58
      $region30: #{net_forward.3} parent=23 // pred_check_branch
        %219 = sbr.rel (%p217) target = $region32
      $region31: #{net_forward.3} parent=23 // pred_region
        %p220 = scmp.lt.s32.totalorder %s12, 1
        %s221 = scalar_select %p220, %s12, 1
        %s222 = smul.addr %s221, 25
        %s223 = smul.addr %s222, 8
        %s224 = scalar_lea.vmem %s1, %s223
      $region32: #{net_forward.3} parent=23 // pred_fallthru
        _
      // Predicated region
      $region33: #{net_forward.3} parent=23 // pred_check
        %p225 = pneg %p84
      $region34: #{net_forward.3} parent=23 // pred_check_branch
        %227 = sbr.rel (%p225) target = $region36
      $region35: #{net_forward.3} parent=23 // pred_region
        %p228 = scmp.lt.s32.totalorder %s12, 1
        %s229 = scalar_select %p228, %s12, 1
        %s230 = smul.addr %s229, 25
        %s231 = smul.addr %s230, 8
        %s232 = scalar_lea.vmem %s2, %s231
      $region36: #{net_forward.3} parent=23 // pred_fallthru
        _
      // Predicated region
      $region37: #{net_forward.3} parent=23 // pred_check
        %p233 = pneg %p110
      $region38: #{net_forward.3} parent=23 // pred_check_branch
        %235 = sbr.rel (%p233) target = $region40
      $region39: #{net_forward.3} parent=23 // pred_region
        %p236 = scmp.lt.s32.totalorder %s12, 1
        %s237 = scalar_select %p236, %s12, 1
        %s238 = smul.addr %s237, 25
        %s239 = smul.addr %s238, 8
        %s240 = scalar_lea.vmem %s3, %s239
      $region40: #{net_forward.3} parent=23 // pred_fallthru
        _
    $region24: #{net_forward.3} parent=5 // pred_fallthru
      _
    %p241 = scmp.le.s32.totalorder 1, %s12
    %p242 = scmp.lt.s32.totalorder %s12, 3
    %p243 = pnand %p241, %p242
    %p244 = pneg %p243
    // Predicated region
    $region41: #{net_forward.3} parent=5 // pred_check
      _
    $region42: #{net_forward.3} parent=5 // pred_check_branch
      %246 = sbr.rel (%p243) target = $region44
    $region43: #{net_forward.3} parent=5 // pred_region
      %s247 = ssub.s32 %s12, 1
      %p248 = scmp.lt.s32.totalorder %s17, 1
      %s249 = scalar_select %p248, %s17, 1
      %s250 = smul.addr %s249, 25
      %s251 = smul.addr %s250, 8
      %s252 = scalar_lea.vmem %s0, %s251
      %p253 = pneg %p38
      %p254 = pneg %p35
      %p255 = scmp.lt.s32.totalorder %s17, 1
      %s256 = scalar_select %p255, %s17, 1
      %s257 = smul.addr %s256, 25
      %s258 = smul.addr %s257, 8
      %s259 = scalar_lea.vmem %s1, %s258
      %p260 = pneg %p64
      %p261 = pneg %p61
      %p262 = scmp.lt.s32.totalorder %s17, 1
      %s263 = scalar_select %p262, %s17, 1
      %s264 = smul.addr %s263, 25
      %s265 = smul.addr %s264, 8
      %s266 = scalar_lea.vmem %s2, %s265
      %p267 = pneg %p90
      %p268 = pneg %p87
      %p269 = scmp.lt.s32.totalorder %s17, 1
      %s270 = scalar_select %p269, %s17, 1
      %s271 = smul.addr %s270, 25
      %s272 = smul.addr %s271, 8
      %s273 = scalar_lea.vmem %s3, %s272
      %p274 = pneg %p116
      %p275 = pneg %p113
      %p276 = pneg %p137
      %p277 = pneg %p134
      %p278 = pneg %p158
      %p279 = pneg %p155
      %p280 = pneg %p184
      %p281 = pneg %p181
      %p282 = scmp.lt.s32.totalorder %s17, 1
      %s283 = scalar_select %p282, %s17, 1
      %s284 = smul.addr %s283, 25
      %s285 = smul.addr %s284, 8
      %s286 = scalar_lea.vmem %s6, %s285
      %p287 = scmp.lt.s32.totalorder %s17, 1
      %s288 = scalar_select %p287, %s17, 1
      %s289 = smul.addr %s288, 25
      %s290 = smul.addr %s289, 8
      %s291 = scalar_lea.vmem %s0, %s290
      %p292 = scmp.lt.s32.totalorder %s17, 1
      %s293 = scalar_select %p292, %s17, 1
      %s294 = smul.addr %s293, 25
      %s295 = smul.addr %s294, 8
      %s296 = scalar_lea.vmem %s1, %s295
      %p297 = scmp.lt.s32.totalorder %s17, 1
      %s298 = scalar_select %p297, %s17, 1
      %s299 = smul.addr %s298, 25
      %s300 = smul.addr %s299, 8
      %s301 = scalar_lea.vmem %s2, %s300
      %p302 = scmp.lt.s32.totalorder %s17, 1
      %s303 = scalar_select %p302, %s17, 1
      %s304 = smul.addr %s303, 25
      %s305 = smul.addr %s304, 8
      %s306 = scalar_lea.vmem %s3, %s305
      %p307 = scmp.lt.s32.totalorder %s17, 1
      %s308 = scalar_select %p307, %s17, 1
      %s309 = smul.addr %s308, 25
      %s310 = smul.addr %s309, 8
      %s311 = scalar_lea.vmem %s6, %s310
      %v312 = vld [vmem:[%s4] sm:$0xff]
      %v313 = vld [vmem:[%s4 + $0x8] sm:$0xff]
      %v314 = vld [vmem:[%s4 + $0x10] sm:$0xff]
      %v315 = vld [vmem:[%s4 + $0x18] sm:$0xff]
      %v316 = vld [vmem:[%s4 + $0x20] sm:$0xff]
      %v317 = vld [vmem:[%s4 + $0x28] sm:$0xff]
      %v318 = vld [vmem:[%s4 + $0x30] sm:$0xff]
      %v319 = vld [vmem:[%s4 + $0x38] sm:$0xff]
      %v320 = vld [vmem:[%s4 + $0x40] sm:$0xff]
      %v321 = vld [vmem:[%s4 + $0x48] sm:$0x7]
      %v322 = vld [vmem:[%s291] sm:$0xff]
      %v323 = vld [vmem:[%s291 + $0x8] sm:$0xff]
      %v324 = vld [vmem:[%s291 + $0x10] sm:$0xff]
      %v325 = vld [vmem:[%s291 + $0x18] sm:$0xff]
      %v326 = vld [vmem:[%s291 + $0x20] sm:$0xff]
      %v327 = vld [vmem:[%s291 + $0x28] sm:$0xff]
      %v328 = vld [vmem:[%s291 + $0x30] sm:$0xff]
      %v329 = vld [vmem:[%s291 + $0x38] sm:$0xff]
      %v330 = vld [vmem:[%s291 + $0x40] sm:$0xff]
      %v331 = vld [vmem:[%s291 + $0x48] sm:$0xff]
      %v332 = vld [vmem:[%s291 + $0x50] sm:$0xff]
      %v333 = vld [vmem:[%s291 + $0x58] sm:$0xff]
      %v334 = vld [vmem:[%s291 + $0x60] sm:$0xff]
      %v335 = vld [vmem:[%s291 + $0x68] sm:$0xff]
      %v336 = vld [vmem:[%s291 + $0x70] sm:$0xff]
      %v337 = vld [vmem:[%s291 + $0x78] sm:$0xff]
      %v338 = vld [vmem:[%s291 + $0x80] sm:$0xff]
      %v339 = vld [vmem:[%s291 + $0x88] sm:$0xff]
      %v340 = vld [vmem:[%s291 + $0x90] sm:$0xff]
      %v341 = vld [vmem:[%s291 + $0x98] sm:$0xff]
      %v342 = vld [vmem:[%s291 + $0xa0] sm:$0xff]
      %v343 = vld [vmem:[%s291 + $0xa8] sm:$0xff]
      %v344 = vld [vmem:[%s291 + $0xb0] sm:$0xff]
      %v345 = vld [vmem:[%s291 + $0xb8] sm:$0xff]
      %v346 = vld [vmem:[%s291 + $0xc0] sm:$0xf]
      %vm347 = vcmask 613376
      %v349 = vsel %vm347, %v322, 0
      %v352 = vsel %vm347, %v323, 0
      %v355 = vsel %vm347, %v324, 0
      %v358 = vsel %vm347, %v325, 0
      %v361 = vsel %vm347, %v326, 0
      %v364 = vsel %vm347, %v327, 0
      %v367 = vsel %vm347, %v328, 0
      %v370 = vsel %vm347, %v329, 0
      %v373 = vsel %vm347, %v330, 0
      %v376 = vsel %vm347, %v331, 0
      %v379 = vsel %vm347, %v332, 0
      %v382 = vsel %vm347, %v333, 0
      %v385 = vsel %vm347, %v334, 0
      %v388 = vsel %vm347, %v335, 0
      %v391 = vsel %vm347, %v336, 0
      %v394 = vsel %vm347, %v337, 0
      %v397 = vsel %vm347, %v338, 0
      %v400 = vsel %vm347, %v339, 0
      %v403 = vsel %vm347, %v340, 0
      %v406 = vsel %vm347, %v341, 0
      %v409 = vsel %vm347, %v342, 0
      %v412 = vsel %vm347, %v343, 0
      %v415 = vsel %vm347, %v344, 0
      %v418 = vsel %vm347, %v345, 0
      %v421 = vsel %vm347, %v346, 0
      %vm423 = vcmask 1042432
      %v425 = vsel %vm423, %v321, 0
      %427 = vmatprep.subr.mxu0 0.0
      %428 = vmatpush1.msra.mxu0 %v312
      %429 = vmatprep.subr.mxu0 0.0
      %430 = vmatpush1.msra.mxu0 %v313
      %431 = vmatprep.subr.mxu0 0.0
      %432 = vmatpush1.msra.mxu0 %v314
      %433 = vmatprep.subr.mxu0 0.0
      %434 = vmatpush1.msra.mxu0 %v315
      %435 = vmatprep.subr.mxu0 0.0
      %436 = vmatpush1.msra.mxu0 %v316
      %437 = vmatprep.subr.mxu0 0.0
      %438 = vmatpush1.msra.mxu0 %v317
      %439 = vmatprep.subr.mxu0 0.0
      %440 = vmatpush1.msra.mxu0 %v318
      %441 = vmatprep.subr.mxu0 0.0
      %442 = vmatpush1.msra.mxu0 %v319
      %443 = vmatprep.subr.mxu0 0.0
      %444 = vmatpush1.msra.mxu0 %v320
      %445 = vmatprep.subr.mxu0 0.0
      %446 = vmatpush1.msra.mxu0 %v425
      %447 = vmatprep.subr.mxu0 0.0
      %448 = vmatpush1.msra.mxu0 0.0
      %449 = vmatprep.subr.mxu0 0.0
      %450 = vmatpush1.msra.mxu0 0.0
      %451 = vmatprep.subr.mxu0 0.0
      %452 = vmatpush1.msra.mxu0 0.0
      %453 = vmatprep.subr.mxu0 0.0
      %454 = vmatpush1.msra.mxu0 0.0
      %455 = vmatprep.subr.mxu0 0.0
      %456 = vmatpush1.msra.mxu0 0.0
      %457 = vmatprep.subr.mxu0 0.0
      %458 = vmatpush1.msra.mxu0 0.0
      %459 = vmatprep.subr.mxu0 0.0
      %460 = vmatpush1.msra.mxu0 0.0
      %461 = vmatprep.subr.mxu0 0.0
      %462 = vmatpush1.msra.mxu0 0.0
      %463 = vmatprep.subr.mxu0 0.0
      %464 = vmatpush1.msra.mxu0 0.0
      %465 = vmatprep.subr.mxu0 0.0
      %466 = vmatpush1.msra.mxu0 0.0
      %467 = vmatprep.subr.mxu0 0.0
      %468 = vmatpush1.msra.mxu0 0.0
      %469 = vmatprep.subr.mxu0 0.0
      %470 = vmatpush1.msra.mxu0 0.0
      %471 = vmatprep.subr.mxu0 0.0
      %472 = vmatpush1.msra.mxu0 0.0
      %473 = vmatprep.subr.mxu0 0.0
      %474 = vmatpush1.msra.mxu0 0.0
      %475 = vmatprep.subr.mxu0 0.0
      %476 = vmatpush1.msra.mxu0 0.0
      %477 = vmatprep.subr.mxu0 0.0
      %478 = vmatpush1.msra.mxu0 0.0
      %479 = vmatprep.subr.mxu0 0.0
      %480 = vmatpush1.msra.mxu0 0.0
      %481 = vmatprep.subr.mxu0 0.0
      %482 = vmatpush1.msra.mxu0 0.0
      %483 = vmatprep.subr.mxu0 0.0
      %484 = vmatpush1.msra.mxu0 0.0
      %485 = vmatprep.subr.mxu0 0.0
      %486 = vmatpush1.msra.mxu0 0.0
      %487 = vmatprep.subr.mxu0 0.0
      %488 = vmatpush1.msra.mxu0 0.0
      %489 = vmatprep.subr.mxu0 0.0
      %490 = vmatpush1.msra.mxu0 0.0
      %491 = vmatprep.mubr.f32.mxu0 0.0
      %492 = vmatmul.mubr.f32.gmra.mrb[0].mxu0 %v349
      %v493 = vpop.f32.mrb[0].mxu0
      %v494 = vadd.f32 0.0, %v493
      %v495 = vpop.f32.mrb[0].mxu0
      %496 = vmatprep.mubr.f32.mxu0 0.0
      %497 = vmatmul.mubr.f32.gmra.mrb[0].mxu0 %v352
      %v498 = vpop.f32.mrb[0].mxu0
      %v499 = vadd.f32 0.0, %v498
      %v500 = vpop.f32.mrb[0].mxu0
      %501 = vmatprep.mubr.f32.mxu0 0.0
      %502 = vmatmul.mubr.f32.gmra.mrb[0].mxu0 %v355
      %v503 = vpop.f32.mrb[0].mxu0
      %v504 = vadd.f32 0.0, %v503
      %v505 = vpop.f32.mrb[0].mxu0
      %506 = vmatprep.mubr.f32.mxu0 0.0
      %507 = vmatmul.mubr.f32.gmra.mrb[0].mxu0 %v358
      %v508 = vpop.f32.mrb[0].mxu0
      %v509 = vadd.f32 0.0, %v508
      %v510 = vpop.f32.mrb[0].mxu0
      %511 = vmatprep.mubr.f32.mxu0 0.0
      %512 = vmatmul.mubr.f32.gmra.mrb[0].mxu0 %v361
      %v513 = vpop.f32.mrb[0].mxu0
      %v514 = vadd.f32 0.0, %v513
      %v515 = vpop.f32.mrb[0].mxu0
      %516 = vmatprep.mubr.f32.mxu0 0.0
      %517 = vmatmul.mubr.f32.gmra.mrb[0].mxu0 %v364
      %v518 = vpop.f32.mrb[0].mxu0
      %v519 = vadd.f32 0.0, %v518
      %v520 = vpop.f32.mrb[0].mxu0
      %521 = vmatprep.mubr.f32.mxu0 0.0
      %522 = vmatmul.mubr.f32.gmra.mrb[0].mxu0 %v367
      %v523 = vpop.f32.mrb[0].mxu0
      %v524 = vadd.f32 0.0, %v523
      %v525 = vpop.f32.mrb[0].mxu0
      %526 = vmatprep.mubr.f32.mxu0 0.0
      %527 = vmatmul.mubr.f32.gmra.mrb[0].mxu0 %v370
      %v528 = vpop.f32.mrb[0].mxu0
      %v529 = vadd.f32 0.0, %v528
      %v530 = vpop.f32.mrb[0].mxu0
      %531 = vmatprep.mubr.f32.mxu0 0.0
      %532 = vmatmul.mubr.f32.gmra.mrb[0].mxu0 %v373
      %v533 = vpop.f32.mrb[0].mxu0
      %v534 = vadd.f32 0.0, %v533
      %v535 = vpop.f32.mrb[0].mxu0
      %536 = vmatprep.mubr.f32.mxu0 0.0
      %537 = vmatmul.mubr.f32.gmra.mrb[0].mxu0 %v376
      %v538 = vpop.f32.mrb[0].mxu0
      %v539 = vadd.f32 0.0, %v538
      %v540 = vpop.f32.mrb[0].mxu0
      %541 = vmatprep.mubr.f32.mxu0 0.0
      %542 = vmatmul.mubr.f32.gmra.mrb[0].mxu0 %v379
      %v543 = vpop.f32.mrb[0].mxu0
      %v544 = vadd.f32 0.0, %v543
      %v545 = vpop.f32.mrb[0].mxu0
      %546 = vmatprep.mubr.f32.mxu0 0.0
      %547 = vmatmul.mubr.f32.gmra.mrb[0].mxu0 %v382
      %v548 = vpop.f32.mrb[0].mxu0
      %v549 = vadd.f32 0.0, %v548
      %v550 = vpop.f32.mrb[0].mxu0
      %551 = vmatprep.mubr.f32.mxu0 0.0
      %552 = vmatmul.mubr.f32.gmra.mrb[0].mxu0 %v385
      %v553 = vpop.f32.mrb[0].mxu0
      %v554 = vadd.f32 0.0, %v553
      %v555 = vpop.f32.mrb[0].mxu0
      %556 = vmatprep.mubr.f32.mxu0 0.0
      %557 = vmatmul.mubr.f32.gmra.mrb[0].mxu0 %v388
      %v558 = vpop.f32.mrb[0].mxu0
      %v559 = vadd.f32 0.0, %v558
      %v560 = vpop.f32.mrb[0].mxu0
      %561 = vmatprep.mubr.f32.mxu0 0.0
      %562 = vmatmul.mubr.f32.gmra.mrb[0].mxu0 %v391
      %v563 = vpop.f32.mrb[0].mxu0
      %v564 = vadd.f32 0.0, %v563
      %v565 = vpop.f32.mrb[0].mxu0
      %566 = vmatprep.mubr.f32.mxu0 0.0
      %567 = vmatmul.mubr.f32.gmra.mrb[0].mxu0 %v394
      %v568 = vpop.f32.mrb[0].mxu0
      %v569 = vadd.f32 0.0, %v568
      %v570 = vpop.f32.mrb[0].mxu0
      %571 = vmatprep.mubr.f32.mxu0 0.0
      %572 = vmatmul.mubr.f32.gmra.mrb[0].mxu0 %v397
      %v573 = vpop.f32.mrb[0].mxu0
      %v574 = vadd.f32 0.0, %v573
      %v575 = vpop.f32.mrb[0].mxu0
      %576 = vmatprep.mubr.f32.mxu0 0.0
      %577 = vmatmul.mubr.f32.gmra.mrb[0].mxu0 %v400
      %v578 = vpop.f32.mrb[0].mxu0
      %v579 = vadd.f32 0.0, %v578
      %v580 = vpop.f32.mrb[0].mxu0
      %581 = vmatprep.mubr.f32.mxu0 0.0
      %582 = vmatmul.mubr.f32.gmra.mrb[0].mxu0 %v403
      %v583 = vpop.f32.mrb[0].mxu0
      %v584 = vadd.f32 0.0, %v583
      %v585 = vpop.f32.mrb[0].mxu0
      %586 = vmatprep.mubr.f32.mxu0 0.0
      %587 = vmatmul.mubr.f32.gmra.mrb[0].mxu0 %v406
      %v588 = vpop.f32.mrb[0].mxu0
      %v589 = vadd.f32 0.0, %v588
      %v590 = vpop.f32.mrb[0].mxu0
      %591 = vmatprep.mubr.f32.mxu0 0.0
      %592 = vmatmul.mubr.f32.gmra.mrb[0].mxu0 %v409
      %v593 = vpop.f32.mrb[0].mxu0
      %v594 = vadd.f32 0.0, %v593
      %v595 = vpop.f32.mrb[0].mxu0
      %596 = vmatprep.mubr.f32.mxu0 0.0
      %597 = vmatmul.mubr.f32.gmra.mrb[0].mxu0 %v412
      %v598 = vpop.f32.mrb[0].mxu0
      %v599 = vadd.f32 0.0, %v598
      %v600 = vpop.f32.mrb[0].mxu0
      %601 = vmatprep.mubr.f32.mxu0 0.0
      %602 = vmatmul.mubr.f32.gmra.mrb[0].mxu0 %v415
      %v603 = vpop.f32.mrb[0].mxu0
      %v604 = vadd.f32 0.0, %v603
      %v605 = vpop.f32.mrb[0].mxu0
      %606 = vmatprep.mubr.f32.mxu0 0.0
      %607 = vmatmul.mubr.f32.gmra.mrb[0].mxu0 %v418
      %v608 = vpop.f32.mrb[0].mxu0
      %v609 = vadd.f32 0.0, %v608
      %v610 = vpop.f32.mrb[0].mxu0
      %611 = vmatprep.mubr.f32.mxu0 0.0
      %612 = vmatmul.mubr.f32.gmra.mrb[0].mxu0 %v421
      %v613 = vpop.f32.mrb[0].mxu0
      %v614 = vadd.f32 0.0, %v613
      %v615 = vpop.f32.mrb[0].mxu0
      %616 = vdwg.mxu0
      %v617 = vld [vmem:[%s296] sm:$0xff]
      %v618 = vld [vmem:[%s296 + $0x8] sm:$0xff]
      %v619 = vld [vmem:[%s296 + $0x10] sm:$0xff]
      %v620 = vld [vmem:[%s296 + $0x18] sm:$0xff]
      %v621 = vld [vmem:[%s296 + $0x20] sm:$0xff]
      %v622 = vld [vmem:[%s296 + $0x28] sm:$0xff]
      %v623 = vld [vmem:[%s296 + $0x30] sm:$0xff]
      %v624 = vld [vmem:[%s296 + $0x38] sm:$0xff]
      %v625 = vld [vmem:[%s296 + $0x40] sm:$0xff]
      %v626 = vld [vmem:[%s296 + $0x48] sm:$0xff]
      %v627 = vld [vmem:[%s296 + $0x50] sm:$0xff]
      %v628 = vld [vmem:[%s296 + $0x58] sm:$0xff]
      %v629 = vld [vmem:[%s296 + $0x60] sm:$0xff]
      %v630 = vld [vmem:[%s296 + $0x68] sm:$0xff]
      %v631 = vld [vmem:[%s296 + $0x70] sm:$0xff]
      %v632 = vld [vmem:[%s296 + $0x78] sm:$0xff]
      %v633 = vld [vmem:[%s296 + $0x80] sm:$0xff]
      %v634 = vld [vmem:[%s296 + $0x88] sm:$0xff]
      %v635 = vld [vmem:[%s296 + $0x90] sm:$0xff]
      %v636 = vld [vmem:[%s296 + $0x98] sm:$0xff]
      %v637 = vld [vmem:[%s296 + $0xa0] sm:$0xff]
      %v638 = vld [vmem:[%s296 + $0xa8] sm:$0xff]
      %v639 = vld [vmem:[%s296 + $0xb0] sm:$0xff]
      %v640 = vld [vmem:[%s296 + $0xb8] sm:$0xff]
      %v641 = vld [vmem:[%s296 + $0xc0] sm:$0xf]
      %v643 = vsel %vm347, %v617, 0
      %v646 = vsel %vm347, %v618, 0
      %v649 = vsel %vm347, %v619, 0
      %v652 = vsel %vm347, %v620, 0
      %v655 = vsel %vm347, %v621, 0
      %v658 = vsel %vm347, %v622, 0
      %v661 = vsel %vm347, %v623, 0
      %v664 = vsel %vm347, %v624, 0
      %v667 = vsel %vm347, %v625, 0
      %v670 = vsel %vm347, %v626, 0
      %v673 = vsel %vm347, %v627, 0
      %v676 = vsel %vm347, %v628, 0
      %v679 = vsel %vm347, %v629, 0
      %v682 = vsel %vm347, %v630, 0
      %v685 = vsel %vm347, %v631, 0
      %v688 = vsel %vm347, %v632, 0
      %v691 = vsel %vm347, %v633, 0
      %v694 = vsel %vm347, %v634, 0
      %v697 = vsel %vm347, %v635, 0
      %v700 = vsel %vm347, %v636, 0
      %v703 = vsel %vm347, %v637, 0
      %v706 = vsel %vm347, %v638, 0
      %v709 = vsel %vm347, %v639, 0
      %v712 = vsel %vm347, %v640, 0
      %v715 = vsel %vm347, %v641, 0
      %717 = vmatprep.subr.mxu0 0.0
      %718 = vmatpush1.msra.mxu0 %v312
      %719 = vmatprep.subr.mxu0 0.0
      %720 = vmatpush1.msra.mxu0 %v313
      %721 = vmatprep.subr.mxu0 0.0
      %722 = vmatpush1.msra.mxu0 %v314
      %723 = vmatprep.subr.mxu0 0.0
      %724 = vmatpush1.msra.mxu0 %v315
      %725 = vmatprep.subr.mxu0 0.0
      %726 = vmatpush1.msra.mxu0 %v316
      %727 = vmatprep.subr.mxu0 0.0
      %728 = vmatpush1.msra.mxu0 %v317
      %729 = vmatprep.subr.mxu0 0.0
      %730 = vmatpush1.msra.mxu0 %v318
      %731 = vmatprep.subr.mxu0 0.0
      %732 = vmatpush1.msra.mxu0 %v319
      %733 = vmatprep.subr.mxu0 0.0
      %734 = vmatpush1.msra.mxu0 %v320
      %735 = vmatprep.subr.mxu0 0.0
      %736 = vmatpush1.msra.mxu0 %v425
      %737 = vmatprep.subr.mxu0 0.0
      %738 = vmatpush1.msra.mxu0 0.0
      %739 = vmatprep.subr.mxu0 0.0
      %740 = vmatpush1.msra.mxu0 0.0
      %741 = vmatprep.subr.mxu0 0.0
      %742 = vmatpush1.msra.mxu0 0.0
      %743 = vmatprep.subr.mxu0 0.0
      %744 = vmatpush1.msra.mxu0 0.0
      %745 = vmatprep.subr.mxu0 0.0
      %746 = vmatpush1.msra.mxu0 0.0
      %747 = vmatprep.subr.mxu0 0.0
      %748 = vmatpush1.msra.mxu0 0.0
      %749 = vmatprep.subr.mxu0 0.0
      %750 = vmatpush1.msra.mxu0 0.0
      %751 = vmatprep.subr.mxu0 0.0
      %752 = vmatpush1.msra.mxu0 0.0
      %753 = vmatprep.subr.mxu0 0.0
      %754 = vmatpush1.msra.mxu0 0.0
      %755 = vmatprep.subr.mxu0 0.0
      %756 = vmatpush1.msra.mxu0 0.0
      %757 = vmatprep.subr.mxu0 0.0
      %758 = vmatpush1.msra.mxu0 0.0
      %759 = vmatprep.subr.mxu0 0.0
      %760 = vmatpush1.msra.mxu0 0.0
      %761 = vmatprep.subr.mxu0 0.0
      %762 = vmatpush1.msra.mxu0 0.0
      %763 = vmatprep.subr.mxu0 0.0
      %764 = vmatpush1.msra.mxu0 0.0
      %765 = vmatprep.subr.mxu0 0.0
      %766 = vmatpush1.msra.mxu0 0.0
      %767 = vmatprep.subr.mxu0 0.0
      %768 = vmatpush1.msra.mxu0 0.0
      %769 = vmatprep.subr.mxu0 0.0
      %770 = vmatpush1.msra.mxu0 0.0
      %771 = vmatprep.subr.mxu0 0.0
      %772 = vmatpush1.msra.mxu0 0.0
      %773 = vmatprep.subr.mxu0 0.0
      %774 = vmatpush1.msra.mxu0 0.0
      %775 = vmatprep.subr.mxu0 0.0
      %776 = vmatpush1.msra.mxu0 0.0
      %777 = vmatprep.subr.mxu0 0.0
      %778 = vmatpush1.msra.mxu0 0.0
      %779 = vmatprep.subr.mxu0 0.0
      %780 = vmatpush1.msra.mxu0 0.0
      %781 = vmatprep.mubr.f32.mxu0 0.0
      %782 = vmatmul.mubr.f32.gmra.mrb[0].mxu0 %v643
      %v783 = vpop.f32.mrb[0].mxu0
      %v784 = vadd.f32 0.0, %v783
      %v785 = vpop.f32.mrb[0].mxu0
      %786 = vmatprep.mubr.f32.mxu0 0.0
      %787 = vmatmul.mubr.f32.gmra.mrb[0].mxu0 %v646
      %v788 = vpop.f32.mrb[0].mxu0
      %v789 = vadd.f32 0.0, %v788
      %v790 = vpop.f32.mrb[0].mxu0
      %791 = vmatprep.mubr.f32.mxu0 0.0
      %792 = vmatmul.mubr.f32.gmra.mrb[0].mxu0 %v649
      %v793 = vpop.f32.mrb[0].mxu0
      %v794 = vadd.f32 0.0, %v793
      %v795 = vpop.f32.mrb[0].mxu0
      %796 = vmatprep.mubr.f32.mxu0 0.0
      %797 = vmatmul.mubr.f32.gmra.mrb[0].mxu0 %v652
      %v798 = vpop.f32.mrb[0].mxu0
      %v799 = vadd.f32 0.0, %v798
      %v800 = vpop.f32.mrb[0].mxu0
      %801 = vmatprep.mubr.f32.mxu0 0.0
      %802 = vmatmul.mubr.f32.gmra.mrb[0].mxu0 %v655
      %v803 = vpop.f32.mrb[0].mxu0
      %v804 = vadd.f32 0.0, %v803
      %v805 = vpop.f32.mrb[0].mxu0
      %806 = vmatprep.mubr.f32.mxu0 0.0
      %807 = vmatmul.mubr.f32.gmra.mrb[0].mxu0 %v658
      %v808 = vpop.f32.mrb[0].mxu0
      %v809 = vadd.f32 0.0, %v808
      %v810 = vpop.f32.mrb[0].mxu0
      %811 = vmatprep.mubr.f32.mxu0 0.0
      %812 = vmatmul.mubr.f32.gmra.mrb[0].mxu0 %v661
      %v813 = vpop.f32.mrb[0].mxu0
      %v814 = vadd.f32 0.0, %v813
      %v815 = vpop.f32.mrb[0].mxu0
      %816 = vmatprep.mubr.f32.mxu0 0.0
      %817 = vmatmul.mubr.f32.gmra.mrb[0].mxu0 %v664
      %v818 = vpop.f32.mrb[0].mxu0
      %v819 = vadd.f32 0.0, %v818
      %v820 = vpop.f32.mrb[0].mxu0
      %821 = vmatprep.mubr.f32.mxu0 0.0
      %822 = vmatmul.mubr.f32.gmra.mrb[0].mxu0 %v667
      %v823 = vpop.f32.mrb[0].mxu0
      %v824 = vadd.f32 0.0, %v823
      %v825 = vpop.f32.mrb[0].mxu0
      %826 = vmatprep.mubr.f32.mxu0 0.0
      %827 = vmatmul.mubr.f32.gmra.mrb[0].mxu0 %v670
      %v828 = vpop.f32.mrb[0].mxu0
      %v829 = vadd.f32 0.0, %v828
      %v830 = vpop.f32.mrb[0].mxu0
      %831 = vmatprep.mubr.f32.mxu0 0.0
      %832 = vmatmul.mubr.f32.gmra.mrb[0].mxu0 %v673
      %v833 = vpop.f32.mrb[0].mxu0
      %v834 = vadd.f32 0.0, %v833
      %v835 = vpop.f32.mrb[0].mxu0
      %836 = vmatprep.mubr.f32.mxu0 0.0
      %837 = vmatmul.mubr.f32.gmra.mrb[0].mxu0 %v676
      %v838 = vpop.f32.mrb[0].mxu0
      %v839 = vadd.f32 0.0, %v838
      %v840 = vpop.f32.mrb[0].mxu0
      %841 = vmatprep.mubr.f32.mxu0 0.0
      %842 = vmatmul.mubr.f32.gmra.mrb[0].mxu0 %v679
      %v843 = vpop.f32.mrb[0].mxu0
      %v844 = vadd.f32 0.0, %v843
      %v845 = vpop.f32.mrb[0].mxu0
      %846 = vmatprep.mubr.f32.mxu0 0.0
      %847 = vmatmul.mubr.f32.gmra.mrb[0].mxu0 %v682
      %v848 = vpop.f32.mrb[0].mxu0
      %v849 = vadd.f32 0.0, %v848
      %v850 = vpop.f32.mrb[0].mxu0
      %851 = vmatprep.mubr.f32.mxu0 0.0
      %852 = vmatmul.mubr.f32.gmra.mrb[0].mxu0 %v685
      %v853 = vpop.f32.mrb[0].mxu0
      %v854 = vadd.f32 0.0, %v853
      %v855 = vpop.f32.mrb[0].mxu0
      %856 = vmatprep.mubr.f32.mxu0 0.0
      %857 = vmatmul.mubr.f32.gmra.mrb[0].mxu0 %v688
      %v858 = vpop.f32.mrb[0].mxu0
      %v859 = vadd.f32 0.0, %v858
      %v860 = vpop.f32.mrb[0].mxu0
      %861 = vmatprep.mubr.f32.mxu0 0.0
      %862 = vmatmul.mubr.f32.gmra.mrb[0].mxu0 %v691
      %v863 = vpop.f32.mrb[0].mxu0
      %v864 = vadd.f32 0.0, %v863
      %v865 = vpop.f32.mrb[0].mxu0
      %866 = vmatprep.mubr.f32.mxu0 0.0
      %867 = vmatmul.mubr.f32.gmra.mrb[0].mxu0 %v694
      %v868 = vpop.f32.mrb[0].mxu0
      %v869 = vadd.f32 0.0, %v868
      %v870 = vpop.f32.mrb[0].mxu0
      %871 = vmatprep.mubr.f32.mxu0 0.0
      %872 = vmatmul.mubr.f32.gmra.mrb[0].mxu0 %v697
      %v873 = vpop.f32.mrb[0].mxu0
      %v874 = vadd.f32 0.0, %v873
      %v875 = vpop.f32.mrb[0].mxu0
      %876 = vmatprep.mubr.f32.mxu0 0.0
      %877 = vmatmul.mubr.f32.gmra.mrb[0].mxu0 %v700
      %v878 = vpop.f32.mrb[0].mxu0
      %v879 = vadd.f32 0.0, %v878
      %v880 = vpop.f32.mrb[0].mxu0
      %881 = vmatprep.mubr.f32.mxu0 0.0
      %882 = vmatmul.mubr.f32.gmra.mrb[0].mxu0 %v703
      %v883 = vpop.f32.mrb[0].mxu0
      %v884 = vadd.f32 0.0, %v883
      %v885 = vpop.f32.mrb[0].mxu0
      %886 = vmatprep.mubr.f32.mxu0 0.0
      %887 = vmatmul.mubr.f32.gmra.mrb[0].mxu0 %v706
      %v888 = vpop.f32.mrb[0].mxu0
      %v889 = vadd.f32 0.0, %v888
      %v890 = vpop.f32.mrb[0].mxu0
      %891 = vmatprep.mubr.f32.mxu0 0.0
      %892 = vmatmul.mubr.f32.gmra.mrb[0].mxu0 %v709
      %v893 = vpop.f32.mrb[0].mxu0
      %v894 = vadd.f32 0.0, %v893
      %v895 = vpop.f32.mrb[0].mxu0
      %896 = vmatprep.mubr.f32.mxu0 0.0
      %897 = vmatmul.mubr.f32.gmra.mrb[0].mxu0 %v712
      %v898 = vpop.f32.mrb[0].mxu0
      %v899 = vadd.f32 0.0, %v898
      %v900 = vpop.f32.mrb[0].mxu0
      %901 = vmatprep.mubr.f32.mxu0 0.0
      %902 = vmatmul.mubr.f32.gmra.mrb[0].mxu0 %v715
      %v903 = vpop.f32.mrb[0].mxu0
      %v904 = vadd.f32 0.0, %v903
      %v905 = vpop.f32.mrb[0].mxu0
      %906 = vdwg.mxu0
      %v907 = vmax.f32 %v494, %v784
      %v908 = vmax.f32 %v499, %v789
      %v909 = vmax.f32 %v504, %v794
      %v910 = vmax.f32 %v509, %v799
      %v911 = vmax.f32 %v514, %v804
      %v912 = vmax.f32 %v519, %v809
      %v913 = vmax.f32 %v524, %v814
      %v914 = vmax.f32 %v529, %v819
      %v915 = vmax.f32 %v534, %v824
      %v916 = vmax.f32 %v539, %v829
      %v917 = vmax.f32 %v544, %v834
      %v918 = vmax.f32 %v549, %v839
      %v919 = vmax.f32 %v554, %v844
      %v920 = vmax.f32 %v559, %v849
      %v921 = vmax.f32 %v564, %v854
      %v922 = vmax.f32 %v569, %v859
      %v923 = vmax.f32 %v574, %v864
      %v924 = vmax.f32 %v579, %v869
      %v925 = vmax.f32 %v584, %v874
      %v926 = vmax.f32 %v589, %v879
      %v927 = vmax.f32 %v594, %v884
      %v928 = vmax.f32 %v599, %v889
      %v929 = vmax.f32 %v604, %v894
      %v930 = vmax.f32 %v609, %v899
      %v931 = vmax.f32 %v614, %v904
      %v932 = vld [vmem:[%s301] sm:$0xff]
      %v933 = vld [vmem:[%s301 + $0x8] sm:$0xff]
      %v934 = vld [vmem:[%s301 + $0x10] sm:$0xff]
      %v935 = vld [vmem:[%s301 + $0x18] sm:$0xff]
      %v936 = vld [vmem:[%s301 + $0x20] sm:$0xff]
      %v937 = vld [vmem:[%s301 + $0x28] sm:$0xff]
      %v938 = vld [vmem:[%s301 + $0x30] sm:$0xff]
      %v939 = vld [vmem:[%s301 + $0x38] sm:$0xff]
      %v940 = vld [vmem:[%s301 + $0x40] sm:$0xff]
      %v941 = vld [vmem:[%s301 + $0x48] sm:$0xff]
      %v942 = vld [vmem:[%s301 + $0x50] sm:$0xff]
      %v943 = vld [vmem:[%s301 + $0x58] sm:$0xff]
      %v944 = vld [vmem:[%s301 + $0x60] sm:$0xff]
      %v945 = vld [vmem:[%s301 + $0x68] sm:$0xff]
      %v946 = vld [vmem:[%s301 + $0x70] sm:$0xff]
      %v947 = vld [vmem:[%s301 + $0x78] sm:$0xff]
      %v948 = vld [vmem:[%s301 + $0x80] sm:$0xff]
      %v949 = vld [vmem:[%s301 + $0x88] sm:$0xff]
      %v950 = vld [vmem:[%s301 + $0x90] sm:$0xff]
      %v951 = vld [vmem:[%s301 + $0x98] sm:$0xff]
      %v952 = vld [vmem:[%s301 + $0xa0] sm:$0xff]
      %v953 = vld [vmem:[%s301 + $0xa8] sm:$0xff]
      %v954 = vld [vmem:[%s301 + $0xb0] sm:$0xff]
      %v955 = vld [vmem:[%s301 + $0xb8] sm:$0xff]
      %v956 = vld [vmem:[%s301 + $0xc0] sm:$0xf]
      %v958 = vsel %vm347, %v932, 0
      %v961 = vsel %vm347, %v933, 0
      %v964 = vsel %vm347, %v934, 0
      %v967 = vsel %vm347, %v935, 0
      %v970 = vsel %vm347, %v936, 0
      %v973 = vsel %vm347, %v937, 0
      %v976 = vsel %vm347, %v938, 0
      %v979 = vsel %vm347, %v939, 0
      %v982 = vsel %vm347, %v940, 0
      %v985 = vsel %vm347, %v941, 0
      %v988 = vsel %vm347, %v942, 0
      %v991 = vsel %vm347, %v943, 0
      %v994 = vsel %vm347, %v944, 0
      %v997 = vsel %vm347, %v945, 0
      %v1000 = vsel %vm347, %v946, 0
      %v1003 = vsel %vm347, %v947, 0
      %v1006 = vsel %vm347, %v948, 0
      %v1009 = vsel %vm347, %v949, 0
      %v1012 = vsel %vm347, %v950, 0
      %v1015 = vsel %vm347, %v951, 0
      %v1018 = vsel %vm347, %v952, 0
      %v1021 = vsel %vm347, %v953, 0
      %v1024 = vsel %vm347, %v954, 0
      %v1027 = vsel %vm347, %v955, 0
      %v1030 = vsel %vm347, %v956, 0
      %1032 = vmatprep.subr.mxu0 0.0
      %1033 = vmatpush1.msra.mxu0 %v312
      %1034 = vmatprep.subr.mxu0 0.0
      %1035 = vmatpush1.msra.mxu0 %v313
      %1036 = vmatprep.subr.mxu0 0.0
      %1037 = vmatpush1.msra.mxu0 %v314
      %1038 = vmatprep.subr.mxu0 0.0
      %1039 = vmatpush1.msra.mxu0 %v315
      %1040 = vmatprep.subr.mxu0 0.0
      %1041 = vmatpush1.msra.mxu0 %v316
      %1042 = vmatprep.subr.mxu0 0.0
      %1043 = vmatpush1.msra.mxu0 %v317
      %1044 = vmatprep.subr.mxu0 0.0
      %1045 = vmatpush1.msra.mxu0 %v318
      %1046 = vmatprep.subr.mxu0 0.0
      %1047 = vmatpush1.msra.mxu0 %v319
      %1048 = vmatprep.subr.mxu0 0.0
      %1049 = vmatpush1.msra.mxu0 %v320
      %1050 = vmatprep.subr.mxu0 0.0
      %1051 = vmatpush1.msra.mxu0 %v425
      %1052 = vmatprep.subr.mxu0 0.0
      %1053 = vmatpush1.msra.mxu0 0.0
      %1054 = vmatprep.subr.mxu0 0.0
      %1055 = vmatpush1.msra.mxu0 0.0
      %1056 = vmatprep.subr.mxu0 0.0
      %1057 = vmatpush1.msra.mxu0 0.0
      %1058 = vmatprep.subr.mxu0 0.0
      %1059 = vmatpush1.msra.mxu0 0.0
      %1060 = vmatprep.subr.mxu0 0.0
      %1061 = vmatpush1.msra.mxu0 0.0
      %1062 = vmatprep.subr.mxu0 0.0
      %1063 = vmatpush1.msra.mxu0 0.0
      %1064 = vmatprep.subr.mxu0 0.0
      %1065 = vmatpush1.msra.mxu0 0.0
      %1066 = vmatprep.subr.mxu0 0.0
      %1067 = vmatpush1.msra.mxu0 0.0
      %1068 = vmatprep.subr.mxu0 0.0
      %1069 = vmatpush1.msra.mxu0 0.0
      %1070 = vmatprep.subr.mxu0 0.0
      %1071 = vmatpush1.msra.mxu0 0.0
      %1072 = vmatprep.subr.mxu0 0.0
      %1073 = vmatpush1.msra.mxu0 0.0
      %1074 = vmatprep.subr.mxu0 0.0
      %1075 = vmatpush1.msra.mxu0 0.0
      %1076 = vmatprep.subr.mxu0 0.0
      %1077 = vmatpush1.msra.mxu0 0.0
      %1078 = vmatprep.subr.mxu0 0.0
      %1079 = vmatpush1.msra.mxu0 0.0
      %1080 = vmatprep.subr.mxu0 0.0
      %1081 = vmatpush1.msra.mxu0 0.0
      %1082 = vmatprep.subr.mxu0 0.0
      %1083 = vmatpush1.msra.mxu0 0.0
      %1084 = vmatprep.subr.mxu0 0.0
      %1085 = vmatpush1.msra.mxu0 0.0
      %1086 = vmatprep.subr.mxu0 0.0
      %1087 = vmatpush1.msra.mxu0 0.0
      %1088 = vmatprep.subr.mxu0 0.0
      %1089 = vmatpush1.msra.mxu0 0.0
      %1090 = vmatprep.subr.mxu0 0.0
      %1091 = vmatpush1.msra.mxu0 0.0
      %1092 = vmatprep.subr.mxu0 0.0
      %1093 = vmatpush1.msra.mxu0 0.0
      %1094 = vmatprep.subr.mxu0 0.0
      %1095 = vmatpush1.msra.mxu0 0.0
      %1096 = vmatprep.mubr.f32.mxu0 0.0
      %1097 = vmatmul.mubr.f32.gmra.mrb[0].mxu0 %v958
      %v1098 = vpop.f32.mrb[0].mxu0
      %v1099 = vadd.f32 0.0, %v1098
      %v1100 = vpop.f32.mrb[0].mxu0
      %1101 = vmatprep.mubr.f32.mxu0 0.0
      %1102 = vmatmul.mubr.f32.gmra.mrb[0].mxu0 %v961
      %v1103 = vpop.f32.mrb[0].mxu0
      %v1104 = vadd.f32 0.0, %v1103
      %v1105 = vpop.f32.mrb[0].mxu0
      %1106 = vmatprep.mubr.f32.mxu0 0.0
      %1107 = vmatmul.mubr.f32.gmra.mrb[0].mxu0 %v964
      %v1108 = vpop.f32.mrb[0].mxu0
      %v1109 = vadd.f32 0.0, %v1108
      %v1110 = vpop.f32.mrb[0].mxu0
      %1111 = vmatprep.mubr.f32.mxu0 0.0
      %1112 = vmatmul.mubr.f32.gmra.mrb[0].mxu0 %v967
      %v1113 = vpop.f32.mrb[0].mxu0
      %v1114 = vadd.f32 0.0, %v1113
      %v1115 = vpop.f32.mrb[0].mxu0
      %1116 = vmatprep.mubr.f32.mxu0 0.0
      %1117 = vmatmul.mubr.f32.gmra.mrb[0].mxu0 %v970
      %v1118 = vpop.f32.mrb[0].mxu0
      %v1119 = vadd.f32 0.0, %v1118
      %v1120 = vpop.f32.mrb[0].mxu0
      %1121 = vmatprep.mubr.f32.mxu0 0.0
      %1122 = vmatmul.mubr.f32.gmra.mrb[0].mxu0 %v973
      %v1123 = vpop.f32.mrb[0].mxu0
      %v1124 = vadd.f32 0.0, %v1123
      %v1125 = vpop.f32.mrb[0].mxu0
      %1126 = vmatprep.mubr.f32.mxu0 0.0
      %1127 = vmatmul.mubr.f32.gmra.mrb[0].mxu0 %v976
      %v1128 = vpop.f32.mrb[0].mxu0
      %v1129 = vadd.f32 0.0, %v1128
      %v1130 = vpop.f32.mrb[0].mxu0
      %1131 = vmatprep.mubr.f32.mxu0 0.0
      %1132 = vmatmul.mubr.f32.gmra.mrb[0].mxu0 %v979
      %v1133 = vpop.f32.mrb[0].mxu0
      %v1134 = vadd.f32 0.0, %v1133
      %v1135 = vpop.f32.mrb[0].mxu0
      %1136 = vmatprep.mubr.f32.mxu0 0.0
      %1137 = vmatmul.mubr.f32.gmra.mrb[0].mxu0 %v982
      %v1138 = vpop.f32.mrb[0].mxu0
      %v1139 = vadd.f32 0.0, %v1138
      %v1140 = vpop.f32.mrb[0].mxu0
      %1141 = vmatprep.mubr.f32.mxu0 0.0
      %1142 = vmatmul.mubr.f32.gmra.mrb[0].mxu0 %v985
      %v1143 = vpop.f32.mrb[0].mxu0
      %v1144 = vadd.f32 0.0, %v1143
      %v1145 = vpop.f32.mrb[0].mxu0
      %1146 = vmatprep.mubr.f32.mxu0 0.0
      %1147 = vmatmul.mubr.f32.gmra.mrb[0].mxu0 %v988
      %v1148 = vpop.f32.mrb[0].mxu0
      %v1149 = vadd.f32 0.0, %v1148
      %v1150 = vpop.f32.mrb[0].mxu0
      %1151 = vmatprep.mubr.f32.mxu0 0.0
      %1152 = vmatmul.mubr.f32.gmra.mrb[0].mxu0 %v991
      %v1153 = vpop.f32.mrb[0].mxu0
      %v1154 = vadd.f32 0.0, %v1153
      %v1155 = vpop.f32.mrb[0].mxu0
      %1156 = vmatprep.mubr.f32.mxu0 0.0
      %1157 = vmatmul.mubr.f32.gmra.mrb[0].mxu0 %v994
      %v1158 = vpop.f32.mrb[0].mxu0
      %v1159 = vadd.f32 0.0, %v1158
      %v1160 = vpop.f32.mrb[0].mxu0
      %1161 = vmatprep.mubr.f32.mxu0 0.0
      %1162 = vmatmul.mubr.f32.gmra.mrb[0].mxu0 %v997
      %v1163 = vpop.f32.mrb[0].mxu0
      %v1164 = vadd.f32 0.0, %v1163
      %v1165 = vpop.f32.mrb[0].mxu0
      %1166 = vmatprep.mubr.f32.mxu0 0.0
      %1167 = vmatmul.mubr.f32.gmra.mrb[0].mxu0 %v1000
      %v1168 = vpop.f32.mrb[0].mxu0
      %v1169 = vadd.f32 0.0, %v1168
      %v1170 = vpop.f32.mrb[0].mxu0
      %1171 = vmatprep.mubr.f32.mxu0 0.0
      %1172 = vmatmul.mubr.f32.gmra.mrb[0].mxu0 %v1003
      %v1173 = vpop.f32.mrb[0].mxu0
      %v1174 = vadd.f32 0.0, %v1173
      %v1175 = vpop.f32.mrb[0].mxu0
      %1176 = vmatprep.mubr.f32.mxu0 0.0
      %1177 = vmatmul.mubr.f32.gmra.mrb[0].mxu0 %v1006
      %v1178 = vpop.f32.mrb[0].mxu0
      %v1179 = vadd.f32 0.0, %v1178
      %v1180 = vpop.f32.mrb[0].mxu0
      %1181 = vmatprep.mubr.f32.mxu0 0.0
      %1182 = vmatmul.mubr.f32.gmra.mrb[0].mxu0 %v1009
      %v1183 = vpop.f32.mrb[0].mxu0
      %v1184 = vadd.f32 0.0, %v1183
      %v1185 = vpop.f32.mrb[0].mxu0
      %1186 = vmatprep.mubr.f32.mxu0 0.0
      %1187 = vmatmul.mubr.f32.gmra.mrb[0].mxu0 %v1012
      %v1188 = vpop.f32.mrb[0].mxu0
      %v1189 = vadd.f32 0.0, %v1188
      %v1190 = vpop.f32.mrb[0].mxu0
      %1191 = vmatprep.mubr.f32.mxu0 0.0
      %1192 = vmatmul.mubr.f32.gmra.mrb[0].mxu0 %v1015
      %v1193 = vpop.f32.mrb[0].mxu0
      %v1194 = vadd.f32 0.0, %v1193
      %v1195 = vpop.f32.mrb[0].mxu0
      %1196 = vmatprep.mubr.f32.mxu0 0.0
      %1197 = vmatmul.mubr.f32.gmra.mrb[0].mxu0 %v1018
      %v1198 = vpop.f32.mrb[0].mxu0
      %v1199 = vadd.f32 0.0, %v1198
      %v1200 = vpop.f32.mrb[0].mxu0
      %1201 = vmatprep.mubr.f32.mxu0 0.0
      %1202 = vmatmul.mubr.f32.gmra.mrb[0].mxu0 %v1021
      %v1203 = vpop.f32.mrb[0].mxu0
      %v1204 = vadd.f32 0.0, %v1203
      %v1205 = vpop.f32.mrb[0].mxu0
      %1206 = vmatprep.mubr.f32.mxu0 0.0
      %1207 = vmatmul.mubr.f32.gmra.mrb[0].mxu0 %v1024
      %v1208 = vpop.f32.mrb[0].mxu0
      %v1209 = vadd.f32 0.0, %v1208
      %v1210 = vpop.f32.mrb[0].mxu0
      %1211 = vmatprep.mubr.f32.mxu0 0.0
      %1212 = vmatmul.mubr.f32.gmra.mrb[0].mxu0 %v1027
      %v1213 = vpop.f32.mrb[0].mxu0
      %v1214 = vadd.f32 0.0, %v1213
      %v1215 = vpop.f32.mrb[0].mxu0
      %1216 = vmatprep.mubr.f32.mxu0 0.0
      %1217 = vmatmul.mubr.f32.gmra.mrb[0].mxu0 %v1030
      %v1218 = vpop.f32.mrb[0].mxu0
      %v1219 = vadd.f32 0.0, %v1218
      %v1220 = vpop.f32.mrb[0].mxu0
      %1221 = vdwg.mxu0
      %v1222 = vld [vmem:[%s306] sm:$0xff]
      %v1223 = vld [vmem:[%s306 + $0x8] sm:$0xff]
      %v1224 = vld [vmem:[%s306 + $0x10] sm:$0xff]
      %v1225 = vld [vmem:[%s306 + $0x18] sm:$0xff]
      %v1226 = vld [vmem:[%s306 + $0x20] sm:$0xff]
      %v1227 = vld [vmem:[%s306 + $0x28] sm:$0xff]
      %v1228 = vld [vmem:[%s306 + $0x30] sm:$0xff]
      %v1229 = vld [vmem:[%s306 + $0x38] sm:$0xff]
      %v1230 = vld [vmem:[%s306 + $0x40] sm:$0xff]
      %v1231 = vld [vmem:[%s306 + $0x48] sm:$0xff]
      %v1232 = vld [vmem:[%s306 + $0x50] sm:$0xff]
      %v1233 = vld [vmem:[%s306 + $0x58] sm:$0xff]
      %v1234 = vld [vmem:[%s306 + $0x60] sm:$0xff]
      %v1235 = vld [vmem:[%s306 + $0x68] sm:$0xff]
      %v1236 = vld [vmem:[%s306 + $0x70] sm:$0xff]
      %v1237 = vld [vmem:[%s306 + $0x78] sm:$0xff]
      %v1238 = vld [vmem:[%s306 + $0x80] sm:$0xff]
      %v1239 = vld [vmem:[%s306 + $0x88] sm:$0xff]
      %v1240 = vld [vmem:[%s306 + $0x90] sm:$0xff]
      %v1241 = vld [vmem:[%s306 + $0x98] sm:$0xff]
      %v1242 = vld [vmem:[%s306 + $0xa0] sm:$0xff]
      %v1243 = vld [vmem:[%s306 + $0xa8] sm:$0xff]
      %v1244 = vld [vmem:[%s306 + $0xb0] sm:$0xff]
      %v1245 = vld [vmem:[%s306 + $0xb8] sm:$0xff]
      %v1246 = vld [vmem:[%s306 + $0xc0] sm:$0xf]
      %v1248 = vsel %vm347, %v1222, 0
      %v1251 = vsel %vm347, %v1223, 0
      %v1254 = vsel %vm347, %v1224, 0
      %v1257 = vsel %vm347, %v1225, 0
      %v1260 = vsel %vm347, %v1226, 0
      %v1263 = vsel %vm347, %v1227, 0
      %v1266 = vsel %vm347, %v1228, 0
      %v1269 = vsel %vm347, %v1229, 0
      %v1272 = vsel %vm347, %v1230, 0
      %v1275 = vsel %vm347, %v1231, 0
      %v1278 = vsel %vm347, %v1232, 0
      %v1281 = vsel %vm347, %v1233, 0
      %v1284 = vsel %vm347, %v1234, 0
      %v1287 = vsel %vm347, %v1235, 0
      %v1290 = vsel %vm347, %v1236, 0
      %v1293 = vsel %vm347, %v1237, 0
      %v1296 = vsel %vm347, %v1238, 0
      %v1299 = vsel %vm347, %v1239, 0
      %v1302 = vsel %vm347, %v1240, 0
      %v1305 = vsel %vm347, %v1241, 0
      %v1308 = vsel %vm347, %v1242, 0
      %v1311 = vsel %vm347, %v1243, 0
      %v1314 = vsel %vm347, %v1244, 0
      %v1317 = vsel %vm347, %v1245, 0
      %v1320 = vsel %vm347, %v1246, 0
      %1322 = vmatprep.subr.mxu0 0.0
      %1323 = vmatpush1.msra.mxu0 %v312
      %1324 = vmatprep.subr.mxu0 0.0
      %1325 = vmatpush1.msra.mxu0 %v313
      %1326 = vmatprep.subr.mxu0 0.0
      %1327 = vmatpush1.msra.mxu0 %v314
      %1328 = vmatprep.subr.mxu0 0.0
      %1329 = vmatpush1.msra.mxu0 %v315
      %1330 = vmatprep.subr.mxu0 0.0
      %1331 = vmatpush1.msra.mxu0 %v316
      %1332 = vmatprep.subr.mxu0 0.0
      %1333 = vmatpush1.msra.mxu0 %v317
      %1334 = vmatprep.subr.mxu0 0.0
      %1335 = vmatpush1.msra.mxu0 %v318
      %1336 = vmatprep.subr.mxu0 0.0
      %1337 = vmatpush1.msra.mxu0 %v319
      %1338 = vmatprep.subr.mxu0 0.0
      %1339 = vmatpush1.msra.mxu0 %v320
      %1340 = vmatprep.subr.mxu0 0.0
      %1341 = vmatpush1.msra.mxu0 %v425
      %1342 = vmatprep.subr.mxu0 0.0
      %1343 = vmatpush1.msra.mxu0 0.0
      %1344 = vmatprep.subr.mxu0 0.0
      %1345 = vmatpush1.msra.mxu0 0.0
      %1346 = vmatprep.subr.mxu0 0.0
      %1347 = vmatpush1.msra.mxu0 0.0
      %1348 = vmatprep.subr.mxu0 0.0
      %1349 = vmatpush1.msra.mxu0 0.0
      %1350 = vmatprep.subr.mxu0 0.0
      %1351 = vmatpush1.msra.mxu0 0.0
      %1352 = vmatprep.subr.mxu0 0.0
      %1353 = vmatpush1.msra.mxu0 0.0
      %1354 = vmatprep.subr.mxu0 0.0
      %1355 = vmatpush1.msra.mxu0 0.0
      %1356 = vmatprep.subr.mxu0 0.0
      %1357 = vmatpush1.msra.mxu0 0.0
      %1358 = vmatprep.subr.mxu0 0.0
      %1359 = vmatpush1.msra.mxu0 0.0
      %1360 = vmatprep.subr.mxu0 0.0
      %1361 = vmatpush1.msra.mxu0 0.0
      %1362 = vmatprep.subr.mxu0 0.0
      %1363 = vmatpush1.msra.mxu0 0.0
      %1364 = vmatprep.subr.mxu0 0.0
      %1365 = vmatpush1.msra.mxu0 0.0
      %1366 = vmatprep.subr.mxu0 0.0
      %1367 = vmatpush1.msra.mxu0 0.0
      %1368 = vmatprep.subr.mxu0 0.0
      %1369 = vmatpush1.msra.mxu0 0.0
      %1370 = vmatprep.subr.mxu0 0.0
      %1371 = vmatpush1.msra.mxu0 0.0
      %1372 = vmatprep.subr.mxu0 0.0
      %1373 = vmatpush1.msra.mxu0 0.0
      %1374 = vmatprep.subr.mxu0 0.0
      %1375 = vmatpush1.msra.mxu0 0.0
      %1376 = vmatprep.subr.mxu0 0.0
      %1377 = vmatpush1.msra.mxu0 0.0
      %1378 = vmatprep.subr.mxu0 0.0
      %1379 = vmatpush1.msra.mxu0 0.0
      %1380 = vmatprep.subr.mxu0 0.0
      %1381 = vmatpush1.msra.mxu0 0.0
      %1382 = vmatprep.subr.mxu0 0.0
      %1383 = vmatpush1.msra.mxu0 0.0
      %1384 = vmatprep.subr.mxu0 0.0
      %1385 = vmatpush1.msra.mxu0 0.0
      %1386 = vmatprep.mubr.f32.mxu0 0.0
      %1387 = vmatmul.mubr.f32.gmra.mrb[0].mxu0 %v1248
      %v1388 = vpop.f32.mrb[0].mxu0
      %v1389 = vadd.f32 0.0, %v1388
      %v1390 = vpop.f32.mrb[0].mxu0
      %1391 = vmatprep.mubr.f32.mxu0 0.0
      %1392 = vmatmul.mubr.f32.gmra.mrb[0].mxu0 %v1251
      %v1393 = vpop.f32.mrb[0].mxu0
      %v1394 = vadd.f32 0.0, %v1393
      %v1395 = vpop.f32.mrb[0].mxu0
      %1396 = vmatprep.mubr.f32.mxu0 0.0
      %1397 = vmatmul.mubr.f32.gmra.mrb[0].mxu0 %v1254
      %v1398 = vpop.f32.mrb[0].mxu0
      %v1399 = vadd.f32 0.0, %v1398
      %v1400 = vpop.f32.mrb[0].mxu0
      %1401 = vmatprep.mubr.f32.mxu0 0.0
      %1402 = vmatmul.mubr.f32.gmra.mrb[0].mxu0 %v1257
      %v1403 = vpop.f32.mrb[0].mxu0
      %v1404 = vadd.f32 0.0, %v1403
      %v1405 = vpop.f32.mrb[0].mxu0
      %1406 = vmatprep.mubr.f32.mxu0 0.0
      %1407 = vmatmul.mubr.f32.gmra.mrb[0].mxu0 %v1260
      %v1408 = vpop.f32.mrb[0].mxu0
      %v1409 = vadd.f32 0.0, %v1408
      %v1410 = vpop.f32.mrb[0].mxu0
      %1411 = vmatprep.mubr.f32.mxu0 0.0
      %1412 = vmatmul.mubr.f32.gmra.mrb[0].mxu0 %v1263
      %v1413 = vpop.f32.mrb[0].mxu0
      %v1414 = vadd.f32 0.0, %v1413
      %v1415 = vpop.f32.mrb[0].mxu0
      %1416 = vmatprep.mubr.f32.mxu0 0.0
      %1417 = vmatmul.mubr.f32.gmra.mrb[0].mxu0 %v1266
      %v1418 = vpop.f32.mrb[0].mxu0
      %v1419 = vadd.f32 0.0, %v1418
      %v1420 = vpop.f32.mrb[0].mxu0
      %1421 = vmatprep.mubr.f32.mxu0 0.0
      %1422 = vmatmul.mubr.f32.gmra.mrb[0].mxu0 %v1269
      %v1423 = vpop.f32.mrb[0].mxu0
      %v1424 = vadd.f32 0.0, %v1423
      %v1425 = vpop.f32.mrb[0].mxu0
      %1426 = vmatprep.mubr.f32.mxu0 0.0
      %1427 = vmatmul.mubr.f32.gmra.mrb[0].mxu0 %v1272
      %v1428 = vpop.f32.mrb[0].mxu0
      %v1429 = vadd.f32 0.0, %v1428
      %v1430 = vpop.f32.mrb[0].mxu0
      %1431 = vmatprep.mubr.f32.mxu0 0.0
      %1432 = vmatmul.mubr.f32.gmra.mrb[0].mxu0 %v1275
      %v1433 = vpop.f32.mrb[0].mxu0
      %v1434 = vadd.f32 0.0, %v1433
      %v1435 = vpop.f32.mrb[0].mxu0
      %1436 = vmatprep.mubr.f32.mxu0 0.0
      %1437 = vmatmul.mubr.f32.gmra.mrb[0].mxu0 %v1278
      %v1438 = vpop.f32.mrb[0].mxu0
      %v1439 = vadd.f32 0.0, %v1438
      %v1440 = vpop.f32.mrb[0].mxu0
      %1441 = vmatprep.mubr.f32.mxu0 0.0
      %1442 = vmatmul.mubr.f32.gmra.mrb[0].mxu0 %v1281
      %v1443 = vpop.f32.mrb[0].mxu0
      %v1444 = vadd.f32 0.0, %v1443
      %v1445 = vpop.f32.mrb[0].mxu0
      %1446 = vmatprep.mubr.f32.mxu0 0.0
      %1447 = vmatmul.mubr.f32.gmra.mrb[0].mxu0 %v1284
      %v1448 = vpop.f32.mrb[0].mxu0
      %v1449 = vadd.f32 0.0, %v1448
      %v1450 = vpop.f32.mrb[0].mxu0
      %1451 = vmatprep.mubr.f32.mxu0 0.0
      %1452 = vmatmul.mubr.f32.gmra.mrb[0].mxu0 %v1287
      %v1453 = vpop.f32.mrb[0].mxu0
      %v1454 = vadd.f32 0.0, %v1453
      %v1455 = vpop.f32.mrb[0].mxu0
      %1456 = vmatprep.mubr.f32.mxu0 0.0
      %1457 = vmatmul.mubr.f32.gmra.mrb[0].mxu0 %v1290
      %v1458 = vpop.f32.mrb[0].mxu0
      %v1459 = vadd.f32 0.0, %v1458
      %v1460 = vpop.f32.mrb[0].mxu0
      %1461 = vmatprep.mubr.f32.mxu0 0.0
      %1462 = vmatmul.mubr.f32.gmra.mrb[0].mxu0 %v1293
      %v1463 = vpop.f32.mrb[0].mxu0
      %v1464 = vadd.f32 0.0, %v1463
      %v1465 = vpop.f32.mrb[0].mxu0
      %1466 = vmatprep.mubr.f32.mxu0 0.0
      %1467 = vmatmul.mubr.f32.gmra.mrb[0].mxu0 %v1296
      %v1468 = vpop.f32.mrb[0].mxu0
      %v1469 = vadd.f32 0.0, %v1468
      %v1470 = vpop.f32.mrb[0].mxu0
      %1471 = vmatprep.mubr.f32.mxu0 0.0
      %1472 = vmatmul.mubr.f32.gmra.mrb[0].mxu0 %v1299
      %v1473 = vpop.f32.mrb[0].mxu0
      %v1474 = vadd.f32 0.0, %v1473
      %v1475 = vpop.f32.mrb[0].mxu0
      %1476 = vmatprep.mubr.f32.mxu0 0.0
      %1477 = vmatmul.mubr.f32.gmra.mrb[0].mxu0 %v1302
      %v1478 = vpop.f32.mrb[0].mxu0
      %v1479 = vadd.f32 0.0, %v1478
      %v1480 = vpop.f32.mrb[0].mxu0
      %1481 = vmatprep.mubr.f32.mxu0 0.0
      %1482 = vmatmul.mubr.f32.gmra.mrb[0].mxu0 %v1305
      %v1483 = vpop.f32.mrb[0].mxu0
      %v1484 = vadd.f32 0.0, %v1483
      %v1485 = vpop.f32.mrb[0].mxu0
      %1486 = vmatprep.mubr.f32.mxu0 0.0
      %1487 = vmatmul.mubr.f32.gmra.mrb[0].mxu0 %v1308
      %v1488 = vpop.f32.mrb[0].mxu0
      %v1489 = vadd.f32 0.0, %v1488
      %v1490 = vpop.f32.mrb[0].mxu0
      %1491 = vmatprep.mubr.f32.mxu0 0.0
      %1492 = vmatmul.mubr.f32.gmra.mrb[0].mxu0 %v1311
      %v1493 = vpop.f32.mrb[0].mxu0
      %v1494 = vadd.f32 0.0, %v1493
      %v1495 = vpop.f32.mrb[0].mxu0
      %1496 = vmatprep.mubr.f32.mxu0 0.0
      %1497 = vmatmul.mubr.f32.gmra.mrb[0].mxu0 %v1314
      %v1498 = vpop.f32.mrb[0].mxu0
      %v1499 = vadd.f32 0.0, %v1498
      %v1500 = vpop.f32.mrb[0].mxu0
      %1501 = vmatprep.mubr.f32.mxu0 0.0
      %1502 = vmatmul.mubr.f32.gmra.mrb[0].mxu0 %v1317
      %v1503 = vpop.f32.mrb[0].mxu0
      %v1504 = vadd.f32 0.0, %v1503
      %v1505 = vpop.f32.mrb[0].mxu0
      %1506 = vmatprep.mubr.f32.mxu0 0.0
      %1507 = vmatmul.mubr.f32.gmra.mrb[0].mxu0 %v1320
      %v1508 = vpop.f32.mrb[0].mxu0
      %v1509 = vadd.f32 0.0, %v1508
      %v1510 = vpop.f32.mrb[0].mxu0
      %1511 = vdwg.mxu0
      %v1512 = vmax.f32 %v1099, %v1389
      %v1513 = vmax.f32 %v1104, %v1394
      %v1514 = vmax.f32 %v1109, %v1399
      %v1515 = vmax.f32 %v1114, %v1404
      %v1516 = vmax.f32 %v1119, %v1409
      %v1517 = vmax.f32 %v1124, %v1414
      %v1518 = vmax.f32 %v1129, %v1419
      %v1519 = vmax.f32 %v1134, %v1424
      %v1520 = vmax.f32 %v1139, %v1429
      %v1521 = vmax.f32 %v1144, %v1434
      %v1522 = vmax.f32 %v1149, %v1439
      %v1523 = vmax.f32 %v1154, %v1444
      %v1524 = vmax.f32 %v1159, %v1449
      %v1525 = vmax.f32 %v1164, %v1454
      %v1526 = vmax.f32 %v1169, %v1459
      %v1527 = vmax.f32 %v1174, %v1464
      %v1528 = vmax.f32 %v1179, %v1469
      %v1529 = vmax.f32 %v1184, %v1474
      %v1530 = vmax.f32 %v1189, %v1479
      %v1531 = vmax.f32 %v1194, %v1484
      %v1532 = vmax.f32 %v1199, %v1489
      %v1533 = vmax.f32 %v1204, %v1494
      %v1534 = vmax.f32 %v1209, %v1499
      %v1535 = vmax.f32 %v1214, %v1504
      %v1536 = vmax.f32 %v1219, %v1509
      %v1537 = vmax.f32 %v907, %v1512
      %v1538 = vmax.f32 %v908, %v1513
      %v1539 = vmax.f32 %v909, %v1514
      %v1540 = vmax.f32 %v910, %v1515
      %v1541 = vmax.f32 %v911, %v1516
      %v1542 = vmax.f32 %v912, %v1517
      %v1543 = vmax.f32 %v913, %v1518
      %v1544 = vmax.f32 %v914, %v1519
      %v1545 = vmax.f32 %v915, %v1520
      %v1546 = vmax.f32 %v916, %v1521
      %v1547 = vmax.f32 %v917, %v1522
      %v1548 = vmax.f32 %v918, %v1523
      %v1549 = vmax.f32 %v919, %v1524
      %v1550 = vmax.f32 %v920, %v1525
      %v1551 = vmax.f32 %v921, %v1526
      %v1552 = vmax.f32 %v922, %v1527
      %v1553 = vmax.f32 %v923, %v1528
      %v1554 = vmax.f32 %v924, %v1529
      %v1555 = vmax.f32 %v925, %v1530
      %v1556 = vmax.f32 %v926, %v1531
      %v1557 = vmax.f32 %v927, %v1532
      %v1558 = vmax.f32 %v928, %v1533
      %v1559 = vmax.f32 %v929, %v1534
      %v1560 = vmax.f32 %v930, %v1535
      %v1561 = vmax.f32 %v931, %v1536
      %v1562 = vld [vmem:[%s5] sm:$0x1]
      %v1564 = vlaneseq
      %v1565 = vshrl.u32 %v1564, 7
      %v1566 = vsub.s32 0, %v1565
      %v1567 = vrot.slane %v1562, %v1566
      %v1569 = vadd.f32 %v1537, %v1567
      %v1570 = vadd.f32 %v1538, %v1567
      %v1571 = vadd.f32 %v1539, %v1567
      %v1572 = vadd.f32 %v1540, %v1567
      %v1573 = vadd.f32 %v1541, %v1567
      %v1574 = vadd.f32 %v1542, %v1567
      %v1575 = vadd.f32 %v1543, %v1567
      %v1576 = vadd.f32 %v1544, %v1567
      %v1577 = vadd.f32 %v1545, %v1567
      %v1578 = vadd.f32 %v1546, %v1567
      %v1579 = vadd.f32 %v1547, %v1567
      %v1580 = vadd.f32 %v1548, %v1567
      %v1581 = vadd.f32 %v1549, %v1567
      %v1582 = vadd.f32 %v1550, %v1567
      %v1583 = vadd.f32 %v1551, %v1567
      %v1584 = vadd.f32 %v1552, %v1567
      %v1585 = vadd.f32 %v1553, %v1567
      %v1586 = vadd.f32 %v1554, %v1567
      %v1587 = vadd.f32 %v1555, %v1567
      %v1588 = vadd.f32 %v1556, %v1567
      %v1589 = vadd.f32 %v1557, %v1567
      %v1590 = vadd.f32 %v1558, %v1567
      %v1591 = vadd.f32 %v1559, %v1567
      %v1592 = vadd.f32 %v1560, %v1567
      %v1593 = vadd.f32 %v1561, %v1567
      %v1594 = vmax.f32 %v1569, 0.0
      %v1595 = vmax.f32 %v1570, 0.0
      %v1596 = vmax.f32 %v1571, 0.0
      %v1597 = vmax.f32 %v1572, 0.0
      %v1598 = vmax.f32 %v1573, 0.0
      %v1599 = vmax.f32 %v1574, 0.0
      %v1600 = vmax.f32 %v1575, 0.0
      %v1601 = vmax.f32 %v1576, 0.0
      %v1602 = vmax.f32 %v1577, 0.0
      %v1603 = vmax.f32 %v1578, 0.0
      %v1604 = vmax.f32 %v1579, 0.0
      %v1605 = vmax.f32 %v1580, 0.0
      %v1606 = vmax.f32 %v1581, 0.0
      %v1607 = vmax.f32 %v1582, 0.0
      %v1608 = vmax.f32 %v1583, 0.0
      %v1609 = vmax.f32 %v1584, 0.0
      %v1610 = vmax.f32 %v1585, 0.0
      %v1611 = vmax.f32 %v1586, 0.0
      %v1612 = vmax.f32 %v1587, 0.0
      %v1613 = vmax.f32 %v1588, 0.0
      %v1614 = vmax.f32 %v1589, 0.0
      %v1615 = vmax.f32 %v1590, 0.0
      %v1616 = vmax.f32 %v1591, 0.0
      %v1617 = vmax.f32 %v1592, 0.0
      %v1618 = vmax.f32 %v1593, 0.0
      %1619 = vst [vmem:[%s311] sm:$0xff] %v1594
      %1620 = vst [vmem:[%s311 + $0x8] sm:$0xff] %v1595
      %1621 = vst [vmem:[%s311 + $0x10] sm:$0xff] %v1596
      %1622 = vst [vmem:[%s311 + $0x18] sm:$0xff] %v1597
      %1623 = vst [vmem:[%s311 + $0x20] sm:$0xff] %v1598
      %1624 = vst [vmem:[%s311 + $0x28] sm:$0xff] %v1599
      %1625 = vst [vmem:[%s311 + $0x30] sm:$0xff] %v1600
      %1626 = vst [vmem:[%s311 + $0x38] sm:$0xff] %v1601
      %1627 = vst [vmem:[%s311 + $0x40] sm:$0xff] %v1602
      %1628 = vst [vmem:[%s311 + $0x48] sm:$0xff] %v1603
      %1629 = vst [vmem:[%s311 + $0x50] sm:$0xff] %v1604
      %1630 = vst [vmem:[%s311 + $0x58] sm:$0xff] %v1605
      %1631 = vst [vmem:[%s311 + $0x60] sm:$0xff] %v1606
      %1632 = vst [vmem:[%s311 + $0x68] sm:$0xff] %v1607
      %1633 = vst [vmem:[%s311 + $0x70] sm:$0xff] %v1608
      %1634 = vst [vmem:[%s311 + $0x78] sm:$0xff] %v1609
      %1635 = vst [vmem:[%s311 + $0x80] sm:$0xff] %v1610
      %1636 = vst [vmem:[%s311 + $0x88] sm:$0xff] %v1611
      %1637 = vst [vmem:[%s311 + $0x90] sm:$0xff] %v1612
      %1638 = vst [vmem:[%s311 + $0x98] sm:$0xff] %v1613
      %1639 = vst [vmem:[%s311 + $0xa0] sm:$0xff] %v1614
      %1640 = vst [vmem:[%s311 + $0xa8] sm:$0xff] %v1615
      %1641 = vst [vmem:[%s311 + $0xb0] sm:$0xff] %v1616
      %1642 = vst [vmem:[%s311 + $0xb8] sm:$0xff] %v1617
      %1643 = vst [vmem:[%s311 + $0xc0] sm:$0xf] %v1618
      %p1644 = scmp.lt.s32.totalorder %s17, 1
      %s1645 = scalar_select %p1644, %s17, 1
      %s1646 = smul.addr %s1645, 25
      %s1647 = smul.addr %s1646, 8
      %s1648 = scalar_lea.vmem %s6, %s1647
      // Predicated region
      $region45: #{net_forward.3} parent=43 // pred_check
        %p1649 = pneg %p181
      $region46: #{net_forward.3} parent=43 // pred_check_branch
        %1651 = sbr.rel (%p1649) target = $region48
      $region47: #{net_forward.3} parent=43 // pred_region
        _
      $region48: #{net_forward.3} parent=43 // pred_fallthru
        _
    $region44: #{net_forward.3} parent=5 // pred_fallthru
      _
    %p1652 = scmp.le.s32.totalorder 2, %s12
    // Predicated region
    $region49: #{net_forward.3} parent=5 // pred_check
      %p1653 = pneg %p1652
    $region50: #{net_forward.3} parent=5 // pred_check_branch
      %1655 = sbr.rel (%p1653) target = $region52
    $region51: #{net_forward.3} parent=5 // pred_region
      %s1656 = ssub.s32 %s12, 2
      // Predicated region
      $region53: #{net_forward.3} parent=51 // pred_check
        %p1657 = pneg %p187
      $region54: #{net_forward.3} parent=51 // pred_check_branch
        %1659 = sbr.rel (%p1657) target = $region56
      $region55: #{net_forward.3} parent=51 // pred_region
        %p1660 = scmp.lt.s32.totalorder %s18, 1
        %s1661 = scalar_select %p1660, %s18, 1
        %s1662 = smul.addr %s1661, 25
        %s1663 = smul.addr %s1662, 8
        %s1664 = scalar_lea.vmem %s6, %s1663
      $region56: #{net_forward.3} parent=51 // pred_fallthru
        _
    $region52: #{net_forward.3} parent=5 // pred_fallthru
      _
  $region6: #{net_forward.3} parent=0 // loop_footer
    %s16 = sadd.s32 1, %s12
  $region7: #{net_forward.3} parent=0 // loop_footer_branch
    %11 = sbr.rel target = $region3
  $region8: #{net_forward.3} parent=0 // loop_exit
    _

// kernel: net_forward.5
$region0: #{net_forward.5}
  #allocation0 [shape = 'u32[]', space=smem, size = 0x4, offset = 0x4, fixed_abs, tag = 'smem constant byte address 0x4 - core index']
  #allocation1 [shape = 'u32[144,128]{1,0:T(1,128)}', space=vmem, size = 0x12000, scoped, tag = 'internal scratch']
  %s0 = inlined_call_operand.vmem [shape: f32[2,400], index: 0, kind: input, shape index: {}]
  %s1 = inlined_call_operand.vmem [shape: f32[400,128], index: 1, kind: input, shape index: {}]
  %s2 = inlined_call_operand.vmem [shape: f32[1,128], index: 2, kind: input, shape index: {}]
  %s3 = inlined_call_operand.vmem [shape: f32[128,128], index: 3, kind: input, shape index: {}]
  %s4 = inlined_call_operand.vmem [shape: f32[1,128], index: 4, kind: input, shape index: {}]
  %s5 = inlined_call_operand.vmem [shape: f32[128,128], index: 5, kind: input, shape index: {}]
  %s6 = inlined_call_operand.vmem [shape: f32[1,128], index: 6, kind: input, shape index: {}]
  %s7 = inlined_call_operand.hbm [shape: f32[2,128], index: 7, kind: output, shape index: {}]
  %s8 = sld [smem:[#allocation0]]
  $region38: #{net_forward.5} parent=0
    _
  %s10 = ssub.s32 1, %s8
  %s11 = scalar_select 0, %s10, %s8
  $region1: #{net_forward.5} parent=0
    #allocation2 [shape = 'u8[1024]{0}', space=vmem, size = 0x400, scoped, tag = 'output window, operand 0, single buffered']
    #allocation3 [shape = 's32[1]{0}', space=sflag, size = 0x4, scoped, tag = 'scoped memory for net_forward.5']
    %12 = vsyncpa [#allocation3], 0
    // Predicated region
    $region2: #{net_forward.5} parent=1 // pred_check
      _
    $region3: #{net_forward.5} parent=1 // pred_check_branch
      %14 = sbr.rel (0) target = $region5
    $region4: #{net_forward.5} parent=1 // pred_region
      _
    $region5: #{net_forward.5} parent=1 // pred_fallthru
      _
    // Predicated region
    $region6: #{net_forward.5} parent=1 // pred_check
      _
    $region7: #{net_forward.5} parent=1 // pred_check_branch
      %16 = sbr.rel (0) target = $region9
    $region8: #{net_forward.5} parent=1 // pred_region
      _
    $region9: #{net_forward.5} parent=1 // pred_fallthru
      _
    // Predicated region
    $region10: #{net_forward.5} parent=1 // pred_check
      _
    $region11: #{net_forward.5} parent=1 // pred_check_branch
      %18 = sbr.rel (0) target = $region13
    $region12: #{net_forward.5} parent=1 // pred_region
      _
    $region13: #{net_forward.5} parent=1 // pred_fallthru
      _
    // Predicated region
    $region14: #{net_forward.5} parent=1 // pred_check
      _
    $region15: #{net_forward.5} parent=1 // pred_check_branch
      %20 = sbr.rel (0) target = $region17
    $region16: #{net_forward.5} parent=1 // pred_region
      _
    $region17: #{net_forward.5} parent=1 // pred_fallthru
      _
    // Predicated region
    $region18: #{net_forward.5} parent=1 // pred_check
      _
    $region19: #{net_forward.5} parent=1 // pred_check_branch
      %22 = sbr.rel (0) target = $region21
    $region20: #{net_forward.5} parent=1 // pred_region
      _
    $region21: #{net_forward.5} parent=1 // pred_fallthru
      _
    // Predicated region
    $region22: #{net_forward.5} parent=1 // pred_check
      _
    $region23: #{net_forward.5} parent=1 // pred_check_branch
      %24 = sbr.rel (0) target = $region25
    $region24: #{net_forward.5} parent=1 // pred_region
      _
    $region25: #{net_forward.5} parent=1 // pred_fallthru
      _
    // Predicated region
    $region26: #{net_forward.5} parent=1 // pred_check
      _
    $region27: #{net_forward.5} parent=1 // pred_check_branch
      %26 = sbr.rel (0) target = $region29
    $region28: #{net_forward.5} parent=1 // pred_region
      _
    $region29: #{net_forward.5} parent=1 // pred_fallthru
      _
    %v27 = vld [vmem:[%s0] sm:$0xff]
    %v28 = vld [vmem:[%s1] sm:$0xff]
    %v29 = vld [vmem:[%s1 + $0x8] sm:$0xff]
    %v30 = vld [vmem:[%s1 + $0x10] sm:$0xff]
    %v31 = vld [vmem:[%s1 + $0x18] sm:$0xff]
    %v32 = vld [vmem:[%s1 + $0x20] sm:$0xff]
    %v33 = vld [vmem:[%s1 + $0x28] sm:$0xff]
    %v34 = vld [vmem:[%s1 + $0x30] sm:$0xff]
    %v35 = vld [vmem:[%s1 + $0x38] sm:$0xff]
    %v36 = vld [vmem:[%s1 + $0x40] sm:$0xff]
    %v37 = vld [vmem:[%s1 + $0x48] sm:$0xff]
    %v38 = vld [vmem:[%s1 + $0x50] sm:$0xff]
    %v39 = vld [vmem:[%s1 + $0x58] sm:$0xff]
    %v40 = vld [vmem:[%s1 + $0x60] sm:$0xff]
    %v41 = vld [vmem:[%s1 + $0x68] sm:$0xff]
    %v42 = vld [vmem:[%s1 + $0x70] sm:$0xff]
    %v43 = vld [vmem:[%s1 + $0x78] sm:$0xff]
    %v44 = vld [vmem:[%s1 + $0x80] sm:$0xff]
    %v45 = vld [vmem:[%s1 + $0x88] sm:$0xff]
    %v46 = vld [vmem:[%s1 + $0x90] sm:$0xff]
    %v47 = vld [vmem:[%s1 + $0x98] sm:$0xff]
    %v48 = vld [vmem:[%s1 + $0xa0] sm:$0xff]
    %v49 = vld [vmem:[%s1 + $0xa8] sm:$0xff]
    %v50 = vld [vmem:[%s1 + $0xb0] sm:$0xff]
    %v51 = vld [vmem:[%s1 + $0xb8] sm:$0xff]
    %v52 = vld [vmem:[%s1 + $0xc0] sm:$0xff]
    %v53 = vld [vmem:[%s1 + $0xc8] sm:$0xff]
    %v54 = vld [vmem:[%s1 + $0xd0] sm:$0xff]
    %v55 = vld [vmem:[%s1 + $0xd8] sm:$0xff]
    %v56 = vld [vmem:[%s1 + $0xe0] sm:$0xff]
    %v57 = vld [vmem:[%s1 + $0xe8] sm:$0xff]
    %v58 = vld [vmem:[%s1 + $0xf0] sm:$0xff]
    %v59 = vld [vmem:[%s1 + $0xf8] sm:$0xff]
    %v60 = vld [vmem:[%s1 + $0x100] sm:$0xff]
    %v61 = vld [vmem:[%s1 + $0x108] sm:$0xff]
    %v62 = vld [vmem:[%s1 + $0x110] sm:$0xff]
    %v63 = vld [vmem:[%s1 + $0x118] sm:$0xff]
    %v64 = vld [vmem:[%s1 + $0x120] sm:$0xff]
    %v65 = vld [vmem:[%s1 + $0x128] sm:$0xff]
    %v66 = vld [vmem:[%s1 + $0x130] sm:$0xff]
    %v67 = vld [vmem:[%s1 + $0x138] sm:$0xff]
    %v68 = vld [vmem:[%s1 + $0x140] sm:$0xff]
    %v69 = vld [vmem:[%s1 + $0x148] sm:$0xff]
    %v70 = vld [vmem:[%s1 + $0x150] sm:$0xff]
    %v71 = vld [vmem:[%s1 + $0x158] sm:$0xff]
    %v72 = vld [vmem:[%s1 + $0x160] sm:$0xff]
    %v73 = vld [vmem:[%s1 + $0x168] sm:$0xff]
    %v74 = vld [vmem:[%s1 + $0x170] sm:$0xff]
    %v75 = vld [vmem:[%s1 + $0x178] sm:$0xff]
    %v76 = vld [vmem:[%s1 + $0x180] sm:$0xff]
    %v77 = vld [vmem:[%s1 + $0x188] sm:$0xff]
    %v78 = vld [vmem:[%s2] sm:$0x1]
    %v80 = vlaneseq
    %v81 = vshrl.u32 %v80, 7
    %v82 = vsub.s32 0, %v81
    %v83 = vrot.slane %v78, %v82
    %v86 = vcombine.high %v27, %v27
    %v88 = vunpack.c.l.s4 1983009808
    %v89 = vunpack.c.0.s8 %v88
    %v90 = vlaneseq
    %v91 = vshrl.u32 %v90, 7
    %v92 = vsub.s32 %v89, %v91
    %v93 = vrot.slane %v27, %v92
    %v95 = vunpack.c.l.s4 1983009808
    %v96 = vunpack.c.0.s8 %v95
    %v97 = vlaneseq
    %v98 = vshrl.u32 %v97, 7
    %v99 = vsub.s32 %v96, %v98
    %v100 = vrot.slane %v86, %v99
    %v101 = vcombine.high %v93, %v93
    %v102 = vcombine.high %v100, %v100
    %vm106 = vcmask 130048
    %v107 = vsel %vm106, %v102, 0
    %109 = vmatprep.subr.mxu0 0.0
    %110 = vmatpush1.msra.mxu0 %v28
    %111 = vmatprep.subr.mxu0 0.0
    %112 = vmatpush1.msra.mxu0 %v29
    %113 = vmatprep.subr.mxu0 0.0
    %114 = vmatpush1.msra.mxu0 %v30
    %115 = vmatprep.subr.mxu0 0.0
    %116 = vmatpush1.msra.mxu0 %v31
    %117 = vmatprep.subr.mxu0 0.0
    %118 = vmatpush1.msra.mxu0 %v32
    %119 = vmatprep.subr.mxu0 0.0
    %120 = vmatpush1.msra.mxu0 %v33
    %121 = vmatprep.subr.mxu0 0.0
    %122 = vmatpush1.msra.mxu0 %v34
    %123 = vmatprep.subr.mxu0 0.0
    %124 = vmatpush1.msra.mxu0 %v35
    %125 = vmatprep.subr.mxu0 0.0
    %126 = vmatpush1.msra.mxu0 %v36
    %127 = vmatprep.subr.mxu0 0.0
    %128 = vmatpush1.msra.mxu0 %v37
    %129 = vmatprep.subr.mxu0 0.0
    %130 = vmatpush1.msra.mxu0 %v38
    %131 = vmatprep.subr.mxu0 0.0
    %132 = vmatpush1.msra.mxu0 %v39
    %133 = vmatprep.subr.mxu0 0.0
    %134 = vmatpush1.msra.mxu0 %v40
    %135 = vmatprep.subr.mxu0 0.0
    %136 = vmatpush1.msra.mxu0 %v41
    %137 = vmatprep.subr.mxu0 0.0
    %138 = vmatpush1.msra.mxu0 %v42
    %139 = vmatprep.subr.mxu0 0.0
    %140 = vmatpush1.msra.mxu0 %v43
    %141 = vmatprep.subr.mxu0 0.0
    %142 = vmatpush1.msra.mxu0 %v44
    %143 = vmatprep.subr.mxu0 0.0
    %144 = vmatpush1.msra.mxu0 %v45
    %145 = vmatprep.subr.mxu0 0.0
    %146 = vmatpush1.msra.mxu0 %v46
    %147 = vmatprep.subr.mxu0 0.0
    %148 = vmatpush1.msra.mxu0 %v47
    %149 = vmatprep.subr.mxu0 0.0
    %150 = vmatpush1.msra.mxu0 %v48
    %151 = vmatprep.subr.mxu0 0.0
    %152 = vmatpush1.msra.mxu0 %v49
    %153 = vmatprep.subr.mxu0 0.0
    %154 = vmatpush1.msra.mxu0 %v50
    %155 = vmatprep.subr.mxu0 0.0
    %156 = vmatpush1.msra.mxu0 %v51
    %157 = vmatprep.subr.mxu0 0.0
    %158 = vmatpush1.msra.mxu0 %v52
    %159 = vmatprep.subr.mxu0 0.0
    %160 = vmatpush1.msra.mxu0 %v53
    %161 = vmatprep.subr.mxu0 0.0
    %162 = vmatpush1.msra.mxu0 %v54
    %163 = vmatprep.subr.mxu0 0.0
    %164 = vmatpush1.msra.mxu0 %v55
    %165 = vmatprep.subr.mxu0 0.0
    %166 = vmatpush1.msra.mxu0 %v56
    %167 = vmatprep.subr.mxu0 0.0
    %168 = vmatpush1.msra.mxu0 %v57
    %169 = vmatprep.subr.mxu0 0.0
    %170 = vmatpush1.msra.mxu0 %v58
    %171 = vmatprep.subr.mxu0 0.0
    %172 = vmatpush1.msra.mxu0 %v59
    %173 = vmatprep.mubr.f32.mxu0 %v101
    %174 = vmatmul.mubr.f32.gmra.mrb[0].mxu0 %v93
    %v175 = vpop.f32.mrb[0].mxu0
    %v176 = vadd.f32 %v83, %v175
    %v177 = vpop.f32.mrb[0].mxu0
    %178 = vdwg.mxu0
    %179 = vmatprep.subr.mxu0 0.0
    %180 = vmatpush1.msra.mxu0 %v60
    %181 = vmatprep.subr.mxu0 0.0
    %182 = vmatpush1.msra.mxu0 %v61
    %183 = vmatprep.subr.mxu0 0.0
    %184 = vmatpush1.msra.mxu0 %v62
    %185 = vmatprep.subr.mxu0 0.0
    %186 = vmatpush1.msra.mxu0 %v63
    %187 = vmatprep.subr.mxu0 0.0
    %188 = vmatpush1.msra.mxu0 %v64
    %189 = vmatprep.subr.mxu0 0.0
    %190 = vmatpush1.msra.mxu0 %v65
    %191 = vmatprep.subr.mxu0 0.0
    %192 = vmatpush1.msra.mxu0 %v66
    %193 = vmatprep.subr.mxu0 0.0
    %194 = vmatpush1.msra.mxu0 %v67
    %195 = vmatprep.subr.mxu0 0.0
    %196 = vmatpush1.msra.mxu0 %v68
    %197 = vmatprep.subr.mxu0 0.0
    %198 = vmatpush1.msra.mxu0 %v69
    %199 = vmatprep.subr.mxu0 0.0
    %200 = vmatpush1.msra.mxu0 %v70
    %201 = vmatprep.subr.mxu0 0.0
    %202 = vmatpush1.msra.mxu0 %v71
    %203 = vmatprep.subr.mxu0 0.0
    %204 = vmatpush1.msra.mxu0 %v72
    %205 = vmatprep.subr.mxu0 0.0
    %206 = vmatpush1.msra.mxu0 %v73
    %207 = vmatprep.subr.mxu0 0.0
    %208 = vmatpush1.msra.mxu0 %v74
    %209 = vmatprep.subr.mxu0 0.0
    %210 = vmatpush1.msra.mxu0 %v75
    %211 = vmatprep.subr.mxu0 0.0
    %212 = vmatpush1.msra.mxu0 %v76
    %213 = vmatprep.subr.mxu0 0.0
    %214 = vmatpush1.msra.mxu0 %v77
    %215 = vmatprep.subr.mxu0 0.0
    %216 = vmatpush1.msra.mxu0 0.0
    %217 = vmatprep.subr.mxu0 0.0
    %218 = vmatpush1.msra.mxu0 0.0
    %219 = vmatprep.subr.mxu0 0.0
    %220 = vmatpush1.msra.mxu0 0.0
    %221 = vmatprep.subr.mxu0 0.0
    %222 = vmatpush1.msra.mxu0 0.0
    %223 = vmatprep.subr.mxu0 0.0
    %224 = vmatpush1.msra.mxu0 0.0
    %225 = vmatprep.subr.mxu0 0.0
    %226 = vmatpush1.msra.mxu0 0.0
    %227 = vmatprep.subr.mxu0 0.0
    %228 = vmatpush1.msra.mxu0 0.0
    %229 = vmatprep.subr.mxu0 0.0
    %230 = vmatpush1.msra.mxu0 0.0
    %231 = vmatprep.subr.mxu0 0.0
    %232 = vmatpush1.msra.mxu0 0.0
    %233 = vmatprep.subr.mxu0 0.0
    %234 = vmatpush1.msra.mxu0 0.0
    %235 = vmatprep.subr.mxu0 0.0
    %236 = vmatpush1.msra.mxu0 0.0
    %237 = vmatprep.subr.mxu0 0.0
    %238 = vmatpush1.msra.mxu0 0.0
    %239 = vmatprep.subr.mxu0 0.0
    %240 = vmatpush1.msra.mxu0 0.0
    %241 = vmatprep.subr.mxu0 0.0
    %242 = vmatpush1.msra.mxu0 0.0
    %243 = vmatprep.mubr.f32.mxu0 %v107
    %244 = vmatmul.mubr.f32.gmra.mrb[0].mxu0 %v100
    %v245 = vpop.f32.mrb[0].mxu0
    %v246 = vadd.f32 %v176, %v245
    %v247 = vpop.f32.mrb[0].mxu0
    %248 = vdwg.mxu0
    %v249 = vmax.f32 %v246, 0.0
    %v250 = vld [vmem:[%s3] sm:$0xff]
    %v251 = vld [vmem:[%s3 + $0x8] sm:$0xff]
    %v252 = vld [vmem:[%s3 + $0x10] sm:$0xff]
    %v253 = vld [vmem:[%s3 + $0x18] sm:$0xff]
    %v254 = vld [vmem:[%s3 + $0x20] sm:$0xff]
    %v255 = vld [vmem:[%s3 + $0x28] sm:$0xff]
    %v256 = vld [vmem:[%s3 + $0x30] sm:$0xff]
    %v257 = vld [vmem:[%s3 + $0x38] sm:$0xff]
    %v258 = vld [vmem:[%s3 + $0x40] sm:$0xff]
    %v259 = vld [vmem:[%s3 + $0x48] sm:$0xff]
    %v260 = vld [vmem:[%s3 + $0x50] sm:$0xff]
    %v261 = vld [vmem:[%s3 + $0x58] sm:$0xff]
    %v262 = vld [vmem:[%s3 + $0x60] sm:$0xff]
    %v263 = vld [vmem:[%s3 + $0x68] sm:$0xff]
    %v264 = vld [vmem:[%s3 + $0x70] sm:$0xff]
    %v265 = vld [vmem:[%s3 + $0x78] sm:$0xff]
    %v266 = vld [vmem:[%s4] sm:$0x1]
    %v268 = vlaneseq
    %v269 = vshrl.u32 %v268, 7
    %v270 = vsub.s32 0, %v269
    %v271 = vrot.slane %v266, %v270
    %273 = vmatprep.subr.mxu0 0.0
    %274 = vmatpush1.msra.mxu0 %v250
    %275 = vmatprep.subr.mxu0 0.0
    %276 = vmatpush1.msra.mxu0 %v251
    %277 = vmatprep.subr.mxu0 0.0
    %278 = vmatpush1.msra.mxu0 %v252
    %279 = vmatprep.subr.mxu0 0.0
    %280 = vmatpush1.msra.mxu0 %v253
    %281 = vmatprep.subr.mxu0 0.0
    %282 = vmatpush1.msra.mxu0 %v254
    %283 = vmatprep.subr.mxu0 0.0
    %284 = vmatpush1.msra.mxu0 %v255
    %285 = vmatprep.subr.mxu0 0.0
    %286 = vmatpush1.msra.mxu0 %v256
    %287 = vmatprep.subr.mxu0 0.0
    %288 = vmatpush1.msra.mxu0 %v257
    %289 = vmatprep.subr.mxu0 0.0
    %290 = vmatpush1.msra.mxu0 %v258
    %291 = vmatprep.subr.mxu0 0.0
    %292 = vmatpush1.msra.mxu0 %v259
    %293 = vmatprep.subr.mxu0 0.0
    %294 = vmatpush1.msra.mxu0 %v260
    %295 = vmatprep.subr.mxu0 0.0
    %296 = vmatpush1.msra.mxu0 %v261
    %297 = vmatprep.subr.mxu0 0.0
    %298 = vmatpush1.msra.mxu0 %v262
    %299 = vmatprep.subr.mxu0 0.0
    %300 = vmatpush1.msra.mxu0 %v263
    %301 = vmatprep.subr.mxu0 0.0
    %302 = vmatpush1.msra.mxu0 %v264
    %303 = vmatprep.subr.mxu0 0.0
    %304 = vmatpush1.msra.mxu0 %v265
    %305 = vmatprep.subr.mxu0 0.0
    %306 = vmatpush1.msra.mxu0 0.0
    %307 = vmatprep.subr.mxu0 0.0
    %308 = vmatpush1.msra.mxu0 0.0
    %309 = vmatprep.subr.mxu0 0.0
    %310 = vmatpush1.msra.mxu0 0.0
    %311 = vmatprep.subr.mxu0 0.0
    %312 = vmatpush1.msra.mxu0 0.0
    %313 = vmatprep.subr.mxu0 0.0
    %314 = vmatpush1.msra.mxu0 0.0
    %315 = vmatprep.subr.mxu0 0.0
    %316 = vmatpush1.msra.mxu0 0.0
    %317 = vmatprep.subr.mxu0 0.0
    %318 = vmatpush1.msra.mxu0 0.0
    %319 = vmatprep.subr.mxu0 0.0
    %320 = vmatpush1.msra.mxu0 0.0
    %321 = vmatprep.subr.mxu0 0.0
    %322 = vmatpush1.msra.mxu0 0.0
    %323 = vmatprep.subr.mxu0 0.0
    %324 = vmatpush1.msra.mxu0 0.0
    %325 = vmatprep.subr.mxu0 0.0
    %326 = vmatpush1.msra.mxu0 0.0
    %327 = vmatprep.subr.mxu0 0.0
    %328 = vmatpush1.msra.mxu0 0.0
    %329 = vmatprep.subr.mxu0 0.0
    %330 = vmatpush1.msra.mxu0 0.0
    %331 = vmatprep.subr.mxu0 0.0
    %332 = vmatpush1.msra.mxu0 0.0
    %333 = vmatprep.subr.mxu0 0.0
    %334 = vmatpush1.msra.mxu0 0.0
    %335 = vmatprep.subr.mxu0 0.0
    %336 = vmatpush1.msra.mxu0 0.0
    %337 = vmatprep.mubr.f32.mxu0 0.0
    %338 = vmatmul.mubr.f32.gmra.mrb[0].mxu0 %v249
    %v339 = vpop.f32.mrb[0].mxu0
    %v340 = vadd.f32 %v271, %v339
    %v341 = vpop.f32.mrb[0].mxu0
    %342 = vdwg.mxu0
    %v343 = vmax.f32 %v340, 0.0
    %v344 = vld [vmem:[%s5] sm:$0xff]
    %v345 = vld [vmem:[%s5 + $0x8] sm:$0xff]
    %v346 = vld [vmem:[%s5 + $0x10] sm:$0xff]
    %v347 = vld [vmem:[%s5 + $0x18] sm:$0xff]
    %v348 = vld [vmem:[%s5 + $0x20] sm:$0xff]
    %v349 = vld [vmem:[%s5 + $0x28] sm:$0xff]
    %v350 = vld [vmem:[%s5 + $0x30] sm:$0xff]
    %v351 = vld [vmem:[%s5 + $0x38] sm:$0xff]
    %v352 = vld [vmem:[%s5 + $0x40] sm:$0xff]
    %v353 = vld [vmem:[%s5 + $0x48] sm:$0xff]
    %v354 = vld [vmem:[%s5 + $0x50] sm:$0xff]
    %v355 = vld [vmem:[%s5 + $0x58] sm:$0xff]
    %v356 = vld [vmem:[%s5 + $0x60] sm:$0xff]
    %v357 = vld [vmem:[%s5 + $0x68] sm:$0xff]
    %v358 = vld [vmem:[%s5 + $0x70] sm:$0xff]
    %v359 = vld [vmem:[%s5 + $0x78] sm:$0xff]
    %v360 = vld [vmem:[%s6] sm:$0x1]
    %v362 = vlaneseq
    %v363 = vshrl.u32 %v362, 7
    %v364 = vsub.s32 0, %v363
    %v365 = vrot.slane %v360, %v364
    %367 = vmatprep.subr.mxu0 0.0
    %368 = vmatpush1.msra.mxu0 %v344
    %369 = vmatprep.subr.mxu0 0.0
    %370 = vmatpush1.msra.mxu0 %v345
    %371 = vmatprep.subr.mxu0 0.0
    %372 = vmatpush1.msra.mxu0 %v346
    %373 = vmatprep.subr.mxu0 0.0
    %374 = vmatpush1.msra.mxu0 %v347
    %375 = vmatprep.subr.mxu0 0.0
    %376 = vmatpush1.msra.mxu0 %v348
    %377 = vmatprep.subr.mxu0 0.0
    %378 = vmatpush1.msra.mxu0 %v349
    %379 = vmatprep.subr.mxu0 0.0
    %380 = vmatpush1.msra.mxu0 %v350
    %381 = vmatprep.subr.mxu0 0.0
    %382 = vmatpush1.msra.mxu0 %v351
    %383 = vmatprep.subr.mxu0 0.0
    %384 = vmatpush1.msra.mxu0 %v352
    %385 = vmatprep.subr.mxu0 0.0
    %386 = vmatpush1.msra.mxu0 %v353
    %387 = vmatprep.subr.mxu0 0.0
    %388 = vmatpush1.msra.mxu0 %v354
    %389 = vmatprep.subr.mxu0 0.0
    %390 = vmatpush1.msra.mxu0 %v355
    %391 = vmatprep.subr.mxu0 0.0
    %392 = vmatpush1.msra.mxu0 %v356
    %393 = vmatprep.subr.mxu0 0.0
    %394 = vmatpush1.msra.mxu0 %v357
    %395 = vmatprep.subr.mxu0 0.0
    %396 = vmatpush1.msra.mxu0 %v358
    %397 = vmatprep.subr.mxu0 0.0
    %398 = vmatpush1.msra.mxu0 %v359
    %399 = vmatprep.subr.mxu0 0.0
    %400 = vmatpush1.msra.mxu0 0.0
    %401 = vmatprep.subr.mxu0 0.0
    %402 = vmatpush1.msra.mxu0 0.0
    %403 = vmatprep.subr.mxu0 0.0
    %404 = vmatpush1.msra.mxu0 0.0
    %405 = vmatprep.subr.mxu0 0.0
    %406 = vmatpush1.msra.mxu0 0.0
    %407 = vmatprep.subr.mxu0 0.0
    %408 = vmatpush1.msra.mxu0 0.0
    %409 = vmatprep.subr.mxu0 0.0
    %410 = vmatpush1.msra.mxu0 0.0
    %411 = vmatprep.subr.mxu0 0.0
    %412 = vmatpush1.msra.mxu0 0.0
    %413 = vmatprep.subr.mxu0 0.0
    %414 = vmatpush1.msra.mxu0 0.0
    %415 = vmatprep.subr.mxu0 0.0
    %416 = vmatpush1.msra.mxu0 0.0
    %417 = vmatprep.subr.mxu0 0.0
    %418 = vmatpush1.msra.mxu0 0.0
    %419 = vmatprep.subr.mxu0 0.0
    %420 = vmatpush1.msra.mxu0 0.0
    %421 = vmatprep.subr.mxu0 0.0
    %422 = vmatpush1.msra.mxu0 0.0
    %423 = vmatprep.subr.mxu0 0.0
    %424 = vmatpush1.msra.mxu0 0.0
    %425 = vmatprep.subr.mxu0 0.0
    %426 = vmatpush1.msra.mxu0 0.0
    %427 = vmatprep.subr.mxu0 0.0
    %428 = vmatpush1.msra.mxu0 0.0
    %429 = vmatprep.subr.mxu0 0.0
    %430 = vmatpush1.msra.mxu0 0.0
    %431 = vmatprep.mubr.f32.mxu0 0.0
    %432 = vmatmul.mubr.f32.gmra.mrb[0].mxu0 %v343
    %v433 = vpop.f32.mrb[0].mxu0
    %v434 = vadd.f32 %v365, %v433
    %v435 = vpop.f32.mrb[0].mxu0
    %436 = vdwg.mxu0
    %437 = vst [vmem:[#allocation2] sm:$0x3] %v434
    // Predicated region
    $region30: #{net_forward.5} parent=1 // pred_check
      _
    $region31: #{net_forward.5} parent=1 // pred_check_branch
      %439 = sbr.rel (0) target = $region33
    $region32: #{net_forward.5} parent=1 // pred_region
      %s441 = ssub.s32 32, 32
      %442 = vsyncadd [#allocation3], %s441
      %s444 = sshll.u32 [#allocation2], 4
      %s445 = int_to_ptr.vmem [resolvable:$true] %s444
      %447 = dma.vmem_to_hbm [thread:$0]  %s445, 32, %s7, [#allocation3]
    $region33: #{net_forward.5} parent=1 // pred_fallthru
      _
    // Predicated region
    $region34: #{net_forward.5} parent=1 // pred_check
      _
    $region35: #{net_forward.5} parent=1 // pred_check_branch
      %449 = sbr.rel (0) target = $region37
    $region36: #{net_forward.5} parent=1 // pred_region
      %450 = dma.done [#allocation3], 32
    $region37: #{net_forward.5} parent=1 // pred_fallthru
      _
    %451 = vsyncpa [#allocation3], 1

// kernel: net_forward.4
$region0: #{net_forward.4}
  #allocation0 [shape = 'u32[]', space=smem, size = 0x4, offset = 0x4, fixed_abs, tag = 'smem constant byte address 0x4 - core index']
  #allocation1 [shape = 'u32[144,128]{1,0:T(1,128)}', space=vmem, size = 0x12000, scoped, tag = 'internal scratch']
  %s0 = inlined_call_operand.vmem [shape: f32[2,25,150], index: 0, kind: input, shape index: {}]
  %s1 = inlined_call_operand.vmem [shape: f32[2,25,150], index: 1, kind: input, shape index: {}]
  %s2 = inlined_call_operand.vmem [shape: f32[2,25,150], index: 2, kind: input, shape index: {}]
  %s3 = inlined_call_operand.vmem [shape: f32[2,25,150], index: 3, kind: input, shape index: {}]
  %s4 = inlined_call_operand.vmem [shape: f32[150,128], index: 4, kind: input, shape index: {}]
  %s5 = inlined_call_operand.vmem [shape: f32[1,128], index: 5, kind: input, shape index: {}]
  %s6 = inlined_call_operand.vmem [shape: f32[2,25,128], index: 6, kind: output, shape index: {}]
  %s7 = sld [smem:[#allocation0]]
  $region57: #{net_forward.4} parent=0
    _
  %s9 = ssub.s32 1, %s7
  %s10 = scalar_select 0, %s9, %s7
  loop: start=0, step=1, limit=4
  $region2: #{net_forward.4} parent=0 // loop_pre_header
    _
  $region3: #{net_forward.4} parent=0 // loop_header
    %s12 = sphi 0, %s16
    %p13 = scmp.ge.s32.totalorder %s12, 4
    %s22 = sphi 0, %s24
    %s25 = sphi 0, %s22
    %s26 = sphi 0, %s25
    %s42 = sphi 0, %s26
    %s48 = sphi 0, %s50
    %s51 = sphi 0, %s48
    %s52 = sphi 0, %s51
    %s68 = sphi 0, %s52
    %s74 = sphi 0, %s76
    %s77 = sphi 0, %s74
    %s78 = sphi 0, %s77
    %s94 = sphi 0, %s78
    %s100 = sphi 0, %s102
    %s103 = sphi 0, %s100
    %s104 = sphi 0, %s103
    %s120 = sphi 0, %s104
    %s124 = sphi 0, %s124
    %s126 = sphi 0, %s124
    %s127 = sphi 0, %s126
    %s141 = sphi 0, %s127
    %s145 = sphi 0, %s145
    %s147 = sphi 0, %s145
    %s148 = sphi 0, %s147
    %s162 = sphi 0, %s148
    %s168 = sphi 0, %s170
    %s171 = sphi 0, %s168
    %s172 = sphi 0, %s171
    %s188 = sphi 0, %s172
  $region4: #{net_forward.4} parent=0 // loop_header_branch
    %15 = sbr.rel (%p13) target = $region8
  $region5: #{net_forward.4} parent=0 // loop_body
    %s17 = ssub.s32 %s12, 1
    %s18 = ssub.s32 %s12, 2
    %s19 = sadd.s32 %s12, 1
    %s20 = ssub.s32 %s12, %s19
    %p21 = scmp.eq.s32.totalorder %s20, 0
    %s23 = sadd.s32 %s22, 1
    %s24 = scalar_select %p21, %s22, %s23
    %p27 = pneg %p21
    %p28 = scmp.eq.s32.totalorder %s12, 1
    %p29 = por %p27, %p28
    %p30 = scmp.ne.s32.totalorder %s22, %s25
    %p31 = scmp.eq.s32.totalorder %s12, 0
    %p32 = por %p30, %p31
    %p33 = scmp.ne.s32.totalorder %s22, %s25
    %p34 = scmp.eq.s32.totalorder %s17, 1
    %p35 = por %p33, %p34
    %p36 = scmp.ne.s32.totalorder %s25, %s26
    %p37 = scmp.eq.s32.totalorder %s17, 0
    %p38 = por %p36, %p37
    %p39 = scmp.ne.s32.totalorder %s25, %s26
    %p40 = scmp.eq.s32.totalorder %s18, 1
    %p41 = por %p39, %p40
    %p43 = scmp.ne.s32.totalorder %s26, %s42
    %p44 = scmp.eq.s32.totalorder %s18, 0
    %p45 = por %p43, %p44
    %s46 = ssub.s32 %s12, %s19
    %p47 = scmp.eq.s32.totalorder %s46, 0
    %s49 = sadd.s32 %s48, 1
    %s50 = scalar_select %p47, %s48, %s49
    %p53 = pneg %p47
    %p54 = scmp.eq.s32.totalorder %s12, 1
    %p55 = por %p53, %p54
    %p56 = scmp.ne.s32.totalorder %s48, %s51
    %p57 = scmp.eq.s32.totalorder %s12, 0
    %p58 = por %p56, %p57
    %p59 = scmp.ne.s32.totalorder %s48, %s51
    %p60 = scmp.eq.s32.totalorder %s17, 1
    %p61 = por %p59, %p60
    %p62 = scmp.ne.s32.totalorder %s51, %s52
    %p63 = scmp.eq.s32.totalorder %s17, 0
    %p64 = por %p62, %p63
    %p65 = scmp.ne.s32.totalorder %s51, %s52
    %p66 = scmp.eq.s32.totalorder %s18, 1
    %p67 = por %p65, %p66
    %p69 = scmp.ne.s32.totalorder %s52, %s68
    %p70 = scmp.eq.s32.totalorder %s18, 0
    %p71 = por %p69, %p70
    %s72 = ssub.s32 %s12, %s19
    %p73 = scmp.eq.s32.totalorder %s72, 0
    %s75 = sadd.s32 %s74, 1
    %s76 = scalar_select %p73, %s74, %s75
    %p79 = pneg %p73
    %p80 = scmp.eq.s32.totalorder %s12, 1
    %p81 = por %p79, %p80
    %p82 = scmp.ne.s32.totalorder %s74, %s77
    %p83 = scmp.eq.s32.totalorder %s12, 0
    %p84 = por %p82, %p83
    %p85 = scmp.ne.s32.totalorder %s74, %s77
    %p86 = scmp.eq.s32.totalorder %s17, 1
    %p87 = por %p85, %p86
    %p88 = scmp.ne.s32.totalorder %s77, %s78
    %p89 = scmp.eq.s32.totalorder %s17, 0
    %p90 = por %p88, %p89
    %p91 = scmp.ne.s32.totalorder %s77, %s78
    %p92 = scmp.eq.s32.totalorder %s18, 1
    %p93 = por %p91, %p92
    %p95 = scmp.ne.s32.totalorder %s78, %s94
    %p96 = scmp.eq.s32.totalorder %s18, 0
    %p97 = por %p95, %p96
    %s98 = ssub.s32 %s12, %s19
    %p99 = scmp.eq.s32.totalorder %s98, 0
    %s101 = sadd.s32 %s100, 1
    %s102 = scalar_select %p99, %s100, %s101
    %p105 = pneg %p99
    %p106 = scmp.eq.s32.totalorder %s12, 1
    %p107 = por %p105, %p106
    %p108 = scmp.ne.s32.totalorder %s100, %s103
    %p109 = scmp.eq.s32.totalorder %s12, 0
    %p110 = por %p108, %p109
    %p111 = scmp.ne.s32.totalorder %s100, %s103
    %p112 = scmp.eq.s32.totalorder %s17, 1
    %p113 = por %p111, %p112
    %p114 = scmp.ne.s32.totalorder %s103, %s104
    %p115 = scmp.eq.s32.totalorder %s17, 0
    %p116 = por %p114, %p115
    %p117 = scmp.ne.s32.totalorder %s103, %s104
    %p118 = scmp.eq.s32.totalorder %s18, 1
    %p119 = por %p117, %p118
    %p121 = scmp.ne.s32.totalorder %s104, %s120
    %p122 = scmp.eq.s32.totalorder %s18, 0
    %p123 = por %p121, %p122
    %s125 = sadd.s32 %s124, 1
    %p128 = scmp.eq.s32.totalorder %s12, 1
    %p129 = scmp.ne.s32.totalorder %s124, %s126
    %p130 = scmp.eq.s32.totalorder %s12, 0
    %p131 = por %p129, %p130
    %p132 = scmp.ne.s32.totalorder %s124, %s126
    %p133 = scmp.eq.s32.totalorder %s17, 1
    %p134 = por %p132, %p133
    %p135 = scmp.ne.s32.totalorder %s126, %s127
    %p136 = scmp.eq.s32.totalorder %s17, 0
    %p137 = por %p135, %p136
    %p138 = scmp.ne.s32.totalorder %s126, %s127
    %p139 = scmp.eq.s32.totalorder %s18, 1
    %p140 = por %p138, %p139
    %p142 = scmp.ne.s32.totalorder %s127, %s141
    %p143 = scmp.eq.s32.totalorder %s18, 0
    %p144 = por %p142, %p143
    %s146 = sadd.s32 %s145, 1
    %p149 = scmp.eq.s32.totalorder %s12, 1
    %p150 = scmp.ne.s32.totalorder %s145, %s147
    %p151 = scmp.eq.s32.totalorder %s12, 0
    %p152 = por %p150, %p151
    %p153 = scmp.ne.s32.totalorder %s145, %s147
    %p154 = scmp.eq.s32.totalorder %s17, 1
    %p155 = por %p153, %p154
    %p156 = scmp.ne.s32.totalorder %s147, %s148
    %p157 = scmp.eq.s32.totalorder %s17, 0
    %p158 = por %p156, %p157
    %p159 = scmp.ne.s32.totalorder %s147, %s148
    %p160 = scmp.eq.s32.totalorder %s18, 1
    %p161 = por %p159, %p160
    %p163 = scmp.ne.s32.totalorder %s148, %s162
    %p164 = scmp.eq.s32.totalorder %s18, 0
    %p165 = por %p163, %p164
    %s166 = ssub.s32 %s12, %s19
    %p167 = scmp.eq.s32.totalorder %s166, 0
    %s169 = sadd.s32 %s168, 1
    %s170 = scalar_select %p167, %s168, %s169
    %p173 = pneg %p167
    %p174 = scmp.eq.s32.totalorder %s12, 1
    %p175 = por %p173, %p174
    %p176 = scmp.ne.s32.totalorder %s168, %s171
    %p177 = scmp.eq.s32.totalorder %s12, 0
    %p178 = por %p176, %p177
    %p179 = scmp.ne.s32.totalorder %s168, %s171
    %p180 = scmp.eq.s32.totalorder %s17, 1
    %p181 = por %p179, %p180
    %p182 = scmp.ne.s32.totalorder %s171, %s172
    %p183 = scmp.eq.s32.totalorder %s17, 0
    %p184 = por %p182, %p183
    %p185 = scmp.ne.s32.totalorder %s171, %s172
    %p186 = scmp.eq.s32.totalorder %s18, 1
    %p187 = por %p185, %p186
    %p189 = scmp.ne.s32.totalorder %s172, %s188
    %p190 = scmp.eq.s32.totalorder %s18, 0
    %p191 = por %p189, %p190
    %p192 = scmp.le.s32.totalorder 1, %s12
    %p193 = scmp.lt.s32.totalorder %s12, 3
    %p194 = pnand %p192, %p193
    %p195 = pneg %p194
    // Predicated region
    $region9: #{net_forward.4} parent=5 // pred_check
      _
    $region10: #{net_forward.4} parent=5 // pred_check_branch
      %197 = sbr.rel (%p194) target = $region12
    $region11: #{net_forward.4} parent=5 // pred_region
      %s198 = ssub.s32 %s12, 1
      // Predicated region
      $region13: #{net_forward.4} parent=11 // pred_check
        %p199 = pneg %p137
      $region14: #{net_forward.4} parent=11 // pred_check_branch
        %201 = sbr.rel (%p199) target = $region16
      $region15: #{net_forward.4} parent=11 // pred_region
        _
      $region16: #{net_forward.4} parent=11 // pred_fallthru
        _
      // Predicated region
      $region17: #{net_forward.4} parent=11 // pred_check
        %p202 = pneg %p158
      $region18: #{net_forward.4} parent=11 // pred_check_branch
        %204 = sbr.rel (%p202) target = $region20
      $region19: #{net_forward.4} parent=11 // pred_region
        _
      $region20: #{net_forward.4} parent=11 // pred_fallthru
        _
    $region12: #{net_forward.4} parent=5 // pred_fallthru
      _
    %p205 = scmp.lt.s32.totalorder %s12, 2
    // Predicated region
    $region21: #{net_forward.4} parent=5 // pred_check
      %p206 = pneg %p205
    $region22: #{net_forward.4} parent=5 // pred_check_branch
      %208 = sbr.rel (%p206) target = $region24
    $region23: #{net_forward.4} parent=5 // pred_region
      // Predicated region
      $region25: #{net_forward.4} parent=23 // pred_check
        %p209 = pneg %p32
      $region26: #{net_forward.4} parent=23 // pred_check_branch
        %211 = sbr.rel (%p209) target = $region28
      $region27: #{net_forward.4} parent=23 // pred_region
        %p212 = scmp.lt.s32.totalorder %s12, 1
        %s213 = scalar_select %p212, %s12, 1
        %s214 = smul.addr %s213, 8
        %s215 = smul.addr %s214, 8
        %s216 = scalar_lea.vmem %s0, %s215
      $region28: #{net_forward.4} parent=23 // pred_fallthru
        _
      // Predicated region
      $region29: #{net_forward.4} parent=23 // pred_check
        %p217 = pneg %p58
      $region30: #{net_forward.4} parent=23 // pred_check_branch
        %219 = sbr.rel (%p217) target = $region32
      $region31: #{net_forward.4} parent=23 // pred_region
        %p220 = scmp.lt.s32.totalorder %s12, 1
        %s221 = scalar_select %p220, %s12, 1
        %s222 = smul.addr %s221, 8
        %s223 = smul.addr %s222, 8
        %s224 = scalar_lea.vmem %s1, %s223
      $region32: #{net_forward.4} parent=23 // pred_fallthru
        _
      // Predicated region
      $region33: #{net_forward.4} parent=23 // pred_check
        %p225 = pneg %p84
      $region34: #{net_forward.4} parent=23 // pred_check_branch
        %227 = sbr.rel (%p225) target = $region36
      $region35: #{net_forward.4} parent=23 // pred_region
        %p228 = scmp.lt.s32.totalorder %s12, 1
        %s229 = scalar_select %p228, %s12, 1
        %s230 = smul.addr %s229, 8
        %s231 = smul.addr %s230, 8
        %s232 = scalar_lea.vmem %s2, %s231
      $region36: #{net_forward.4} parent=23 // pred_fallthru
        _
      // Predicated region
      $region37: #{net_forward.4} parent=23 // pred_check
        %p233 = pneg %p110
      $region38: #{net_forward.4} parent=23 // pred_check_branch
        %235 = sbr.rel (%p233) target = $region40
      $region39: #{net_forward.4} parent=23 // pred_region
        %p236 = scmp.lt.s32.totalorder %s12, 1
        %s237 = scalar_select %p236, %s12, 1
        %s238 = smul.addr %s237, 8
        %s239 = smul.addr %s238, 8
        %s240 = scalar_lea.vmem %s3, %s239
      $region40: #{net_forward.4} parent=23 // pred_fallthru
        _
    $region24: #{net_forward.4} parent=5 // pred_fallthru
      _
    %p241 = scmp.le.s32.totalorder 1, %s12
    %p242 = scmp.lt.s32.totalorder %s12, 3
    %p243 = pnand %p241, %p242
    %p244 = pneg %p243
    // Predicated region
    $region41: #{net_forward.4} parent=5 // pred_check
      _
    $region42: #{net_forward.4} parent=5 // pred_check_branch
      %246 = sbr.rel (%p243) target = $region44
    $region43: #{net_forward.4} parent=5 // pred_region
      %s247 = ssub.s32 %s12, 1
      %p248 = scmp.lt.s32.totalorder %s17, 1
      %s249 = scalar_select %p248, %s17, 1
      %s250 = smul.addr %s249, 8
      %s251 = smul.addr %s250, 8
      %s252 = scalar_lea.vmem %s0, %s251
      %p253 = pneg %p38
      %p254 = pneg %p35
      %p255 = scmp.lt.s32.totalorder %s17, 1
      %s256 = scalar_select %p255, %s17, 1
      %s257 = smul.addr %s256, 8
      %s258 = smul.addr %s257, 8
      %s259 = scalar_lea.vmem %s1, %s258
      %p260 = pneg %p64
      %p261 = pneg %p61
      %p262 = scmp.lt.s32.totalorder %s17, 1
      %s263 = scalar_select %p262, %s17, 1
      %s264 = smul.addr %s263, 8
      %s265 = smul.addr %s264, 8
      %s266 = scalar_lea.vmem %s2, %s265
      %p267 = pneg %p90
      %p268 = pneg %p87
      %p269 = scmp.lt.s32.totalorder %s17, 1
      %s270 = scalar_select %p269, %s17, 1
      %s271 = smul.addr %s270, 8
      %s272 = smul.addr %s271, 8
      %s273 = scalar_lea.vmem %s3, %s272
      %p274 = pneg %p116
      %p275 = pneg %p113
      %p276 = pneg %p137
      %p277 = pneg %p134
      %p278 = pneg %p158
      %p279 = pneg %p155
      %p280 = pneg %p184
      %p281 = pneg %p181
      %p282 = scmp.lt.s32.totalorder %s17, 1
      %s283 = scalar_select %p282, %s17, 1
      %s284 = smul.addr %s283, 4
      %s285 = smul.addr %s284, 8
      %s286 = scalar_lea.vmem %s6, %s285
      %p287 = scmp.lt.s32.totalorder %s17, 1
      %s288 = scalar_select %p287, %s17, 1
      %s289 = smul.addr %s288, 8
      %s290 = smul.addr %s289, 8
      %s291 = scalar_lea.vmem %s0, %s290
      %p292 = scmp.lt.s32.totalorder %s17, 1
      %s293 = scalar_select %p292, %s17, 1
      %s294 = smul.addr %s293, 8
      %s295 = smul.addr %s294, 8
      %s296 = scalar_lea.vmem %s1, %s295
      %p297 = scmp.lt.s32.totalorder %s17, 1
      %s298 = scalar_select %p297, %s17, 1
      %s299 = smul.addr %s298, 8
      %s300 = smul.addr %s299, 8
      %s301 = scalar_lea.vmem %s2, %s300
      %p302 = scmp.lt.s32.totalorder %s17, 1
      %s303 = scalar_select %p302, %s17, 1
      %s304 = smul.addr %s303, 8
      %s305 = smul.addr %s304, 8
      %s306 = scalar_lea.vmem %s3, %s305
      %p307 = scmp.lt.s32.totalorder %s17, 1
      %s308 = scalar_select %p307, %s17, 1
      %s309 = smul.addr %s308, 4
      %s310 = smul.addr %s309, 8
      %s311 = scalar_lea.vmem %s6, %s310
      %v312 = vld [vmem:[%s4] sm:$0xff]
      %v313 = vld [vmem:[%s4 + $0x8] sm:$0xff]
      %v314 = vld [vmem:[%s4 + $0x10] sm:$0xff]
      %v315 = vld [vmem:[%s4 + $0x18] sm:$0xff]
      %v316 = vld [vmem:[%s4 + $0x20] sm:$0xff]
      %v317 = vld [vmem:[%s4 + $0x28] sm:$0xff]
      %v318 = vld [vmem:[%s4 + $0x30] sm:$0xff]
      %v319 = vld [vmem:[%s4 + $0x38] sm:$0xff]
      %v320 = vld [vmem:[%s4 + $0x40] sm:$0xff]
      %v321 = vld [vmem:[%s4 + $0x48] sm:$0xff]
      %v322 = vld [vmem:[%s4 + $0x50] sm:$0xff]
      %v323 = vld [vmem:[%s4 + $0x58] sm:$0xff]
      %v324 = vld [vmem:[%s4 + $0x60] sm:$0xff]
      %v325 = vld [vmem:[%s4 + $0x68] sm:$0xff]
      %v326 = vld [vmem:[%s4 + $0x70] sm:$0xff]
      %v327 = vld [vmem:[%s4 + $0x78] sm:$0xff]
      %v328 = vld [vmem:[%s4 + $0x80] sm:$0xff]
      %v329 = vld [vmem:[%s4 + $0x88] sm:$0xff]
      %v330 = vld [vmem:[%s4 + $0x90] sm:$0x3f]
      %v331 = vld [vmem:[%s291] sm:$0xff]
      %v332 = vld [vmem:[%s291 + $0x8] sm:$0xff]
      %v333 = vld [vmem:[%s291 + $0x10] sm:$0xff]
      %v334 = vld [vmem:[%s291 + $0x18] sm:$0xff]
      %v335 = vld [vmem:[%s291 + $0x20] sm:$0xff]
      %v336 = vld [vmem:[%s291 + $0x28] sm:$0xff]
      %v337 = vld [vmem:[%s291 + $0x30] sm:$0x1]
      %v338 = vld [vmem:[%s291 + $0x38] sm:$0x1]
      %vm339 = vcmask 179200
      %v341 = vsel %vm339, %v332, 0
      %v344 = vsel %vm339, %v334, 0
      %v347 = vsel %vm339, %v336, 0
      %v350 = vsel %vm339, %v338, 0
      %vm352 = vcmask 1045504
      %v354 = vsel %vm352, %v330, 0
      %356 = vmatprep.subr.mxu0 0.0
      %357 = vmatpush1.msra.mxu0 %v312
      %358 = vmatprep.subr.mxu0 0.0
      %359 = vmatpush1.msra.mxu0 %v313
      %360 = vmatprep.subr.mxu0 0.0
      %361 = vmatpush1.msra.mxu0 %v314
      %362 = vmatprep.subr.mxu0 0.0
      %363 = vmatpush1.msra.mxu0 %v315
      %364 = vmatprep.subr.mxu0 0.0
      %365 = vmatpush1.msra.mxu0 %v316
      %366 = vmatprep.subr.mxu0 0.0
      %367 = vmatpush1.msra.mxu0 %v317
      %368 = vmatprep.subr.mxu0 0.0
      %369 = vmatpush1.msra.mxu0 %v318
      %370 = vmatprep.subr.mxu0 0.0
      %371 = vmatpush1.msra.mxu0 %v319
      %372 = vmatprep.subr.mxu0 0.0
      %373 = vmatpush1.msra.mxu0 %v320
      %374 = vmatprep.subr.mxu0 0.0
      %375 = vmatpush1.msra.mxu0 %v321
      %376 = vmatprep.subr.mxu0 0.0
      %377 = vmatpush1.msra.mxu0 %v322
      %378 = vmatprep.subr.mxu0 0.0
      %379 = vmatpush1.msra.mxu0 %v323
      %380 = vmatprep.subr.mxu0 0.0
      %381 = vmatpush1.msra.mxu0 %v324
      %382 = vmatprep.subr.mxu0 0.0
      %383 = vmatpush1.msra.mxu0 %v325
      %384 = vmatprep.subr.mxu0 0.0
      %385 = vmatpush1.msra.mxu0 %v326
      %386 = vmatprep.subr.mxu0 0.0
      %387 = vmatpush1.msra.mxu0 %v327
      %388 = vmatprep.subr.mxu0 0.0
      %389 = vmatpush1.msra.mxu0 %v328
      %390 = vmatprep.subr.mxu0 0.0
      %391 = vmatpush1.msra.mxu0 %v329
      %392 = vmatprep.subr.mxu0 0.0
      %393 = vmatpush1.msra.mxu0 %v354
      %394 = vmatprep.subr.mxu0 0.0
      %395 = vmatpush1.msra.mxu0 0.0
      %396 = vmatprep.subr.mxu0 0.0
      %397 = vmatpush1.msra.mxu0 0.0
      %398 = vmatprep.subr.mxu0 0.0
      %399 = vmatpush1.msra.mxu0 0.0
      %400 = vmatprep.subr.mxu0 0.0
      %401 = vmatpush1.msra.mxu0 0.0
      %402 = vmatprep.subr.mxu0 0.0
      %403 = vmatpush1.msra.mxu0 0.0
      %404 = vmatprep.subr.mxu0 0.0
      %405 = vmatpush1.msra.mxu0 0.0
      %406 = vmatprep.subr.mxu0 0.0
      %407 = vmatpush1.msra.mxu0 0.0
      %408 = vmatprep.subr.mxu0 0.0
      %409 = vmatpush1.msra.mxu0 0.0
      %410 = vmatprep.subr.mxu0 0.0
      %411 = vmatpush1.msra.mxu0 0.0
      %412 = vmatprep.subr.mxu0 0.0
      %413 = vmatpush1.msra.mxu0 0.0
      %414 = vmatprep.subr.mxu0 0.0
      %415 = vmatpush1.msra.mxu0 0.0
      %416 = vmatprep.subr.mxu0 0.0
      %417 = vmatpush1.msra.mxu0 0.0
      %418 = vmatprep.subr.mxu0 0.0
      %419 = vmatpush1.msra.mxu0 0.0
      %420 = vmatprep.mubr.f32.mxu0 %v341
      %421 = vmatmul.mubr.f32.gmra.mrb[0].mxu0 %v331
      %v422 = vpop.f32.mrb[0].mxu0
      %v423 = vadd.f32 0.0, %v422
      %v424 = vpop.f32.mrb[0].mxu0
      %425 = vmatprep.mubr.f32.mxu0 %v344
      %426 = vmatmul.mubr.f32.gmra.mrb[0].mxu0 %v333
      %v427 = vpop.f32.mrb[0].mxu0
      %v428 = vadd.f32 0.0, %v427
      %v429 = vpop.f32.mrb[0].mxu0
      %430 = vmatprep.mubr.f32.mxu0 %v347
      %431 = vmatmul.mubr.f32.gmra.mrb[0].mxu0 %v335
      %v432 = vpop.f32.mrb[0].mxu0
      %v433 = vadd.f32 0.0, %v432
      %v434 = vpop.f32.mrb[0].mxu0
      %435 = vmatprep.mubr.f32.mxu0 %v350
      %436 = vmatmul.mubr.f32.gmra.mrb[0].mxu0 %v337
      %v437 = vpop.f32.mrb[0].mxu0
      %v438 = vadd.f32 0.0, %v437
      %v439 = vpop.f32.mrb[0].mxu0
      %440 = vdwg.mxu0
      %v441 = vld [vmem:[%s296] sm:$0xff]
      %v442 = vld [vmem:[%s296 + $0x8] sm:$0xff]
      %v443 = vld [vmem:[%s296 + $0x10] sm:$0xff]
      %v444 = vld [vmem:[%s296 + $0x18] sm:$0xff]
      %v445 = vld [vmem:[%s296 + $0x20] sm:$0xff]
      %v446 = vld [vmem:[%s296 + $0x28] sm:$0xff]
      %v447 = vld [vmem:[%s296 + $0x30] sm:$0x1]
      %v448 = vld [vmem:[%s296 + $0x38] sm:$0x1]
      %v450 = vsel %vm339, %v442, 0
      %v453 = vsel %vm339, %v444, 0
      %v456 = vsel %vm339, %v446, 0
      %v459 = vsel %vm339, %v448, 0
      %461 = vmatprep.subr.mxu0 0.0
      %462 = vmatpush1.msra.mxu0 %v312
      %463 = vmatprep.subr.mxu0 0.0
      %464 = vmatpush1.msra.mxu0 %v313
      %465 = vmatprep.subr.mxu0 0.0
      %466 = vmatpush1.msra.mxu0 %v314
      %467 = vmatprep.subr.mxu0 0.0
      %468 = vmatpush1.msra.mxu0 %v315
      %469 = vmatprep.subr.mxu0 0.0
      %470 = vmatpush1.msra.mxu0 %v316
      %471 = vmatprep.subr.mxu0 0.0
      %472 = vmatpush1.msra.mxu0 %v317
      %473 = vmatprep.subr.mxu0 0.0
      %474 = vmatpush1.msra.mxu0 %v318
      %475 = vmatprep.subr.mxu0 0.0
      %476 = vmatpush1.msra.mxu0 %v319
      %477 = vmatprep.subr.mxu0 0.0
      %478 = vmatpush1.msra.mxu0 %v320
      %479 = vmatprep.subr.mxu0 0.0
      %480 = vmatpush1.msra.mxu0 %v321
      %481 = vmatprep.subr.mxu0 0.0
      %482 = vmatpush1.msra.mxu0 %v322
      %483 = vmatprep.subr.mxu0 0.0
      %484 = vmatpush1.msra.mxu0 %v323
      %485 = vmatprep.subr.mxu0 0.0
      %486 = vmatpush1.msra.mxu0 %v324
      %487 = vmatprep.subr.mxu0 0.0
      %488 = vmatpush1.msra.mxu0 %v325
      %489 = vmatprep.subr.mxu0 0.0
      %490 = vmatpush1.msra.mxu0 %v326
      %491 = vmatprep.subr.mxu0 0.0
      %492 = vmatpush1.msra.mxu0 %v327
      %493 = vmatprep.subr.mxu0 0.0
      %494 = vmatpush1.msra.mxu0 %v328
      %495 = vmatprep.subr.mxu0 0.0
      %496 = vmatpush1.msra.mxu0 %v329
      %497 = vmatprep.subr.mxu0 0.0
      %498 = vmatpush1.msra.mxu0 %v354
      %499 = vmatprep.subr.mxu0 0.0
      %500 = vmatpush1.msra.mxu0 0.0
      %501 = vmatprep.subr.mxu0 0.0
      %502 = vmatpush1.msra.mxu0 0.0
      %503 = vmatprep.subr.mxu0 0.0
      %504 = vmatpush1.msra.mxu0 0.0
      %505 = vmatprep.subr.mxu0 0.0
      %506 = vmatpush1.msra.mxu0 0.0
      %507 = vmatprep.subr.mxu0 0.0
      %508 = vmatpush1.msra.mxu0 0.0
      %509 = vmatprep.subr.mxu0 0.0
      %510 = vmatpush1.msra.mxu0 0.0
      %511 = vmatprep.subr.mxu0 0.0
      %512 = vmatpush1.msra.mxu0 0.0
      %513 = vmatprep.subr.mxu0 0.0
      %514 = vmatpush1.msra.mxu0 0.0
      %515 = vmatprep.subr.mxu0 0.0
      %516 = vmatpush1.msra.mxu0 0.0
      %517 = vmatprep.subr.mxu0 0.0
      %518 = vmatpush1.msra.mxu0 0.0
      %519 = vmatprep.subr.mxu0 0.0
      %520 = vmatpush1.msra.mxu0 0.0
      %521 = vmatprep.subr.mxu0 0.0
      %522 = vmatpush1.msra.mxu0 0.0
      %523 = vmatprep.subr.mxu0 0.0
      %524 = vmatpush1.msra.mxu0 0.0
      %525 = vmatprep.mubr.f32.mxu0 %v450
      %526 = vmatmul.mubr.f32.gmra.mrb[0].mxu0 %v441
      %v527 = vpop.f32.mrb[0].mxu0
      %v528 = vadd.f32 0.0, %v527
      %v529 = vpop.f32.mrb[0].mxu0
      %530 = vmatprep.mubr.f32.mxu0 %v453
      %531 = vmatmul.mubr.f32.gmra.mrb[0].mxu0 %v443
      %v532 = vpop.f32.mrb[0].mxu0
      %v533 = vadd.f32 0.0, %v532
      %v534 = vpop.f32.mrb[0].mxu0
      %535 = vmatprep.mubr.f32.mxu0 %v456
      %536 = vmatmul.mubr.f32.gmra.mrb[0].mxu0 %v445
      %v537 = vpop.f32.mrb[0].mxu0
      %v538 = vadd.f32 0.0, %v537
      %v539 = vpop.f32.mrb[0].mxu0
      %540 = vmatprep.mubr.f32.mxu0 %v459
      %541 = vmatmul.mubr.f32.gmra.mrb[0].mxu0 %v447
      %v542 = vpop.f32.mrb[0].mxu0
      %v543 = vadd.f32 0.0, %v542
      %v544 = vpop.f32.mrb[0].mxu0
      %545 = vdwg.mxu0
      %v546 = vmax.f32 %v423, %v528
      %v547 = vmax.f32 %v428, %v533
      %v548 = vmax.f32 %v433, %v538
      %v549 = vmax.f32 %v438, %v543
      %v550 = vld [vmem:[%s301] sm:$0xff]
      %v551 = vld [vmem:[%s301 + $0x8] sm:$0xff]
      %v552 = vld [vmem:[%s301 + $0x10] sm:$0xff]
      %v553 = vld [vmem:[%s301 + $0x18] sm:$0xff]
      %v554 = vld [vmem:[%s301 + $0x20] sm:$0xff]
      %v555 = vld [vmem:[%s301 + $0x28] sm:$0xff]
      %v556 = vld [vmem:[%s301 + $0x30] sm:$0x1]
      %v557 = vld [vmem:[%s301 + $0x38] sm:$0x1]
      %v559 = vsel %vm339, %v551, 0
      %v562 = vsel %vm339, %v553, 0
      %v565 = vsel %vm339, %v555, 0
      %v568 = vsel %vm339, %v557, 0
      %570 = vmatprep.subr.mxu0 0.0
      %571 = vmatpush1.msra.mxu0 %v312
      %572 = vmatprep.subr.mxu0 0.0
      %573 = vmatpush1.msra.mxu0 %v313
      %574 = vmatprep.subr.mxu0 0.0
      %575 = vmatpush1.msra.mxu0 %v314
      %576 = vmatprep.subr.mxu0 0.0
      %577 = vmatpush1.msra.mxu0 %v315
      %578 = vmatprep.subr.mxu0 0.0
      %579 = vmatpush1.msra.mxu0 %v316
      %580 = vmatprep.subr.mxu0 0.0
      %581 = vmatpush1.msra.mxu0 %v317
      %582 = vmatprep.subr.mxu0 0.0
      %583 = vmatpush1.msra.mxu0 %v318
      %584 = vmatprep.subr.mxu0 0.0
      %585 = vmatpush1.msra.mxu0 %v319
      %586 = vmatprep.subr.mxu0 0.0
      %587 = vmatpush1.msra.mxu0 %v320
      %588 = vmatprep.subr.mxu0 0.0
      %589 = vmatpush1.msra.mxu0 %v321
      %590 = vmatprep.subr.mxu0 0.0
      %591 = vmatpush1.msra.mxu0 %v322
      %592 = vmatprep.subr.mxu0 0.0
      %593 = vmatpush1.msra.mxu0 %v323
      %594 = vmatprep.subr.mxu0 0.0
      %595 = vmatpush1.msra.mxu0 %v324
      %596 = vmatprep.subr.mxu0 0.0
      %597 = vmatpush1.msra.mxu0 %v325
      %598 = vmatprep.subr.mxu0 0.0
      %599 = vmatpush1.msra.mxu0 %v326
      %600 = vmatprep.subr.mxu0 0.0
      %601 = vmatpush1.msra.mxu0 %v327
      %602 = vmatprep.subr.mxu0 0.0
      %603 = vmatpush1.msra.mxu0 %v328
      %604 = vmatprep.subr.mxu0 0.0
      %605 = vmatpush1.msra.mxu0 %v329
      %606 = vmatprep.subr.mxu0 0.0
      %607 = vmatpush1.msra.mxu0 %v354
      %608 = vmatprep.subr.mxu0 0.0
      %609 = vmatpush1.msra.mxu0 0.0
      %610 = vmatprep.subr.mxu0 0.0
      %611 = vmatpush1.msra.mxu0 0.0
      %612 = vmatprep.subr.mxu0 0.0
      %613 = vmatpush1.msra.mxu0 0.0
      %614 = vmatprep.subr.mxu0 0.0
      %615 = vmatpush1.msra.mxu0 0.0
      %616 = vmatprep.subr.mxu0 0.0
      %617 = vmatpush1.msra.mxu0 0.0
      %618 = vmatprep.subr.mxu0 0.0
      %619 = vmatpush1.msra.mxu0 0.0
      %620 = vmatprep.subr.mxu0 0.0
      %621 = vmatpush1.msra.mxu0 0.0
      %622 = vmatprep.subr.mxu0 0.0
      %623 = vmatpush1.msra.mxu0 0.0
      %624 = vmatprep.subr.mxu0 0.0
      %625 = vmatpush1.msra.mxu0 0.0
      %626 = vmatprep.subr.mxu0 0.0
      %627 = vmatpush1.msra.mxu0 0.0
      %628 = vmatprep.subr.mxu0 0.0
      %629 = vmatpush1.msra.mxu0 0.0
      %630 = vmatprep.subr.mxu0 0.0
      %631 = vmatpush1.msra.mxu0 0.0
      %632 = vmatprep.subr.mxu0 0.0
      %633 = vmatpush1.msra.mxu0 0.0
      %634 = vmatprep.mubr.f32.mxu0 %v559
      %635 = vmatmul.mubr.f32.gmra.mrb[0].mxu0 %v550
      %v636 = vpop.f32.mrb[0].mxu0
      %v637 = vadd.f32 0.0, %v636
      %v638 = vpop.f32.mrb[0].mxu0
      %639 = vmatprep.mubr.f32.mxu0 %v562
      %640 = vmatmul.mubr.f32.gmra.mrb[0].mxu0 %v552
      %v641 = vpop.f32.mrb[0].mxu0
      %v642 = vadd.f32 0.0, %v641
      %v643 = vpop.f32.mrb[0].mxu0
      %644 = vmatprep.mubr.f32.mxu0 %v565
      %645 = vmatmul.mubr.f32.gmra.mrb[0].mxu0 %v554
      %v646 = vpop.f32.mrb[0].mxu0
      %v647 = vadd.f32 0.0, %v646
      %v648 = vpop.f32.mrb[0].mxu0
      %649 = vmatprep.mubr.f32.mxu0 %v568
      %650 = vmatmul.mubr.f32.gmra.mrb[0].mxu0 %v556
      %v651 = vpop.f32.mrb[0].mxu0
      %v652 = vadd.f32 0.0, %v651
      %v653 = vpop.f32.mrb[0].mxu0
      %654 = vdwg.mxu0
      %v655 = vld [vmem:[%s306] sm:$0xff]
      %v656 = vld [vmem:[%s306 + $0x8] sm:$0xff]
      %v657 = vld [vmem:[%s306 + $0x10] sm:$0xff]
      %v658 = vld [vmem:[%s306 + $0x18] sm:$0xff]
      %v659 = vld [vmem:[%s306 + $0x20] sm:$0xff]
      %v660 = vld [vmem:[%s306 + $0x28] sm:$0xff]
      %v661 = vld [vmem:[%s306 + $0x30] sm:$0x1]
      %v662 = vld [vmem:[%s306 + $0x38] sm:$0x1]
      %v664 = vsel %vm339, %v656, 0
      %v667 = vsel %vm339, %v658, 0
      %v670 = vsel %vm339, %v660, 0
      %v673 = vsel %vm339, %v662, 0
      %675 = vmatprep.subr.mxu0 0.0
      %676 = vmatpush1.msra.mxu0 %v312
      %677 = vmatprep.subr.mxu0 0.0
      %678 = vmatpush1.msra.mxu0 %v313
      %679 = vmatprep.subr.mxu0 0.0
      %680 = vmatpush1.msra.mxu0 %v314
      %681 = vmatprep.subr.mxu0 0.0
      %682 = vmatpush1.msra.mxu0 %v315
      %683 = vmatprep.subr.mxu0 0.0
      %684 = vmatpush1.msra.mxu0 %v316
      %685 = vmatprep.subr.mxu0 0.0
      %686 = vmatpush1.msra.mxu0 %v317
      %687 = vmatprep.subr.mxu0 0.0
      %688 = vmatpush1.msra.mxu0 %v318
      %689 = vmatprep.subr.mxu0 0.0
      %690 = vmatpush1.msra.mxu0 %v319
      %691 = vmatprep.subr.mxu0 0.0
      %692 = vmatpush1.msra.mxu0 %v320
      %693 = vmatprep.subr.mxu0 0.0
      %694 = vmatpush1.msra.mxu0 %v321
      %695 = vmatprep.subr.mxu0 0.0
      %696 = vmatpush1.msra.mxu0 %v322
      %697 = vmatprep.subr.mxu0 0.0
      %698 = vmatpush1.msra.mxu0 %v323
      %699 = vmatprep.subr.mxu0 0.0
      %700 = vmatpush1.msra.mxu0 %v324
      %701 = vmatprep.subr.mxu0 0.0
      %702 = vmatpush1.msra.mxu0 %v325
      %703 = vmatprep.subr.mxu0 0.0
      %704 = vmatpush1.msra.mxu0 %v326
      %705 = vmatprep.subr.mxu0 0.0
      %706 = vmatpush1.msra.mxu0 %v327
      %707 = vmatprep.subr.mxu0 0.0
      %708 = vmatpush1.msra.mxu0 %v328
      %709 = vmatprep.subr.mxu0 0.0
      %710 = vmatpush1.msra.mxu0 %v329
      %711 = vmatprep.subr.mxu0 0.0
      %712 = vmatpush1.msra.mxu0 %v354
      %713 = vmatprep.subr.mxu0 0.0
      %714 = vmatpush1.msra.mxu0 0.0
      %715 = vmatprep.subr.mxu0 0.0
      %716 = vmatpush1.msra.mxu0 0.0
      %717 = vmatprep.subr.mxu0 0.0
      %718 = vmatpush1.msra.mxu0 0.0
      %719 = vmatprep.subr.mxu0 0.0
      %720 = vmatpush1.msra.mxu0 0.0
      %721 = vmatprep.subr.mxu0 0.0
      %722 = vmatpush1.msra.mxu0 0.0
      %723 = vmatprep.subr.mxu0 0.0
      %724 = vmatpush1.msra.mxu0 0.0
      %725 = vmatprep.subr.mxu0 0.0
      %726 = vmatpush1.msra.mxu0 0.0
      %727 = vmatprep.subr.mxu0 0.0
      %728 = vmatpush1.msra.mxu0 0.0
      %729 = vmatprep.subr.mxu0 0.0
      %730 = vmatpush1.msra.mxu0 0.0
      %731 = vmatprep.subr.mxu0 0.0
      %732 = vmatpush1.msra.mxu0 0.0
      %733 = vmatprep.subr.mxu0 0.0
      %734 = vmatpush1.msra.mxu0 0.0
      %735 = vmatprep.subr.mxu0 0.0
      %736 = vmatpush1.msra.mxu0 0.0
      %737 = vmatprep.subr.mxu0 0.0
      %738 = vmatpush1.msra.mxu0 0.0
      %739 = vmatprep.mubr.f32.mxu0 %v664
      %740 = vmatmul.mubr.f32.gmra.mrb[0].mxu0 %v655
      %v741 = vpop.f32.mrb[0].mxu0
      %v742 = vadd.f32 0.0, %v741
      %v743 = vpop.f32.mrb[0].mxu0
      %744 = vmatprep.mubr.f32.mxu0 %v667
      %745 = vmatmul.mubr.f32.gmra.mrb[0].mxu0 %v657
      %v746 = vpop.f32.mrb[0].mxu0
      %v747 = vadd.f32 0.0, %v746
      %v748 = vpop.f32.mrb[0].mxu0
      %749 = vmatprep.mubr.f32.mxu0 %v670
      %750 = vmatmul.mubr.f32.gmra.mrb[0].mxu0 %v659
      %v751 = vpop.f32.mrb[0].mxu0
      %v752 = vadd.f32 0.0, %v751
      %v753 = vpop.f32.mrb[0].mxu0
      %754 = vmatprep.mubr.f32.mxu0 %v673
      %755 = vmatmul.mubr.f32.gmra.mrb[0].mxu0 %v661
      %v756 = vpop.f32.mrb[0].mxu0
      %v757 = vadd.f32 0.0, %v756
      %v758 = vpop.f32.mrb[0].mxu0
      %759 = vdwg.mxu0
      %v760 = vmax.f32 %v637, %v742
      %v761 = vmax.f32 %v642, %v747
      %v762 = vmax.f32 %v647, %v752
      %v763 = vmax.f32 %v652, %v757
      %v764 = vmax.f32 %v546, %v760
      %v765 = vmax.f32 %v547, %v761
      %v766 = vmax.f32 %v548, %v762
      %v767 = vmax.f32 %v549, %v763
      %v768 = vld [vmem:[%s5] sm:$0x1]
      %v770 = vlaneseq
      %v771 = vshrl.u32 %v770, 7
      %v772 = vsub.s32 0, %v771
      %v773 = vrot.slane %v768, %v772
      %v775 = vadd.f32 %v764, %v773
      %v776 = vadd.f32 %v765, %v773
      %v777 = vadd.f32 %v766, %v773
      %v778 = vadd.f32 %v767, %v773
      %v779 = vmax.f32 %v775, 0.0
      %v780 = vmax.f32 %v776, 0.0
      %v781 = vmax.f32 %v777, 0.0
      %v782 = vmax.f32 %v778, 0.0
      %783 = vst [vmem:[%s311] sm:$0xff] %v779
      %784 = vst [vmem:[%s311 + $0x8] sm:$0xff] %v780
      %785 = vst [vmem:[%s311 + $0x10] sm:$0xff] %v781
      %786 = vst [vmem:[%s311 + $0x18] sm:$0x1] %v782
      %p787 = scmp.lt.s32.totalorder %s17, 1
      %s788 = scalar_select %p787, %s17, 1
      %s789 = smul.addr %s788, 4
      %s790 = smul.addr %s789, 8
      %s791 = scalar_lea.vmem %s6, %s790
      // Predicated region
      $region45: #{net_forward.4} parent=43 // pred_check
        %p792 = pneg %p181
      $region46: #{net_forward.4} parent=43 // pred_check_branch
        %794 = sbr.rel (%p792) target = $region48
      $region47: #{net_forward.4} parent=43 // pred_region
        _
      $region48: #{net_forward.4} parent=43 // pred_fallthru
        _
    $region44: #{net_forward.4} parent=5 // pred_fallthru
      _
    %p795 = scmp.le.s32.totalorder 2, %s12
    // Predicated region
    $region49: #{net_forward.4} parent=5 // pred_check
      %p796 = pneg %p795
    $region50: #{net_forward.4} parent=5 // pred_check_branch
      %798 = sbr.rel (%p796) target = $region52
    $region51: #{net_forward.4} parent=5 // pred_region
      %s799 = ssub.s32 %s12, 2
      // Predicated region
      $region53: #{net_forward.4} parent=51 // pred_check
        %p800 = pneg %p187
      $region54: #{net_forward.4} parent=51 // pred_check_branch
        %802 = sbr.rel (%p800) target = $region56
      $region55: #{net_forward.4} parent=51 // pred_region
        %p803 = scmp.lt.s32.totalorder %s18, 1
        %s804 = scalar_select %p803, %s18, 1
        %s805 = smul.addr %s804, 4
        %s806 = smul.addr %s805, 8
        %s807 = scalar_lea.vmem %s6, %s806
      $region56: #{net_forward.4} parent=51 // pred_fallthru
        _
    $region52: #{net_forward.4} parent=5 // pred_fallthru
      _
  $region6: #{net_forward.4} parent=0 // loop_footer
    %s16 = sadd.s32 1, %s12
  $region7: #{net_forward.4} parent=0 // loop_footer_branch
    %11 = sbr.rel target = $region3
  $region8: #{net_forward.4} parent=0 // loop_exit
    _

</llo_original>
